<compile_context>
chip_gen: v5e
topology: v5e:2x2
jax: 0.10.0
libtpu: 0.0.40
codegen_flags: <defaults>
</compile_context>

<pallas_src>
import functools

import jax
import jax.numpy as jnp
import numpy as np
from jax import lax
from jax.experimental import pallas as pl
from jax.experimental.pallas import tpu as pltpu

EPS = 1e-5
LANE = 128


def _round_up(x, m):
    return ((x + m - 1) // m) * m


def _basic_block_kernel(*refs, is_shortcut):
    if is_shortcut:
        (xpad_ref, w1_ref, s1_ref, b1_ref, w2_ref, s2_ref, b2_ref,
         ws_ref, ss_ref, bs_ref, out_ref, zpad_ref) = refs
    else:
        (xpad_ref, w1_ref, s1_ref, b1_ref, w2_ref, s2_ref, b2_ref,
         out_ref, zpad_ref) = refs

    Hp2, Wp2, Cin = xpad_ref.shape[1], xpad_ref.shape[2], xpad_ref.shape[3]
    H, W = Hp2 - 2, Wp2 - 2
    C = w1_ref.shape[2]      # padded mid channels
    Cout = w2_ref.shape[2]   # padded out channels

    # --- conv_bn1: 3x3 conv (stride 1, pad 1) + folded BN + ReLU --------------
    # dw taps folded into the contraction: one (H*W, 3*Cin) x (3*Cin, C) matmul
    # per dh tap, bf16 operands, f32 accumulation on the MXU.
    z1 = jnp.zeros((H * W, C), jnp.float32)
    for dh in range(3):
        rows = xpad_ref[0, dh:dh + H, :, :]                       # (H, W+2, Cin) bf16
        patch = jnp.concatenate(
            [rows[:, 0:W, :], rows[:, 1:W + 1, :], rows[:, 2:W + 2, :]],
            axis=-1).reshape(H * W, 3 * Cin)
        z1 = z1 + jnp.dot(patch, w1_ref[dh],
                          preferred_element_type=jnp.float32)
    z1 = jnp.maximum(z1 * s1_ref[...] + b1_ref[...], 0.0)

    # --- re-pad intermediate activation in bf16 VMEM scratch for conv2 --------
    # Only the 1-element halo strips are zeroed (cheap); interior overwritten.
    zeros_row = jnp.zeros((1, Wp2, C), jnp.bfloat16)
    zpad_ref[0:1, :, :] = zeros_row
    zpad_ref[H + 1:H + 2, :, :] = zeros_row
    zeros_col = jnp.zeros((H, 1, C), jnp.bfloat16)
    zpad_ref[1:H + 1, 0:1, :] = zeros_col
    zpad_ref[1:H + 1, W + 1:W + 2, :] = zeros_col
    zpad_ref[1:H + 1, 1:W + 1, :] = z1.astype(jnp.bfloat16).reshape(H, W, C)

    # --- conv_bn2: 3x3 conv (stride 1, pad 1) + folded BN ----------------------
    z2 = jnp.zeros((H * W, Cout), jnp.float32)
    for dh in range(3):
        rows = zpad_ref[dh:dh + H, :, :]                          # (H, W+2, C) bf16
        patch = jnp.concatenate(
            [rows[:, 0:W, :], rows[:, 1:W + 1, :], rows[:, 2:W + 2, :]],
            axis=-1).reshape(H * W, 3 * C)
        z2 = z2 + jnp.dot(patch, w2_ref[dh],
                          preferred_element_type=jnp.float32)
    z2 = z2 * s2_ref[...] + b2_ref[...]

    # --- shortcut: projection (1x1 conv + folded BN) or identity --------------
    # Reads the interior of the padded input block, so no second HBM copy of x.
    xs = xpad_ref[0, 1:H + 1, 1:W + 1, :].reshape(H * W, Cin)
    if is_shortcut:
        zs = jnp.dot(xs, ws_ref[...],
                     preferred_element_type=jnp.float32) * ss_ref[...] + bs_ref[...]
    else:
        zs = xs.astype(jnp.float32)   # identity: requires Cin_p == Cout_p

    # --- residual add + final ReLU (f32 epilogue) ------------------------------
    out_ref[0] = jnp.maximum(z2 + zs, 0.0).reshape(H, W, Cout).astype(out_ref.dtype)


def _fold_bn(gamma, beta, mean, var, c_pad):
    scale = gamma / jnp.sqrt(var + EPS)
    bias = beta - mean * scale
    scale = jnp.pad(scale, (0, c_pad - scale.shape[0]))
    bias = jnp.pad(bias, (0, c_pad - bias.shape[0]))
    return (scale.reshape(1, -1).astype(jnp.float32),
            bias.reshape(1, -1).astype(jnp.float32))


def _prep_conv3x3(w_hwio, cin_p, cout_p):
    """(3,3,Cin,Cout) HWIO -> zero-padded, bf16, reshaped to (3, 3*Cin_p, Cout_p).

    Row index within a dh slice is dw*Cin_p + ci, matching the lane-wise
    concatenation order of the input patch inside the kernel."""
    kh, kw, cin, cout = w_hwio.shape
    w = jnp.pad(w_hwio, ((0, 0), (0, 0), (0, cin_p - cin), (0, cout_p - cout)))
    return w.reshape(kh, kw * cin_p, cout_p).astype(jnp.bfloat16)


def basic_block_forward(x_nchw, params, is_shortcut=True):
    """x_nchw: (N, Cin, H, W) float32.  Returns (N, Cout, H, W) float32."""
    x = jnp.transpose(x_nchw, (0, 2, 3, 1))  # NCHW -> NHWC
    N, H, W, Cin = x.shape
    C = params["w1"].shape[3]
    Cout = params["w2"].shape[3]

    Cin_p = _round_up(Cin, LANE)
    C_p = _round_up(C, LANE)
    Cout_p = _round_up(Cout, LANE)
    if not is_shortcut:
        assert Cin == Cout and Cin_p == Cout_p, (
            "identity shortcut requires matching in/out channel counts")

    w1 = _prep_conv3x3(params["w1"], Cin_p, C_p)       # (3, 3*Cin_p, C_p)  bf16
    w2 = _prep_conv3x3(params["w2"], C_p, Cout_p)      # (3, 3*C_p, Cout_p) bf16
    s1, b1 = _fold_bn(params["g1"], params["be1"], params["m1"], params["v1"], C_p)
    s2, b2 = _fold_bn(params["g2"], params["be2"], params["m2"], params["v2"], Cout_p)

    # Spatial halo pad + lane-dense channel pad + bf16 cast in one shot.
    xpad = jnp.pad(x, ((0, 0), (1, 1), (1, 1), (0, Cin_p - Cin))).astype(jnp.bfloat16)

    # Grid-invariant operands live whole-array in VMEM (single-buffered; the
    # default blocked pipeline would double-buffer them for no benefit).
    resident = pl.BlockSpec(memory_space=pltpu.MemorySpace.VMEM)

    in_specs = [pl.BlockSpec((1, H + 2, W + 2, Cin_p), lambda n: (n, 0, 0, 0)),
                resident, resident, resident,    # w1, s1, b1
                resident, resident, resident]    # w2, s2, b2
    inputs = [xpad, w1, s1, b1, w2, s2, b2]

    flops_per_img = 2 * H * W * (9 * Cin_p * C_p + 9 * C_p * Cout_p)
    weight_bytes = (w1.size + w2.size) * 2 + (s1.size + b1.size + s2.size + b2.size) * 4

    if is_shortcut:
        ws = jnp.pad(params["ws"],
                     ((0, Cin_p - Cin), (0, Cout_p - Cout))).astype(jnp.bfloat16)
        ss, bs = _fold_bn(params["gs"], params["bes"], params["ms"], params["vs"],
                          Cout_p)
        in_specs += [resident, resident, resident]
        inputs += [ws, ss, bs]
        flops_per_img += 2 * H * W * Cin_p * Cout_p
        weight_bytes += ws.size * 2 + (ss.size + bs.size) * 4

    # Explicit VMEM budget: ~70% of physical VMEM, capped at 96 MiB
    # (v5e/v6e: ~90 MiB; v7x (64 MiB physical): ~45 MiB).
    try:
        vmem_cap = pltpu.get_tpu_info().vmem_capacity_bytes
    except Exception:
        vmem_cap = 128 * 1024 * 1024
    vmem_limit = int(min(0.7 * vmem_cap, 96 * 1024 * 1024))

    cost = pl.CostEstimate(
        flops=int(N * flops_per_img),
        transcendentals=0,
        bytes_accessed=int(xpad.size * 2 + weight_bytes + N * H * W * Cout_p * 4))

    out_nhwc = pl.pallas_call(
        functools.partial(_basic_block_kernel, is_shortcut=is_shortcut),
        out_shape=jax.ShapeDtypeStruct((N, H, W, Cout_p), jnp.float32),
        grid_spec=pltpu.PrefetchScalarGridSpec(
            num_scalar_prefetch=0,
            grid=(N,),
            in_specs=in_specs,
            out_specs=pl.BlockSpec((1, H, W, Cout_p), lambda n: (n, 0, 0, 0)),
            scratch_shapes=[pltpu.VMEM((H + 2, W + 2, C_p), jnp.bfloat16)],
        ),
        compiler_params=pltpu.CompilerParams(
            dimension_semantics=("parallel",),   # batch elems independent -> 2 TCs on v7x
            vmem_limit_bytes=vmem_limit),
        cost_estimate=cost,
    )(*inputs)

    out = out_nhwc if Cout == Cout_p else out_nhwc[..., :Cout]  # drop padded channels
    return jnp.transpose(out, (0, 3, 1, 2))       # NHWC -> NCHW


# ------------------------------ reference -------------------------------------
def _conv_bn_ref(x_nhwc, w_hwio, gamma, beta, mean, var):
    y = lax.conv_general_dilated(
        x_nhwc, w_hwio, window_strides=(1, 1), padding="SAME",
        dimension_numbers=("NHWC", "HWIO", "NHWC"))
    scale = gamma / jnp.sqrt(var + EPS)
    return y * scale + (beta - mean * scale)


def basic_block_ref(x_nchw, p, is_shortcut=True):
    x = jnp.transpose(x_nchw, (0, 2, 3, 1))
    z = jax.nn.relu(_conv_bn_ref(x, p["w1"], p["g1"], p["be1"], p["m1"], p["v1"]))
    z = _conv_bn_ref(z, p["w2"], p["g2"], p["be2"], p["m2"], p["v2"])
    if is_shortcut:
        cin, cout = p["ws"].shape
        ws_hwio = p["ws"].reshape(1, 1, cin, cout)
        xs = _conv_bn_ref(x, ws_hwio, p["gs"], p["bes"], p["ms"], p["vs"])
    else:
        xs = x
    out = jax.nn.relu(z + xs)
    return jnp.transpose(out, (0, 3, 1, 2))


# ------------------------------- driver ----------------------------------------
def make_params(key, cin, c, cout, is_shortcut=True):
    ks = jax.random.split(key, 16)
    p = {
        "w1": 0.1 * jax.random.normal(ks[0], (3, 3, cin, c), jnp.float32),
        "w2": 0.1 * jax.random.normal(ks[1], (3, 3, c, cout), jnp.float32),
        "g1": 1.0 + 0.1 * jax.random.normal(ks[3], (c,), jnp.float32),
        "be1": 0.05 * jax.random.normal(ks[4], (c,), jnp.float32),
        "m1": 0.05 * jax.random.normal(ks[5], (c,), jnp.float32),
        "v1": 1.0 + 0.1 * jax.random.uniform(ks[6], (c,), jnp.float32),
        "g2": 1.0 + 0.1 * jax.random.normal(ks[7], (cout,), jnp.float32),
        "be2": 0.05 * jax.random.normal(ks[8], (cout,), jnp.float32),
        "m2": 0.05 * jax.random.normal(ks[9], (cout,), jnp.float32),
        "v2": 1.0 + 0.1 * jax.random.uniform(ks[10], (cout,), jnp.float32),
    }
    if is_shortcut:
        p.update({
            "ws": 0.1 * jax.random.normal(ks[2], (cin, cout), jnp.float32),
            "gs": 1.0 + 0.1 * jax.random.normal(ks[11], (cout,), jnp.float32),
            "bes": 0.05 * jax.random.normal(ks[12], (cout,), jnp.float32),
            "ms": 0.05 * jax.random.normal(ks[13], (cout,), jnp.float32),
            "vs": 1.0 + 0.1 * jax.random.uniform(ks[14], (cout,), jnp.float32),
        })
    return p


if __name__ == "__main__":
    key = jax.random.PRNGKey(0)
    kx1, kx2, kp1, kp2 = jax.random.split(key, 4)

    # Projection-shortcut block (is_shortcut=True).
    N, Cin, C, Cout, H, W = 2, 4, 8, 16, 16, 16
    x1 = jax.random.normal(kx1, (N, Cin, H, W), jnp.float32)
    p1 = make_params(kp1, Cin, C, Cout, is_shortcut=True)
    out1 = jax.block_until_ready(basic_block_forward(x1, p1, is_shortcut=True))
    ref1 = jax.block_until_ready(basic_block_ref(x1, p1, is_shortcut=True))
    # Tolerance accounts for bf16 matmul operands (f32 accumulation) vs f32 ref.
    np.testing.assert_allclose(np.asarray(out1), np.asarray(ref1),
                               rtol=5e-2, atol=5e-2)

    # Identity-shortcut block (is_shortcut=False, Cin == Cout).
    Cin2, C2, Cout2 = 16, 8, 16
    x2 = jax.random.normal(kx2, (N, Cin2, H, W), jnp.float32)
    p2 = make_params(kp2, Cin2, C2, Cout2, is_shortcut=False)
    out2 = jax.block_until_ready(basic_block_forward(x2, p2, is_shortcut=False))
    ref2 = jax.block_until_ready(basic_block_ref(x2, p2, is_shortcut=False))
    np.testing.assert_allclose(np.asarray(out2), np.asarray(ref2),
                               rtol=5e-2, atol=5e-2)

    print("KERNEL_OK")
</pallas_src>

<mosaic_0001>
module attributes {stable_mosaic.version = 11 : i64} {
  func.func @_basic_block_kernel(%arg0: i32, %arg1: memref<1x18x18x128xbf16, #tpu.memory_space<vmem>>, %arg2: memref<3x384x128xbf16, #tpu.memory_space<vmem>>, %arg3: memref<1x128xf32, #tpu.memory_space<vmem>>, %arg4: memref<1x128xf32, #tpu.memory_space<vmem>>, %arg5: memref<3x384x128xbf16, #tpu.memory_space<vmem>>, %arg6: memref<1x128xf32, #tpu.memory_space<vmem>>, %arg7: memref<1x128xf32, #tpu.memory_space<vmem>>, %arg8: memref<128x128xbf16, #tpu.memory_space<vmem>>, %arg9: memref<1x128xf32, #tpu.memory_space<vmem>>, %arg10: memref<1x128xf32, #tpu.memory_space<vmem>>, %arg11: memref<1x16x16x128xf32, #tpu.memory_space<vmem>>, %arg12: memref<18x18x128xbf16, #tpu.memory_space<vmem>>) attributes {dimension_semantics = [#tpu.dimension_semantics<parallel>], iteration_bounds = array<i64: 2>, scalar_prefetch = 0 : i64, scratch_operands = 1 : i64, tpu.core_type = #tpu.core_type<tc>, window_params = [{transform_indices = @transform_0, window_bounds = array<i64: 1, 18, 18, 128>}, {pipeline_mode = #tpu.pipeline_mode<synchronous>, transform_indices = @transform_1, window_bounds = array<i64: 3, 384, 128>}, {pipeline_mode = #tpu.pipeline_mode<synchronous>, transform_indices = @transform_2, window_bounds = array<i64: 1, 128>}, {pipeline_mode = #tpu.pipeline_mode<synchronous>, transform_indices = @transform_3, window_bounds = array<i64: 1, 128>}, {pipeline_mode = #tpu.pipeline_mode<synchronous>, transform_indices = @transform_4, window_bounds = array<i64: 3, 384, 128>}, {pipeline_mode = #tpu.pipeline_mode<synchronous>, transform_indices = @transform_5, window_bounds = array<i64: 1, 128>}, {pipeline_mode = #tpu.pipeline_mode<synchronous>, transform_indices = @transform_6, window_bounds = array<i64: 1, 128>}, {pipeline_mode = #tpu.pipeline_mode<synchronous>, transform_indices = @transform_7, window_bounds = array<i64: 128, 128>}, {pipeline_mode = #tpu.pipeline_mode<synchronous>, transform_indices = @transform_8, window_bounds = array<i64: 1, 128>}, {pipeline_mode = #tpu.pipeline_mode<synchronous>, transform_indices = @transform_9, window_bounds = array<i64: 1, 128>}, {transform_indices = @transform_10, window_bounds = array<i64: 1, 16, 16, 128>}]} {
    %cst = arith.constant 0.000000e+00 : f32
    %0 = vector.broadcast %cst : f32 to vector<256x128xf32>
    %c0 = arith.constant 0 : index
    %c0_0 = arith.constant 0 : index
    %c0_1 = arith.constant 0 : index
    %c0_2 = arith.constant 0 : index
    %1 = vector.load %arg1[%c0, %c0_0, %c0_1, %c0_2] : memref<1x18x18x128xbf16, #tpu.memory_space<vmem>>, vector<1x16x18x128xbf16>
    %2 = vector.shape_cast %1 : vector<1x16x18x128xbf16> to vector<16x18x128xbf16>
    %3 = vector.extract_strided_slice %2 {offsets = [0, 0, 0], sizes = [16, 16, 128], strides = [1, 1, 1]} : vector<16x18x128xbf16> to vector<16x16x128xbf16>
    %4 = vector.extract_strided_slice %2 {offsets = [0, 1, 0], sizes = [16, 16, 128], strides = [1, 1, 1]} : vector<16x18x128xbf16> to vector<16x16x128xbf16>
    %5 = vector.extract_strided_slice %2 {offsets = [0, 2, 0], sizes = [16, 16, 128], strides = [1, 1, 1]} : vector<16x18x128xbf16> to vector<16x16x128xbf16>
    %6 = tpu.concatenate %3, %4, %5 in 2 : vector<16x16x128xbf16>, vector<16x16x128xbf16>, vector<16x16x128xbf16> -> vector<16x16x384xbf16>
    %7 = vector.shape_cast %6 : vector<16x16x384xbf16> to vector<256x384xbf16>
    %c0_3 = arith.constant 0 : index
    %c0_4 = arith.constant 0 : index
    %c0_5 = arith.constant 0 : index
    %8 = vector.load %arg2[%c0_3, %c0_4, %c0_5] : memref<3x384x128xbf16, #tpu.memory_space<vmem>>, vector<1x384x128xbf16>
    %9 = vector.shape_cast %8 : vector<1x384x128xbf16> to vector<384x128xbf16>
    %cst_6 = arith.constant dense<0.000000e+00> : vector<256x128xf32>
    %10 = tpu.matmul %7, %9, %cst_6 {dimension_numbers = #tpu.dot_dimension_numbers<[1], [0], [0], [1], [0, 0, 1, 1], [], []>} : vector<256x384xbf16>, vector<384x128xbf16>, vector<256x128xf32> -> vector<256x128xf32>
    %11 = arith.addf %0, %10 : vector<256x128xf32>
    %c0_7 = arith.constant 0 : index
    %c1 = arith.constant 1 : index
    %c0_8 = arith.constant 0 : index
    %c0_9 = arith.constant 0 : index
    %12 = vector.load %arg1[%c0_7, %c1, %c0_8, %c0_9] : memref<1x18x18x128xbf16, #tpu.memory_space<vmem>>, vector<1x16x18x128xbf16>
    %13 = vector.shape_cast %12 : vector<1x16x18x128xbf16> to vector<16x18x128xbf16>
    %14 = vector.extract_strided_slice %13 {offsets = [0, 0, 0], sizes = [16, 16, 128], strides = [1, 1, 1]} : vector<16x18x128xbf16> to vector<16x16x128xbf16>
    %15 = vector.extract_strided_slice %13 {offsets = [0, 1, 0], sizes = [16, 16, 128], strides = [1, 1, 1]} : vector<16x18x128xbf16> to vector<16x16x128xbf16>
    %16 = vector.extract_strided_slice %13 {offsets = [0, 2, 0], sizes = [16, 16, 128], strides = [1, 1, 1]} : vector<16x18x128xbf16> to vector<16x16x128xbf16>
    %17 = tpu.concatenate %14, %15, %16 in 2 : vector<16x16x128xbf16>, vector<16x16x128xbf16>, vector<16x16x128xbf16> -> vector<16x16x384xbf16>
    %18 = vector.shape_cast %17 : vector<16x16x384xbf16> to vector<256x384xbf16>
    %c1_10 = arith.constant 1 : index
    %c0_11 = arith.constant 0 : index
    %c0_12 = arith.constant 0 : index
    %19 = vector.load %arg2[%c1_10, %c0_11, %c0_12] : memref<3x384x128xbf16, #tpu.memory_space<vmem>>, vector<1x384x128xbf16>
    %20 = vector.shape_cast %19 : vector<1x384x128xbf16> to vector<384x128xbf16>
    %cst_13 = arith.constant dense<0.000000e+00> : vector<256x128xf32>
    %21 = tpu.matmul %18, %20, %cst_13 {dimension_numbers = #tpu.dot_dimension_numbers<[1], [0], [0], [1], [0, 0, 1, 1], [], []>} : vector<256x384xbf16>, vector<384x128xbf16>, vector<256x128xf32> -> vector<256x128xf32>
    %22 = arith.addf %11, %21 : vector<256x128xf32>
    %c0_14 = arith.constant 0 : index
    %c2 = arith.constant 2 : index
    %c0_15 = arith.constant 0 : index
    %c0_16 = arith.constant 0 : index
    %23 = vector.load %arg1[%c0_14, %c2, %c0_15, %c0_16] : memref<1x18x18x128xbf16, #tpu.memory_space<vmem>>, vector<1x16x18x128xbf16>
    %24 = vector.shape_cast %23 : vector<1x16x18x128xbf16> to vector<16x18x128xbf16>
    %25 = vector.extract_strided_slice %24 {offsets = [0, 0, 0], sizes = [16, 16, 128], strides = [1, 1, 1]} : vector<16x18x128xbf16> to vector<16x16x128xbf16>
    %26 = vector.extract_strided_slice %24 {offsets = [0, 1, 0], sizes = [16, 16, 128], strides = [1, 1, 1]} : vector<16x18x128xbf16> to vector<16x16x128xbf16>
    %27 = vector.extract_strided_slice %24 {offsets = [0, 2, 0], sizes = [16, 16, 128], strides = [1, 1, 1]} : vector<16x18x128xbf16> to vector<16x16x128xbf16>
    %28 = tpu.concatenate %25, %26, %27 in 2 : vector<16x16x128xbf16>, vector<16x16x128xbf16>, vector<16x16x128xbf16> -> vector<16x16x384xbf16>
    %29 = vector.shape_cast %28 : vector<16x16x384xbf16> to vector<256x384xbf16>
    %c2_17 = arith.constant 2 : index
    %c0_18 = arith.constant 0 : index
    %c0_19 = arith.constant 0 : index
    %30 = vector.load %arg2[%c2_17, %c0_18, %c0_19] : memref<3x384x128xbf16, #tpu.memory_space<vmem>>, vector<1x384x128xbf16>
    %31 = vector.shape_cast %30 : vector<1x384x128xbf16> to vector<384x128xbf16>
    %cst_20 = arith.constant dense<0.000000e+00> : vector<256x128xf32>
    %32 = tpu.matmul %29, %31, %cst_20 {dimension_numbers = #tpu.dot_dimension_numbers<[1], [0], [0], [1], [0, 0, 1, 1], [], []>} : vector<256x384xbf16>, vector<384x128xbf16>, vector<256x128xf32> -> vector<256x128xf32>
    %33 = arith.addf %22, %32 : vector<256x128xf32>
    %c0_21 = arith.constant 0 : index
    %c0_22 = arith.constant 0 : index
    %34 = vector.load %arg3[%c0_21, %c0_22] : memref<1x128xf32, #tpu.memory_space<vmem>>, vector<1x128xf32>
    %35 = vector.broadcast %34 : vector<1x128xf32> to vector<256x128xf32>
    %36 = arith.mulf %33, %35 : vector<256x128xf32>
    %c0_23 = arith.constant 0 : index
    %c0_24 = arith.constant 0 : index
    %37 = vector.load %arg4[%c0_23, %c0_24] : memref<1x128xf32, #tpu.memory_space<vmem>>, vector<1x128xf32>
    %38 = vector.broadcast %37 : vector<1x128xf32> to vector<256x128xf32>
    %39 = arith.addf %36, %38 : vector<256x128xf32>
    %cst_25 = arith.constant 0.000000e+00 : f32
    %40 = vector.broadcast %cst_25 : f32 to vector<256x128xf32>
    %41 = arith.maximumf %39, %40 : vector<256x128xf32>
    %cst_26 = arith.constant 0.000000e+00 : bf16
    %42 = vector.broadcast %cst_26 : bf16 to vector<1x18x128xbf16>
    %c0_27 = arith.constant 0 : index
    %c0_28 = arith.constant 0 : index
    %c0_29 = arith.constant 0 : index
    %43 = vector.load %arg12[%c0_27, %c0_28, %c0_29] : memref<18x18x128xbf16, #tpu.memory_space<vmem>>, vector<1x18x128xbf16>
    tpu.vector_store %arg12[%c0_27, %c0_28, %c0_29], %42 {strides = array<i32>} : memref<18x18x128xbf16, #tpu.memory_space<vmem>>, vector<1x18x128xbf16>,
    %c17 = arith.constant 17 : index
    %c0_30 = arith.constant 0 : index
    %c0_31 = arith.constant 0 : index
    %44 = vector.load %arg12[%c17, %c0_30, %c0_31] : memref<18x18x128xbf16, #tpu.memory_space<vmem>>, vector<1x18x128xbf16>
    tpu.vector_store %arg12[%c17, %c0_30, %c0_31], %42 {strides = array<i32>} : memref<18x18x128xbf16, #tpu.memory_space<vmem>>, vector<1x18x128xbf16>,
    %cst_32 = arith.constant 0.000000e+00 : bf16
    %45 = vector.broadcast %cst_32 : bf16 to vector<16x1x128xbf16>
    %c1_33 = arith.constant 1 : index
    %c0_34 = arith.constant 0 : index
    %c0_35 = arith.constant 0 : index
    %46 = vector.load %arg12[%c1_33, %c0_34, %c0_35] : memref<18x18x128xbf16, #tpu.memory_space<vmem>>, vector<16x1x128xbf16>
    tpu.vector_store %arg12[%c1_33, %c0_34, %c0_35], %45 {strides = array<i32>} : memref<18x18x128xbf16, #tpu.memory_space<vmem>>, vector<16x1x128xbf16>,
    %c1_36 = arith.constant 1 : index
    %c17_37 = arith.constant 17 : index
    %c0_38 = arith.constant 0 : index
    %47 = vector.load %arg12[%c1_36, %c17_37, %c0_38] : memref<18x18x128xbf16, #tpu.memory_space<vmem>>, vector<16x1x128xbf16>
    tpu.vector_store %arg12[%c1_36, %c17_37, %c0_38], %45 {strides = array<i32>} : memref<18x18x128xbf16, #tpu.memory_space<vmem>>, vector<16x1x128xbf16>,
    %48 = arith.truncf %41 : vector<256x128xf32> to vector<256x128xbf16>
    %49 = vector.shape_cast %48 : vector<256x128xbf16> to vector<16x16x128xbf16>
    %c1_39 = arith.constant 1 : index
    %c1_40 = arith.constant 1 : index
    %c0_41 = arith.constant 0 : index
    %50 = vector.load %arg12[%c1_39, %c1_40, %c0_41] : memref<18x18x128xbf16, #tpu.memory_space<vmem>>, vector<16x16x128xbf16>
    tpu.vector_store %arg12[%c1_39, %c1_40, %c0_41], %49 {strides = array<i32>} : memref<18x18x128xbf16, #tpu.memory_space<vmem>>, vector<16x16x128xbf16>,
    %cst_42 = arith.constant 0.000000e+00 : f32
    %51 = vector.broadcast %cst_42 : f32 to vector<256x128xf32>
    %c0_43 = arith.constant 0 : index
    %c0_44 = arith.constant 0 : index
    %c0_45 = arith.constant 0 : index
    %52 = vector.load %arg12[%c0_43, %c0_44, %c0_45] : memref<18x18x128xbf16, #tpu.memory_space<vmem>>, vector<16x18x128xbf16>
    %53 = vector.extract_strided_slice %52 {offsets = [0, 0, 0], sizes = [16, 16, 128], strides = [1, 1, 1]} : vector<16x18x128xbf16> to vector<16x16x128xbf16>
    %54 = vector.extract_strided_slice %52 {offsets = [0, 1, 0], sizes = [16, 16, 128], strides = [1, 1, 1]} : vector<16x18x128xbf16> to vector<16x16x128xbf16>
    %55 = vector.extract_strided_slice %52 {offsets = [0, 2, 0], sizes = [16, 16, 128], strides = [1, 1, 1]} : vector<16x18x128xbf16> to vector<16x16x128xbf16>
    %56 = tpu.concatenate %53, %54, %55 in 2 : vector<16x16x128xbf16>, vector<16x16x128xbf16>, vector<16x16x128xbf16> -> vector<16x16x384xbf16>
    %57 = vector.shape_cast %56 : vector<16x16x384xbf16> to vector<256x384xbf16>
    %c0_46 = arith.constant 0 : index
    %c0_47 = arith.constant 0 : index
    %c0_48 = arith.constant 0 : index
    %58 = vector.load %arg5[%c0_46, %c0_47, %c0_48] : memref<3x384x128xbf16, #tpu.memory_space<vmem>>, vector<1x384x128xbf16>
    %59 = vector.shape_cast %58 : vector<1x384x128xbf16> to vector<384x128xbf16>
    %cst_49 = arith.constant dense<0.000000e+00> : vector<256x128xf32>
    %60 = tpu.matmul %57, %59, %cst_49 {dimension_numbers = #tpu.dot_dimension_numbers<[1], [0], [0], [1], [0, 0, 1, 1], [], []>} : vector<256x384xbf16>, vector<384x128xbf16>, vector<256x128xf32> -> vector<256x128xf32>
    %61 = arith.addf %51, %60 : vector<256x128xf32>
    %c1_50 = arith.constant 1 : index
    %c0_51 = arith.constant 0 : index
    %c0_52 = arith.constant 0 : index
    %62 = vector.load %arg12[%c1_50, %c0_51, %c0_52] : memref<18x18x128xbf16, #tpu.memory_space<vmem>>, vector<16x18x128xbf16>
    %63 = vector.extract_strided_slice %62 {offsets = [0, 0, 0], sizes = [16, 16, 128], strides = [1, 1, 1]} : vector<16x18x128xbf16> to vector<16x16x128xbf16>
    %64 = vector.extract_strided_slice %62 {offsets = [0, 1, 0], sizes = [16, 16, 128], strides = [1, 1, 1]} : vector<16x18x128xbf16> to vector<16x16x128xbf16>
    %65 = vector.extract_strided_slice %62 {offsets = [0, 2, 0], sizes = [16, 16, 128], strides = [1, 1, 1]} : vector<16x18x128xbf16> to vector<16x16x128xbf16>
    %66 = tpu.concatenate %63, %64, %65 in 2 : vector<16x16x128xbf16>, vector<16x16x128xbf16>, vector<16x16x128xbf16> -> vector<16x16x384xbf16>
    %67 = vector.shape_cast %66 : vector<16x16x384xbf16> to vector<256x384xbf16>
    %c1_53 = arith.constant 1 : index
    %c0_54 = arith.constant 0 : index
    %c0_55 = arith.constant 0 : index
    %68 = vector.load %arg5[%c1_53, %c0_54, %c0_55] : memref<3x384x128xbf16, #tpu.memory_space<vmem>>, vector<1x384x128xbf16>
    %69 = vector.shape_cast %68 : vector<1x384x128xbf16> to vector<384x128xbf16>
    %cst_56 = arith.constant dense<0.000000e+00> : vector<256x128xf32>
    %70 = tpu.matmul %67, %69, %cst_56 {dimension_numbers = #tpu.dot_dimension_numbers<[1], [0], [0], [1], [0, 0, 1, 1], [], []>} : vector<256x384xbf16>, vector<384x128xbf16>, vector<256x128xf32> -> vector<256x128xf32>
    %71 = arith.addf %61, %70 : vector<256x128xf32>
    %c2_57 = arith.constant 2 : index
    %c0_58 = arith.constant 0 : index
    %c0_59 = arith.constant 0 : index
    %72 = vector.load %arg12[%c2_57, %c0_58, %c0_59] : memref<18x18x128xbf16, #tpu.memory_space<vmem>>, vector<16x18x128xbf16>
    %73 = vector.extract_strided_slice %72 {offsets = [0, 0, 0], sizes = [16, 16, 128], strides = [1, 1, 1]} : vector<16x18x128xbf16> to vector<16x16x128xbf16>
    %74 = vector.extract_strided_slice %72 {offsets = [0, 1, 0], sizes = [16, 16, 128], strides = [1, 1, 1]} : vector<16x18x128xbf16> to vector<16x16x128xbf16>
    %75 = vector.extract_strided_slice %72 {offsets = [0, 2, 0], sizes = [16, 16, 128], strides = [1, 1, 1]} : vector<16x18x128xbf16> to vector<16x16x128xbf16>
    %76 = tpu.concatenate %73, %74, %75 in 2 : vector<16x16x128xbf16>, vector<16x16x128xbf16>, vector<16x16x128xbf16> -> vector<16x16x384xbf16>
    %77 = vector.shape_cast %76 : vector<16x16x384xbf16> to vector<256x384xbf16>
    %c2_60 = arith.constant 2 : index
    %c0_61 = arith.constant 0 : index
    %c0_62 = arith.constant 0 : index
    %78 = vector.load %arg5[%c2_60, %c0_61, %c0_62] : memref<3x384x128xbf16, #tpu.memory_space<vmem>>, vector<1x384x128xbf16>
    %79 = vector.shape_cast %78 : vector<1x384x128xbf16> to vector<384x128xbf16>
    %cst_63 = arith.constant dense<0.000000e+00> : vector<256x128xf32>
    %80 = tpu.matmul %77, %79, %cst_63 {dimension_numbers = #tpu.dot_dimension_numbers<[1], [0], [0], [1], [0, 0, 1, 1], [], []>} : vector<256x384xbf16>, vector<384x128xbf16>, vector<256x128xf32> -> vector<256x128xf32>
    %81 = arith.addf %71, %80 : vector<256x128xf32>
    %c0_64 = arith.constant 0 : index
    %c0_65 = arith.constant 0 : index
    %82 = vector.load %arg6[%c0_64, %c0_65] : memref<1x128xf32, #tpu.memory_space<vmem>>, vector<1x128xf32>
    %83 = vector.broadcast %82 : vector<1x128xf32> to vector<256x128xf32>
    %84 = arith.mulf %81, %83 : vector<256x128xf32>
    %c0_66 = arith.constant 0 : index
    %c0_67 = arith.constant 0 : index
    %85 = vector.load %arg7[%c0_66, %c0_67] : memref<1x128xf32, #tpu.memory_space<vmem>>, vector<1x128xf32>
    %86 = vector.broadcast %85 : vector<1x128xf32> to vector<256x128xf32>
    %87 = arith.addf %84, %86 : vector<256x128xf32>
    %c0_68 = arith.constant 0 : index
    %c1_69 = arith.constant 1 : index
    %c1_70 = arith.constant 1 : index
    %c0_71 = arith.constant 0 : index
    %88 = vector.load %arg1[%c0_68, %c1_69, %c1_70, %c0_71] : memref<1x18x18x128xbf16, #tpu.memory_space<vmem>>, vector<1x16x16x128xbf16>
    %89 = vector.shape_cast %88 : vector<1x16x16x128xbf16> to vector<16x16x128xbf16>
    %90 = vector.shape_cast %89 : vector<16x16x128xbf16> to vector<256x128xbf16>
    %c0_72 = arith.constant 0 : index
    %c0_73 = arith.constant 0 : index
    %91 = vector.load %arg8[%c0_72, %c0_73] : memref<128x128xbf16, #tpu.memory_space<vmem>>, vector<128x128xbf16>
    %cst_74 = arith.constant dense<0.000000e+00> : vector<256x128xf32>
    %92 = tpu.matmul %90, %91, %cst_74 {dimension_numbers = #tpu.dot_dimension_numbers<[1], [0], [0], [1], [0, 0, 1, 1], [], []>} : vector<256x128xbf16>, vector<128x128xbf16>, vector<256x128xf32> -> vector<256x128xf32>
    %c0_75 = arith.constant 0 : index
    %c0_76 = arith.constant 0 : index
    %93 = vector.load %arg9[%c0_75, %c0_76] : memref<1x128xf32, #tpu.memory_space<vmem>>, vector<1x128xf32>
    %94 = vector.broadcast %93 : vector<1x128xf32> to vector<256x128xf32>
    %95 = arith.mulf %92, %94 : vector<256x128xf32>
    %c0_77 = arith.constant 0 : index
    %c0_78 = arith.constant 0 : index
    %96 = vector.load %arg10[%c0_77, %c0_78] : memref<1x128xf32, #tpu.memory_space<vmem>>, vector<1x128xf32>
    %97 = vector.broadcast %96 : vector<1x128xf32> to vector<256x128xf32>
    %98 = arith.addf %95, %97 : vector<256x128xf32>
    %99 = arith.addf %87, %98 : vector<256x128xf32>
    %cst_79 = arith.constant 0.000000e+00 : f32
    %100 = vector.broadcast %cst_79 : f32 to vector<256x128xf32>
    %101 = arith.maximumf %99, %100 : vector<256x128xf32>
    %102 = vector.shape_cast %101 : vector<256x128xf32> to vector<16x16x128xf32>
    %c0_80 = arith.constant 0 : index
    %c0_81 = arith.constant 0 : index
    %c0_82 = arith.constant 0 : index
    %c0_83 = arith.constant 0 : index
    %103 = vector.load %arg11[%c0_80, %c0_81, %c0_82, %c0_83] : memref<1x16x16x128xf32, #tpu.memory_space<vmem>>, vector<1x16x16x128xf32>
    %104 = vector.shape_cast %103 : vector<1x16x16x128xf32> to vector<16x16x128xf32>
    %105 = vector.shape_cast %102 : vector<16x16x128xf32> to vector<1x16x16x128xf32>
    tpu.vector_store %arg11[%c0_80, %c0_81, %c0_82, %c0_83], %105 {strides = array<i32>} : memref<1x16x16x128xf32, #tpu.memory_space<vmem>>, vector<1x16x16x128xf32>,
    return
  }
  func.func @transform_0(%arg0: i32) -> (i32, i32, i32, i32) {
    %c0_i32 = arith.constant 0 : i32
    %c0_i32_0 = arith.constant 0 : i32
    %c0_i32_1 = arith.constant 0 : i32
    %c0_i32_2 = arith.constant 0 : i32
    return %arg0, %c0_i32, %c0_i32_0, %c0_i32_1 : i32, i32, i32, i32
  }
  func.func @transform_1(%arg0: i32) -> (i32, i32, i32) {
    %c0_i32 = arith.constant 0 : i32
    %c0_i32_0 = arith.constant 0 : i32
    %c0_i32_1 = arith.constant 0 : i32
    %c0_i32_2 = arith.constant 0 : i32
    return %c0_i32, %c0_i32_0, %c0_i32_1 : i32, i32, i32
  }
  func.func @transform_2(%arg0: i32) -> (i32, i32) {
    %c0_i32 = arith.constant 0 : i32
    %c0_i32_0 = arith.constant 0 : i32
    %c0_i32_1 = arith.constant 0 : i32
    return %c0_i32, %c0_i32_0 : i32, i32
  }
  func.func @transform_3(%arg0: i32) -> (i32, i32) {
    %c0_i32 = arith.constant 0 : i32
    %c0_i32_0 = arith.constant 0 : i32
    %c0_i32_1 = arith.constant 0 : i32
    return %c0_i32, %c0_i32_0 : i32, i32
  }
  func.func @transform_4(%arg0: i32) -> (i32, i32, i32) {
    %c0_i32 = arith.constant 0 : i32
    %c0_i32_0 = arith.constant 0 : i32
    %c0_i32_1 = arith.constant 0 : i32
    %c0_i32_2 = arith.constant 0 : i32
    return %c0_i32, %c0_i32_0, %c0_i32_1 : i32, i32, i32
  }
  func.func @transform_5(%arg0: i32) -> (i32, i32) {
    %c0_i32 = arith.constant 0 : i32
    %c0_i32_0 = arith.constant 0 : i32
    %c0_i32_1 = arith.constant 0 : i32
    return %c0_i32, %c0_i32_0 : i32, i32
  }
  func.func @transform_6(%arg0: i32) -> (i32, i32) {
    %c0_i32 = arith.constant 0 : i32
    %c0_i32_0 = arith.constant 0 : i32
    %c0_i32_1 = arith.constant 0 : i32
    return %c0_i32, %c0_i32_0 : i32, i32
  }
  func.func @transform_7(%arg0: i32) -> (i32, i32) {
    %c0_i32 = arith.constant 0 : i32
    %c0_i32_0 = arith.constant 0 : i32
    %c0_i32_1 = arith.constant 0 : i32
    return %c0_i32, %c0_i32_0 : i32, i32
  }
  func.func @transform_8(%arg0: i32) -> (i32, i32) {
    %c0_i32 = arith.constant 0 : i32
    %c0_i32_0 = arith.constant 0 : i32
    %c0_i32_1 = arith.constant 0 : i32
    return %c0_i32, %c0_i32_0 : i32, i32
  }
  func.func @transform_9(%arg0: i32) -> (i32, i32) {
    %c0_i32 = arith.constant 0 : i32
    %c0_i32_0 = arith.constant 0 : i32
    %c0_i32_1 = arith.constant 0 : i32
    return %c0_i32, %c0_i32_0 : i32, i32
  }
  func.func @transform_10(%arg0: i32) -> (i32, i32, i32, i32) {
    %c0_i32 = arith.constant 0 : i32
    %c0_i32_0 = arith.constant 0 : i32
    %c0_i32_1 = arith.constant 0 : i32
    %c0_i32_2 = arith.constant 0 : i32
    return %arg0, %c0_i32, %c0_i32_0, %c0_i32_1 : i32, i32, i32, i32
  }
}

</mosaic_0001>

<llo_original>
// kernel: tpu_custom_call.1
$region0: #{tpu_custom_call.1}
  #allocation0 [shape = 'u32[]', space=smem, size = 0x4, offset = 0x4, fixed_abs, tag = 'smem constant byte address 0x4 - core index']
  #allocation1 [shape = 'u32[72,128]{1,0:T(1,128)}', space=vmem, size = 0x9000, scoped, tag = 'internal scratch']
  #allocation2 [shape = 'bf16[18,18,128]{2,1,0:T(8,128)(2,1)}', space=vmem, size = 0x1b000, scoped, tag = 'scratch operand']
  %s0 = inlined_call_operand.vmem [shape: bf16[2,18,18,128], index: 0, kind: input, shape index: {}]
  %s1 = inlined_call_operand.vmem [shape: bf16[3,384,128], index: 1, kind: input, shape index: {}]
  %s2 = inlined_call_operand.vmem [shape: f32[1,128], index: 2, kind: input, shape index: {}]
  %s3 = inlined_call_operand.vmem [shape: f32[1,128], index: 3, kind: input, shape index: {}]
  %s4 = inlined_call_operand.hbm [shape: bf16[3,384,128], index: 4, kind: input, shape index: {}]
  %s5 = inlined_call_operand.vmem [shape: f32[1,128], index: 5, kind: input, shape index: {}]
  %s6 = inlined_call_operand.vmem [shape: f32[1,128], index: 6, kind: input, shape index: {}]
  %s7 = inlined_call_operand.vmem [shape: bf16[128,128], index: 7, kind: input, shape index: {}]
  %s8 = inlined_call_operand.vmem [shape: f32[1,128], index: 8, kind: input, shape index: {}]
  %s9 = inlined_call_operand.vmem [shape: f32[1,128], index: 9, kind: input, shape index: {}]
  %s10 = inlined_call_operand.hbm [shape: f32[2,16,16,128], index: 10, kind: output, shape index: {}]
  %s11 = sld [smem:[#allocation0]]
  $region77: #{tpu_custom_call.1} parent=0
    _
  %s13 = ssub.s32 1, %s11
  %s14 = scalar_select 0, %s13, %s11
  $region1: #{tpu_custom_call.1} parent=0
    #allocation3 [shape = 'u8[294912]{0}', space=vmem, size = 0x48000, scoped, tag = 'input window, operand 4, single buffered']
    #allocation4 [shape = 's32[2]{0}', space=sflag, size = 0x8, scoped, tag = 'scoped memory for tpu_custom_call.1']
    #allocation5 [shape = 's32[2]{0}', space=sflag, size = 0x8, scoped, tag = 'scoped memory for tpu_custom_call.1']
    #allocation6 [shape = 'u8[262144]{0}', space=vmem, size = 0x40000, scoped, tag = 'output window, operand 0']
    %15 = vsyncpa [#allocation4], 0
    %16 = vsyncpa [#allocation5], 0
    %s17 = scalar_lea.sflag [#allocation5], 1
    %18 = vsyncpa %s17, 0
    loop: start=0, step=1, limit=4
    $region2: #{tpu_custom_call.1} parent=1 // loop_pre_header
      _
    $region3: #{tpu_custom_call.1} parent=1 // loop_header
      %s20 = sphi 0, %s24
      %p21 = scmp.ge.s32.totalorder %s20, 4
      %s30 = sphi 0, %s32
      %s33 = sphi 0, %s30
      %s34 = sphi 0, %s33
      %s50 = sphi 0, %s34
      %s54 = sphi 0, %s54
      %s56 = sphi 0, %s54
      %s57 = sphi 0, %s56
      %s71 = sphi 0, %s57
      %s75 = sphi 0, %s75
      %s77 = sphi 0, %s75
      %s78 = sphi 0, %s77
      %s92 = sphi 0, %s78
      %s96 = sphi 0, %s96
      %s98 = sphi 0, %s96
      %s99 = sphi 0, %s98
      %s113 = sphi 0, %s99
      %s117 = sphi 0, %s117
      %s119 = sphi 0, %s117
      %s120 = sphi 0, %s119
      %s134 = sphi 0, %s120
      %s138 = sphi 0, %s138
      %s140 = sphi 0, %s138
      %s141 = sphi 0, %s140
      %s155 = sphi 0, %s141
      %s159 = sphi 0, %s159
      %s161 = sphi 0, %s159
      %s162 = sphi 0, %s161
      %s176 = sphi 0, %s162
      %s180 = sphi 0, %s180
      %s182 = sphi 0, %s180
      %s183 = sphi 0, %s182
      %s197 = sphi 0, %s183
      %s201 = sphi 0, %s201
      %s203 = sphi 0, %s201
      %s204 = sphi 0, %s203
      %s218 = sphi 0, %s204
      %s222 = sphi 0, %s222
      %s224 = sphi 0, %s222
      %s225 = sphi 0, %s224
      %s239 = sphi 0, %s225
      %s245 = sphi 0, %s247
      %s248 = sphi 0, %s245
      %s249 = sphi 0, %s248
      %s265 = sphi 0, %s249
    $region4: #{tpu_custom_call.1} parent=1 // loop_header_branch
      %23 = sbr.rel (%p21) target = $region8
    $region5: #{tpu_custom_call.1} parent=1 // loop_body
      %s25 = ssub.s32 %s20, 1
      %s26 = ssub.s32 %s20, 2
      %s27 = sadd.s32 %s20, 1
      %s28 = ssub.s32 %s20, %s27
      %p29 = scmp.eq.s32.totalorder %s28, 0
      %s31 = sadd.s32 %s30, 1
      %s32 = scalar_select %p29, %s30, %s31
      %p35 = pneg %p29
      %p36 = scmp.eq.s32.totalorder %s20, 1
      %p37 = por %p35, %p36
      %p38 = scmp.ne.s32.totalorder %s30, %s33
      %p39 = scmp.eq.s32.totalorder %s20, 0
      %p40 = por %p38, %p39
      %p41 = scmp.ne.s32.totalorder %s30, %s33
      %p42 = scmp.eq.s32.totalorder %s25, 1
      %p43 = por %p41, %p42
      %p44 = scmp.ne.s32.totalorder %s33, %s34
      %p45 = scmp.eq.s32.totalorder %s25, 0
      %p46 = por %p44, %p45
      %p47 = scmp.ne.s32.totalorder %s33, %s34
      %p48 = scmp.eq.s32.totalorder %s26, 1
      %p49 = por %p47, %p48
      %p51 = scmp.ne.s32.totalorder %s34, %s50
      %p52 = scmp.eq.s32.totalorder %s26, 0
      %p53 = por %p51, %p52
      %s55 = sadd.s32 %s54, 1
      %p58 = scmp.eq.s32.totalorder %s20, 1
      %p59 = scmp.ne.s32.totalorder %s54, %s56
      %p60 = scmp.eq.s32.totalorder %s20, 0
      %p61 = por %p59, %p60
      %p62 = scmp.ne.s32.totalorder %s54, %s56
      %p63 = scmp.eq.s32.totalorder %s25, 1
      %p64 = por %p62, %p63
      %p65 = scmp.ne.s32.totalorder %s56, %s57
      %p66 = scmp.eq.s32.totalorder %s25, 0
      %p67 = por %p65, %p66
      %p68 = scmp.ne.s32.totalorder %s56, %s57
      %p69 = scmp.eq.s32.totalorder %s26, 1
      %p70 = por %p68, %p69
      %p72 = scmp.ne.s32.totalorder %s57, %s71
      %p73 = scmp.eq.s32.totalorder %s26, 0
      %p74 = por %p72, %p73
      %s76 = sadd.s32 %s75, 1
      %p79 = scmp.eq.s32.totalorder %s20, 1
      %p80 = scmp.ne.s32.totalorder %s75, %s77
      %p81 = scmp.eq.s32.totalorder %s20, 0
      %p82 = por %p80, %p81
      %p83 = scmp.ne.s32.totalorder %s75, %s77
      %p84 = scmp.eq.s32.totalorder %s25, 1
      %p85 = por %p83, %p84
      %p86 = scmp.ne.s32.totalorder %s77, %s78
      %p87 = scmp.eq.s32.totalorder %s25, 0
      %p88 = por %p86, %p87
      %p89 = scmp.ne.s32.totalorder %s77, %s78
      %p90 = scmp.eq.s32.totalorder %s26, 1
      %p91 = por %p89, %p90
      %p93 = scmp.ne.s32.totalorder %s78, %s92
      %p94 = scmp.eq.s32.totalorder %s26, 0
      %p95 = por %p93, %p94
      %s97 = sadd.s32 %s96, 1
      %p100 = scmp.eq.s32.totalorder %s20, 1
      %p101 = scmp.ne.s32.totalorder %s96, %s98
      %p102 = scmp.eq.s32.totalorder %s20, 0
      %p103 = por %p101, %p102
      %p104 = scmp.ne.s32.totalorder %s96, %s98
      %p105 = scmp.eq.s32.totalorder %s25, 1
      %p106 = por %p104, %p105
      %p107 = scmp.ne.s32.totalorder %s98, %s99
      %p108 = scmp.eq.s32.totalorder %s25, 0
      %p109 = por %p107, %p108
      %p110 = scmp.ne.s32.totalorder %s98, %s99
      %p111 = scmp.eq.s32.totalorder %s26, 1
      %p112 = por %p110, %p111
      %p114 = scmp.ne.s32.totalorder %s99, %s113
      %p115 = scmp.eq.s32.totalorder %s26, 0
      %p116 = por %p114, %p115
      %s118 = sadd.s32 %s117, 1
      %p121 = scmp.eq.s32.totalorder %s20, 1
      %p122 = scmp.ne.s32.totalorder %s117, %s119
      %p123 = scmp.eq.s32.totalorder %s20, 0
      %p124 = por %p122, %p123
      %p125 = scmp.ne.s32.totalorder %s117, %s119
      %p126 = scmp.eq.s32.totalorder %s25, 1
      %p127 = por %p125, %p126
      %p128 = scmp.ne.s32.totalorder %s119, %s120
      %p129 = scmp.eq.s32.totalorder %s25, 0
      %p130 = por %p128, %p129
      %p131 = scmp.ne.s32.totalorder %s119, %s120
      %p132 = scmp.eq.s32.totalorder %s26, 1
      %p133 = por %p131, %p132
      %p135 = scmp.ne.s32.totalorder %s120, %s134
      %p136 = scmp.eq.s32.totalorder %s26, 0
      %p137 = por %p135, %p136
      %s139 = sadd.s32 %s138, 1
      %p142 = scmp.eq.s32.totalorder %s20, 1
      %p143 = scmp.ne.s32.totalorder %s138, %s140
      %p144 = scmp.eq.s32.totalorder %s20, 0
      %p145 = por %p143, %p144
      %p146 = scmp.ne.s32.totalorder %s138, %s140
      %p147 = scmp.eq.s32.totalorder %s25, 1
      %p148 = por %p146, %p147
      %p149 = scmp.ne.s32.totalorder %s140, %s141
      %p150 = scmp.eq.s32.totalorder %s25, 0
      %p151 = por %p149, %p150
      %p152 = scmp.ne.s32.totalorder %s140, %s141
      %p153 = scmp.eq.s32.totalorder %s26, 1
      %p154 = por %p152, %p153
      %p156 = scmp.ne.s32.totalorder %s141, %s155
      %p157 = scmp.eq.s32.totalorder %s26, 0
      %p158 = por %p156, %p157
      %s160 = sadd.s32 %s159, 1
      %p163 = scmp.eq.s32.totalorder %s20, 1
      %p164 = scmp.ne.s32.totalorder %s159, %s161
      %p165 = scmp.eq.s32.totalorder %s20, 0
      %p166 = por %p164, %p165
      %p167 = scmp.ne.s32.totalorder %s159, %s161
      %p168 = scmp.eq.s32.totalorder %s25, 1
      %p169 = por %p167, %p168
      %p170 = scmp.ne.s32.totalorder %s161, %s162
      %p171 = scmp.eq.s32.totalorder %s25, 0
      %p172 = por %p170, %p171
      %p173 = scmp.ne.s32.totalorder %s161, %s162
      %p174 = scmp.eq.s32.totalorder %s26, 1
      %p175 = por %p173, %p174
      %p177 = scmp.ne.s32.totalorder %s162, %s176
      %p178 = scmp.eq.s32.totalorder %s26, 0
      %p179 = por %p177, %p178
      %s181 = sadd.s32 %s180, 1
      %p184 = scmp.eq.s32.totalorder %s20, 1
      %p185 = scmp.ne.s32.totalorder %s180, %s182
      %p186 = scmp.eq.s32.totalorder %s20, 0
      %p187 = por %p185, %p186
      %p188 = scmp.ne.s32.totalorder %s180, %s182
      %p189 = scmp.eq.s32.totalorder %s25, 1
      %p190 = por %p188, %p189
      %p191 = scmp.ne.s32.totalorder %s182, %s183
      %p192 = scmp.eq.s32.totalorder %s25, 0
      %p193 = por %p191, %p192
      %p194 = scmp.ne.s32.totalorder %s182, %s183
      %p195 = scmp.eq.s32.totalorder %s26, 1
      %p196 = por %p194, %p195
      %p198 = scmp.ne.s32.totalorder %s183, %s197
      %p199 = scmp.eq.s32.totalorder %s26, 0
      %p200 = por %p198, %p199
      %s202 = sadd.s32 %s201, 1
      %p205 = scmp.eq.s32.totalorder %s20, 1
      %p206 = scmp.ne.s32.totalorder %s201, %s203
      %p207 = scmp.eq.s32.totalorder %s20, 0
      %p208 = por %p206, %p207
      %p209 = scmp.ne.s32.totalorder %s201, %s203
      %p210 = scmp.eq.s32.totalorder %s25, 1
      %p211 = por %p209, %p210
      %p212 = scmp.ne.s32.totalorder %s203, %s204
      %p213 = scmp.eq.s32.totalorder %s25, 0
      %p214 = por %p212, %p213
      %p215 = scmp.ne.s32.totalorder %s203, %s204
      %p216 = scmp.eq.s32.totalorder %s26, 1
      %p217 = por %p215, %p216
      %p219 = scmp.ne.s32.totalorder %s204, %s218
      %p220 = scmp.eq.s32.totalorder %s26, 0
      %p221 = por %p219, %p220
      %s223 = sadd.s32 %s222, 1
      %p226 = scmp.eq.s32.totalorder %s20, 1
      %p227 = scmp.ne.s32.totalorder %s222, %s224
      %p228 = scmp.eq.s32.totalorder %s20, 0
      %p229 = por %p227, %p228
      %p230 = scmp.ne.s32.totalorder %s222, %s224
      %p231 = scmp.eq.s32.totalorder %s25, 1
      %p232 = por %p230, %p231
      %p233 = scmp.ne.s32.totalorder %s224, %s225
      %p234 = scmp.eq.s32.totalorder %s25, 0
      %p235 = por %p233, %p234
      %p236 = scmp.ne.s32.totalorder %s224, %s225
      %p237 = scmp.eq.s32.totalorder %s26, 1
      %p238 = por %p236, %p237
      %p240 = scmp.ne.s32.totalorder %s225, %s239
      %p241 = scmp.eq.s32.totalorder %s26, 0
      %p242 = por %p240, %p241
      %s243 = ssub.s32 %s20, %s27
      %p244 = scmp.eq.s32.totalorder %s243, 0
      %s246 = sadd.s32 %s245, 1
      %s247 = scalar_select %p244, %s245, %s246
      %p250 = pneg %p244
      %p251 = scmp.eq.s32.totalorder %s20, 1
      %p252 = por %p250, %p251
      %p253 = scmp.ne.s32.totalorder %s245, %s248
      %p254 = scmp.eq.s32.totalorder %s20, 0
      %p255 = por %p253, %p254
      %p256 = scmp.ne.s32.totalorder %s245, %s248
      %p257 = scmp.eq.s32.totalorder %s25, 1
      %p258 = por %p256, %p257
      %p259 = scmp.ne.s32.totalorder %s248, %s249
      %p260 = scmp.eq.s32.totalorder %s25, 0
      %p261 = por %p259, %p260
      %p262 = scmp.ne.s32.totalorder %s248, %s249
      %p263 = scmp.eq.s32.totalorder %s26, 1
      %p264 = por %p262, %p263
      %p266 = scmp.ne.s32.totalorder %s249, %s265
      %p267 = scmp.eq.s32.totalorder %s26, 0
      %p268 = por %p266, %p267
      %p269 = scmp.le.s32.totalorder 1, %s20
      %p270 = scmp.lt.s32.totalorder %s20, 3
      %p271 = pnand %p269, %p270
      %p272 = pneg %p271
      // Predicated region
      $region9: #{tpu_custom_call.1} parent=5 // pred_check
        _
      $region10: #{tpu_custom_call.1} parent=5 // pred_check_branch
        %274 = sbr.rel (%p271) target = $region12
      $region11: #{tpu_custom_call.1} parent=5 // pred_region
        %s275 = ssub.s32 %s20, 1
        // Predicated region
        $region13: #{tpu_custom_call.1} parent=11 // pred_check
          %p276 = pneg %p67
        $region14: #{tpu_custom_call.1} parent=11 // pred_check_branch
          %278 = sbr.rel (%p276) target = $region16
        $region15: #{tpu_custom_call.1} parent=11 // pred_region
          _
        $region16: #{tpu_custom_call.1} parent=11 // pred_fallthru
          _
        // Predicated region
        $region17: #{tpu_custom_call.1} parent=11 // pred_check
          %p279 = pneg %p88
        $region18: #{tpu_custom_call.1} parent=11 // pred_check_branch
          %281 = sbr.rel (%p279) target = $region20
        $region19: #{tpu_custom_call.1} parent=11 // pred_region
          _
        $region20: #{tpu_custom_call.1} parent=11 // pred_fallthru
          _
        // Predicated region
        $region21: #{tpu_custom_call.1} parent=11 // pred_check
          %p282 = pneg %p109
        $region22: #{tpu_custom_call.1} parent=11 // pred_check_branch
          %284 = sbr.rel (%p282) target = $region24
        $region23: #{tpu_custom_call.1} parent=11 // pred_region
          _
        $region24: #{tpu_custom_call.1} parent=11 // pred_fallthru
          _
        // Predicated region
        $region25: #{tpu_custom_call.1} parent=11 // pred_check
          %p285 = pneg %p130
        $region26: #{tpu_custom_call.1} parent=11 // pred_check_branch
          %287 = sbr.rel (%p285) target = $region28
        $region27: #{tpu_custom_call.1} parent=11 // pred_region
          %289 = vsyncadd [#allocation4], 0
          %s290 = sshll.u32 %s4, 4
          %s291 = int_to_ptr.hbm [resolvable:$true] %s290
          %s292 = sshll.u32 [#allocation3], 4
          %s293 = int_to_ptr.vmem [resolvable:$true] %s292
          %298 = dma.hbm_to_vmem [thread:$0]  %s291, 9216, %s293, [#allocation4], 64, 64, 4
        $region28: #{tpu_custom_call.1} parent=11 // pred_fallthru
          _
        // Predicated region
        $region29: #{tpu_custom_call.1} parent=11 // pred_check
          %p299 = pneg %p151
        $region30: #{tpu_custom_call.1} parent=11 // pred_check_branch
          %301 = sbr.rel (%p299) target = $region32
        $region31: #{tpu_custom_call.1} parent=11 // pred_region
          _
        $region32: #{tpu_custom_call.1} parent=11 // pred_fallthru
          _
        // Predicated region
        $region33: #{tpu_custom_call.1} parent=11 // pred_check
          %p302 = pneg %p172
        $region34: #{tpu_custom_call.1} parent=11 // pred_check_branch
          %304 = sbr.rel (%p302) target = $region36
        $region35: #{tpu_custom_call.1} parent=11 // pred_region
          _
        $region36: #{tpu_custom_call.1} parent=11 // pred_fallthru
          _
        // Predicated region
        $region37: #{tpu_custom_call.1} parent=11 // pred_check
          %p305 = pneg %p193
        $region38: #{tpu_custom_call.1} parent=11 // pred_check_branch
          %307 = sbr.rel (%p305) target = $region40
        $region39: #{tpu_custom_call.1} parent=11 // pred_region
          _
        $region40: #{tpu_custom_call.1} parent=11 // pred_fallthru
          _
        // Predicated region
        $region41: #{tpu_custom_call.1} parent=11 // pred_check
          %p308 = pneg %p214
        $region42: #{tpu_custom_call.1} parent=11 // pred_check_branch
          %310 = sbr.rel (%p308) target = $region44
        $region43: #{tpu_custom_call.1} parent=11 // pred_region
          _
        $region44: #{tpu_custom_call.1} parent=11 // pred_fallthru
          _
        // Predicated region
        $region45: #{tpu_custom_call.1} parent=11 // pred_check
          %p311 = pneg %p235
        $region46: #{tpu_custom_call.1} parent=11 // pred_check_branch
          %313 = sbr.rel (%p311) target = $region48
        $region47: #{tpu_custom_call.1} parent=11 // pred_region
          _
        $region48: #{tpu_custom_call.1} parent=11 // pred_fallthru
          _
      $region12: #{tpu_custom_call.1} parent=5 // pred_fallthru
        _
      %p314 = scmp.lt.s32.totalorder %s20, 2
      // Predicated region
      $region49: #{tpu_custom_call.1} parent=5 // pred_check
        %p315 = pneg %p314
      $region50: #{tpu_custom_call.1} parent=5 // pred_check_branch
        %317 = sbr.rel (%p315) target = $region52
      $region51: #{tpu_custom_call.1} parent=5 // pred_region
        // Predicated region
        $region53: #{tpu_custom_call.1} parent=51 // pred_check
          %p318 = pneg %p40
        $region54: #{tpu_custom_call.1} parent=51 // pred_check_branch
          %320 = sbr.rel (%p318) target = $region56
        $region55: #{tpu_custom_call.1} parent=51 // pred_region
          %p321 = scmp.lt.s32.totalorder %s20, 1
          %s322 = scalar_select %p321, %s20, 1
          %s323 = smul.addr %s322, 54
          %s324 = smul.addr %s323, 4
          %s325 = scalar_lea.vmem %s0, %s324
        $region56: #{tpu_custom_call.1} parent=51 // pred_fallthru
          _
      $region52: #{tpu_custom_call.1} parent=5 // pred_fallthru
        _
      %p326 = scmp.le.s32.totalorder 1, %s20
      %p327 = scmp.lt.s32.totalorder %s20, 3
      %p328 = pnand %p326, %p327
      %p329 = pneg %p328
      // Predicated region
      $region57: #{tpu_custom_call.1} parent=5 // pred_check
        _
      $region58: #{tpu_custom_call.1} parent=5 // pred_check_branch
        %331 = sbr.rel (%p328) target = $region60
      $region59: #{tpu_custom_call.1} parent=5 // pred_region
        %s332 = ssub.s32 %s20, 1
        // Predicated region
        $region61: #{tpu_custom_call.1} parent=59 // pred_check
          %p333 = pneg %p130
        $region62: #{tpu_custom_call.1} parent=59 // pred_check_branch
          %335 = sbr.rel (%p333) target = $region64
        $region63: #{tpu_custom_call.1} parent=59 // pred_region
          %337 = dma.done [#allocation4], 9216
        $region64: #{tpu_custom_call.1} parent=59 // pred_fallthru
          _
        %p338 = scmp.lt.s32.totalorder %s25, 1
        %s339 = scalar_select %p338, %s25, 1
        %s340 = smul.addr %s339, 54
        %s341 = smul.addr %s340, 4
        %s342 = scalar_lea.vmem %s0, %s341
        %p343 = pneg %p46
        %p344 = pneg %p43
        %p345 = pneg %p67
        %p346 = pneg %p64
        %p347 = pneg %p88
        %p348 = pneg %p85
        %p349 = pneg %p109
        %p350 = pneg %p106
        %p351 = pneg %p130
        %p352 = pneg %p127
        %p353 = pneg %p151
        %p354 = pneg %p148
        %p355 = pneg %p172
        %p356 = pneg %p169
        %p357 = pneg %p193
        %p358 = pneg %p190
        %p359 = pneg %p214
        %p360 = pneg %p211
        %p361 = pneg %p235
        %p362 = pneg %p232
        %p363 = pneg %p261
        %p364 = pneg %p258
        %s365 = sand.u32 %s248, 1
        %s366 = scalar_lea.sflag [#allocation5], %s365
        %s367 = sand.u32 %s248, 1
        %s368 = smul.addr %s367, 256
        %s369 = scalar_lea.vmem [#allocation6], %s368
        %p370 = scmp.lt.s32.totalorder %s25, 1
        %s371 = scalar_select %p370, %s25, 1
        %s372 = smul.addr %s371, 54
        %s373 = smul.addr %s372, 4
        %s374 = scalar_lea.vmem %s0, %s373
        %v376 = vld [vmem:[%s374] sm:$0xf]
        %v377 = vld [vmem:[%s374 + $0x4] sm:$0xf]
        %v378 = vld [vmem:[%s374 + $0x8] sm:$0x1]
        %v379 = vld [vmem:[%s374 + $0xc] sm:$0xf]
        %v380 = vld [vmem:[%s374 + $0x10] sm:$0xf]
        %v381 = vld [vmem:[%s374 + $0x14] sm:$0x1]
        %v382 = vld [vmem:[%s374 + $0x18] sm:$0xf]
        %v383 = vld [vmem:[%s374 + $0x1c] sm:$0xf]
        %v384 = vld [vmem:[%s374 + $0x20] sm:$0x1]
        %v385 = vld [vmem:[%s374 + $0x24] sm:$0xf]
        %v386 = vld [vmem:[%s374 + $0x28] sm:$0xf]
        %v387 = vld [vmem:[%s374 + $0x2c] sm:$0x1]
        %v388 = vld [vmem:[%s374 + $0x30] sm:$0xf]
        %v389 = vld [vmem:[%s374 + $0x34] sm:$0xf]
        %v390 = vld [vmem:[%s374 + $0x38] sm:$0x1]
        %v391 = vld [vmem:[%s374 + $0x3c] sm:$0xf]
        %v392 = vld [vmem:[%s374 + $0x40] sm:$0xf]
        %v393 = vld [vmem:[%s374 + $0x44] sm:$0x1]
        %v394 = vld [vmem:[%s374 + $0x48] sm:$0xf]
        %v395 = vld [vmem:[%s374 + $0x4c] sm:$0xf]
        %v396 = vld [vmem:[%s374 + $0x50] sm:$0x1]
        %v397 = vld [vmem:[%s374 + $0x54] sm:$0xf]
        %v398 = vld [vmem:[%s374 + $0x58] sm:$0xf]
        %v399 = vld [vmem:[%s374 + $0x5c] sm:$0x1]
        %v400 = vld [vmem:[%s374 + $0x60] sm:$0xf]
        %v401 = vld [vmem:[%s374 + $0x64] sm:$0xf]
        %v402 = vld [vmem:[%s374 + $0x68] sm:$0x1]
        %v403 = vld [vmem:[%s374 + $0x6c] sm:$0xf]
        %v404 = vld [vmem:[%s374 + $0x70] sm:$0xf]
        %v405 = vld [vmem:[%s374 + $0x74] sm:$0x1]
        %v406 = vld [vmem:[%s374 + $0x78] sm:$0xf]
        %v407 = vld [vmem:[%s374 + $0x7c] sm:$0xf]
        %v408 = vld [vmem:[%s374 + $0x80] sm:$0x1]
        %v409 = vld [vmem:[%s374 + $0x84] sm:$0xf]
        %v410 = vld [vmem:[%s374 + $0x88] sm:$0xf]
        %v411 = vld [vmem:[%s374 + $0x8c] sm:$0x1]
        %v412 = vld [vmem:[%s374 + $0x90] sm:$0xf]
        %v413 = vld [vmem:[%s374 + $0x94] sm:$0xf]
        %v414 = vld [vmem:[%s374 + $0x98] sm:$0x1]
        %v415 = vld [vmem:[%s374 + $0x9c] sm:$0xf]
        %v416 = vld [vmem:[%s374 + $0xa0] sm:$0xf]
        %v417 = vld [vmem:[%s374 + $0xa4] sm:$0x1]
        %v418 = vld [vmem:[%s374 + $0xa8] sm:$0xf]
        %v419 = vld [vmem:[%s374 + $0xac] sm:$0xf]
        %v420 = vld [vmem:[%s374 + $0xb0] sm:$0x1]
        %v421 = vld [vmem:[%s374 + $0xb4] sm:$0xf]
        %v422 = vld [vmem:[%s374 + $0xb8] sm:$0xf]
        %v423 = vld [vmem:[%s374 + $0xbc] sm:$0x1]
        %v456 = vunpack.c.l.b16 %v376
        %v457 = vunpack.c.l.b16 %v377
        %v458 = vunpack.c.l.b16 %v379
        %v459 = vunpack.c.l.b16 %v380
        %v460 = vunpack.c.l.b16 %v382
        %v461 = vunpack.c.l.b16 %v383
        %v462 = vunpack.c.l.b16 %v385
        %v463 = vunpack.c.l.b16 %v386
        %v464 = vunpack.c.l.b16 %v388
        %v465 = vunpack.c.l.b16 %v389
        %v466 = vunpack.c.l.b16 %v391
        %v467 = vunpack.c.l.b16 %v392
        %v468 = vunpack.c.l.b16 %v394
        %v469 = vunpack.c.l.b16 %v395
        %v470 = vunpack.c.l.b16 %v397
        %v471 = vunpack.c.l.b16 %v398
        %v472 = vunpack.c.l.b16 %v400
        %v473 = vunpack.c.l.b16 %v401
        %v474 = vunpack.c.l.b16 %v403
        %v475 = vunpack.c.l.b16 %v404
        %v476 = vunpack.c.l.b16 %v406
        %v477 = vunpack.c.l.b16 %v407
        %v478 = vunpack.c.l.b16 %v409
        %v479 = vunpack.c.l.b16 %v410
        %v480 = vunpack.c.l.b16 %v412
        %v481 = vunpack.c.l.b16 %v413
        %v482 = vunpack.c.l.b16 %v415
        %v483 = vunpack.c.l.b16 %v416
        %v484 = vunpack.c.l.b16 %v418
        %v485 = vunpack.c.l.b16 %v419
        %v486 = vunpack.c.l.b16 %v421
        %v487 = vunpack.c.l.b16 %v422
        %v488 = vpack.c.b16 %v457, %v456
        %v489 = vpack.c.b16 %v459, %v458
        %v490 = vpack.c.b16 %v461, %v460
        %v491 = vpack.c.b16 %v463, %v462
        %v492 = vpack.c.b16 %v465, %v464
        %v493 = vpack.c.b16 %v467, %v466
        %v494 = vpack.c.b16 %v469, %v468
        %v495 = vpack.c.b16 %v471, %v470
        %v496 = vpack.c.b16 %v473, %v472
        %v497 = vpack.c.b16 %v475, %v474
        %v498 = vpack.c.b16 %v477, %v476
        %v499 = vpack.c.b16 %v479, %v478
        %v500 = vpack.c.b16 %v481, %v480
        %v501 = vpack.c.b16 %v483, %v482
        %v502 = vpack.c.b16 %v485, %v484
        %v503 = vpack.c.b16 %v487, %v486
        %v536 = vunpack.c.l.b16 %v378
        %v537 = vunpack.c.l.b16 %v381
        %v538 = vunpack.c.l.b16 %v384
        %v539 = vunpack.c.l.b16 %v387
        %v540 = vunpack.c.l.b16 %v390
        %v541 = vunpack.c.l.b16 %v393
        %v542 = vunpack.c.l.b16 %v396
        %v543 = vunpack.c.l.b16 %v399
        %v544 = vunpack.c.l.b16 %v402
        %v545 = vunpack.c.l.b16 %v405
        %v546 = vunpack.c.l.b16 %v408
        %v547 = vunpack.c.l.b16 %v411
        %v548 = vunpack.c.l.b16 %v414
        %v549 = vunpack.c.l.b16 %v417
        %v550 = vunpack.c.l.b16 %v420
        %v551 = vunpack.c.l.b16 %v423
        %v552 = vpack.c.b16 %v536, %v536
        %v553 = vpack.c.b16 %v537, %v537
        %v554 = vpack.c.b16 %v538, %v538
        %v555 = vpack.c.b16 %v539, %v539
        %v556 = vpack.c.b16 %v540, %v540
        %v557 = vpack.c.b16 %v541, %v541
        %v558 = vpack.c.b16 %v542, %v542
        %v559 = vpack.c.b16 %v543, %v543
        %v560 = vpack.c.b16 %v544, %v544
        %v561 = vpack.c.b16 %v545, %v545
        %v562 = vpack.c.b16 %v546, %v546
        %v563 = vpack.c.b16 %v547, %v547
        %v564 = vpack.c.b16 %v548, %v548
        %v565 = vpack.c.b16 %v549, %v549
        %v566 = vpack.c.b16 %v550, %v550
        %v567 = vpack.c.b16 %v551, %v551
        %vm568 = vsmask.f32 7424
        %v570 = vshrl.u32 %v488, 16
        %v572 = vshll.u32 %v488, 16
        %v574 = vrot.slane %v572, 1
        %v575 = vor.u32 %v570, %v574
        %v577 = vshll.u32 %v552, 16
        %v579 = vrot.slane %v577, 1
        %v580 = vsel %vm568, %v575, %v579
        %v582 = vshrl.u32 %v489, 16
        %v584 = vshll.u32 %v489, 16
        %v586 = vrot.slane %v584, 1
        %v587 = vor.u32 %v582, %v586
        %v589 = vshll.u32 %v553, 16
        %v591 = vrot.slane %v589, 1
        %v592 = vsel %vm568, %v587, %v591
        %v594 = vshrl.u32 %v490, 16
        %v596 = vshll.u32 %v490, 16
        %v598 = vrot.slane %v596, 1
        %v599 = vor.u32 %v594, %v598
        %v601 = vshll.u32 %v554, 16
        %v603 = vrot.slane %v601, 1
        %v604 = vsel %vm568, %v599, %v603
        %v606 = vshrl.u32 %v491, 16
        %v608 = vshll.u32 %v491, 16
        %v610 = vrot.slane %v608, 1
        %v611 = vor.u32 %v606, %v610
        %v613 = vshll.u32 %v555, 16
        %v615 = vrot.slane %v613, 1
        %v616 = vsel %vm568, %v611, %v615
        %v618 = vshrl.u32 %v492, 16
        %v620 = vshll.u32 %v492, 16
        %v622 = vrot.slane %v620, 1
        %v623 = vor.u32 %v618, %v622
        %v625 = vshll.u32 %v556, 16
        %v627 = vrot.slane %v625, 1
        %v628 = vsel %vm568, %v623, %v627
        %v630 = vshrl.u32 %v493, 16
        %v632 = vshll.u32 %v493, 16
        %v634 = vrot.slane %v632, 1
        %v635 = vor.u32 %v630, %v634
        %v637 = vshll.u32 %v557, 16
        %v639 = vrot.slane %v637, 1
        %v640 = vsel %vm568, %v635, %v639
        %v642 = vshrl.u32 %v494, 16
        %v644 = vshll.u32 %v494, 16
        %v646 = vrot.slane %v644, 1
        %v647 = vor.u32 %v642, %v646
        %v649 = vshll.u32 %v558, 16
        %v651 = vrot.slane %v649, 1
        %v652 = vsel %vm568, %v647, %v651
        %v654 = vshrl.u32 %v495, 16
        %v656 = vshll.u32 %v495, 16
        %v658 = vrot.slane %v656, 1
        %v659 = vor.u32 %v654, %v658
        %v661 = vshll.u32 %v559, 16
        %v663 = vrot.slane %v661, 1
        %v664 = vsel %vm568, %v659, %v663
        %v666 = vshrl.u32 %v496, 16
        %v668 = vshll.u32 %v496, 16
        %v670 = vrot.slane %v668, 1
        %v671 = vor.u32 %v666, %v670
        %v673 = vshll.u32 %v560, 16
        %v675 = vrot.slane %v673, 1
        %v676 = vsel %vm568, %v671, %v675
        %v678 = vshrl.u32 %v497, 16
        %v680 = vshll.u32 %v497, 16
        %v682 = vrot.slane %v680, 1
        %v683 = vor.u32 %v678, %v682
        %v685 = vshll.u32 %v561, 16
        %v687 = vrot.slane %v685, 1
        %v688 = vsel %vm568, %v683, %v687
        %v690 = vshrl.u32 %v498, 16
        %v692 = vshll.u32 %v498, 16
        %v694 = vrot.slane %v692, 1
        %v695 = vor.u32 %v690, %v694
        %v697 = vshll.u32 %v562, 16
        %v699 = vrot.slane %v697, 1
        %v700 = vsel %vm568, %v695, %v699
        %v702 = vshrl.u32 %v499, 16
        %v704 = vshll.u32 %v499, 16
        %v706 = vrot.slane %v704, 1
        %v707 = vor.u32 %v702, %v706
        %v709 = vshll.u32 %v563, 16
        %v711 = vrot.slane %v709, 1
        %v712 = vsel %vm568, %v707, %v711
        %v714 = vshrl.u32 %v500, 16
        %v716 = vshll.u32 %v500, 16
        %v718 = vrot.slane %v716, 1
        %v719 = vor.u32 %v714, %v718
        %v721 = vshll.u32 %v564, 16
        %v723 = vrot.slane %v721, 1
        %v724 = vsel %vm568, %v719, %v723
        %v726 = vshrl.u32 %v501, 16
        %v728 = vshll.u32 %v501, 16
        %v730 = vrot.slane %v728, 1
        %v731 = vor.u32 %v726, %v730
        %v733 = vshll.u32 %v565, 16
        %v735 = vrot.slane %v733, 1
        %v736 = vsel %vm568, %v731, %v735
        %v738 = vshrl.u32 %v502, 16
        %v740 = vshll.u32 %v502, 16
        %v742 = vrot.slane %v740, 1
        %v743 = vor.u32 %v738, %v742
        %v745 = vshll.u32 %v566, 16
        %v747 = vrot.slane %v745, 1
        %v748 = vsel %vm568, %v743, %v747
        %v750 = vshrl.u32 %v503, 16
        %v752 = vshll.u32 %v503, 16
        %v754 = vrot.slane %v752, 1
        %v755 = vor.u32 %v750, %v754
        %v757 = vshll.u32 %v567, 16
        %v759 = vrot.slane %v757, 1
        %v760 = vsel %vm568, %v755, %v759
        %vm777 = vcmask 1046528
        %v778 = vrot.slane %v488, 1
        %v779 = vrot.slane %v552, 1
        %v780 = vsel %vm777, %v778, %v779
        %v781 = vrot.slane %v489, 1
        %v782 = vrot.slane %v553, 1
        %v783 = vsel %vm777, %v781, %v782
        %v784 = vrot.slane %v490, 1
        %v785 = vrot.slane %v554, 1
        %v786 = vsel %vm777, %v784, %v785
        %v787 = vrot.slane %v491, 1
        %v788 = vrot.slane %v555, 1
        %v789 = vsel %vm777, %v787, %v788
        %v790 = vrot.slane %v492, 1
        %v791 = vrot.slane %v556, 1
        %v792 = vsel %vm777, %v790, %v791
        %v793 = vrot.slane %v493, 1
        %v794 = vrot.slane %v557, 1
        %v795 = vsel %vm777, %v793, %v794
        %v796 = vrot.slane %v494, 1
        %v797 = vrot.slane %v558, 1
        %v798 = vsel %vm777, %v796, %v797
        %v799 = vrot.slane %v495, 1
        %v800 = vrot.slane %v559, 1
        %v801 = vsel %vm777, %v799, %v800
        %v802 = vrot.slane %v496, 1
        %v803 = vrot.slane %v560, 1
        %v804 = vsel %vm777, %v802, %v803
        %v805 = vrot.slane %v497, 1
        %v806 = vrot.slane %v561, 1
        %v807 = vsel %vm777, %v805, %v806
        %v808 = vrot.slane %v498, 1
        %v809 = vrot.slane %v562, 1
        %v810 = vsel %vm777, %v808, %v809
        %v811 = vrot.slane %v499, 1
        %v812 = vrot.slane %v563, 1
        %v813 = vsel %vm777, %v811, %v812
        %v814 = vrot.slane %v500, 1
        %v815 = vrot.slane %v564, 1
        %v816 = vsel %vm777, %v814, %v815
        %v817 = vrot.slane %v501, 1
        %v818 = vrot.slane %v565, 1
        %v819 = vsel %vm777, %v817, %v818
        %v820 = vrot.slane %v502, 1
        %v821 = vrot.slane %v566, 1
        %v822 = vsel %vm777, %v820, %v821
        %v823 = vrot.slane %v503, 1
        %v824 = vrot.slane %v567, 1
        %v825 = vsel %vm777, %v823, %v824
        %v842 = vld [vmem:[%s1] sm:$0xf]
        %v843 = vld [vmem:[%s1 + $0x4] sm:$0xf]
        %v844 = vld [vmem:[%s1 + $0x8] sm:$0xf]
        %v845 = vld [vmem:[%s1 + $0xc] sm:$0xf]
        %v846 = vld [vmem:[%s1 + $0x10] sm:$0xf]
        %v847 = vld [vmem:[%s1 + $0x14] sm:$0xf]
        %v848 = vld [vmem:[%s1 + $0x18] sm:$0xf]
        %v849 = vld [vmem:[%s1 + $0x1c] sm:$0xf]
        %v850 = vld [vmem:[%s1 + $0x20] sm:$0xf]
        %v851 = vld [vmem:[%s1 + $0x24] sm:$0xf]
        %v852 = vld [vmem:[%s1 + $0x28] sm:$0xf]
        %v853 = vld [vmem:[%s1 + $0x2c] sm:$0xf]
        %v854 = vld [vmem:[%s1 + $0x30] sm:$0xf]
        %v855 = vld [vmem:[%s1 + $0x34] sm:$0xf]
        %v856 = vld [vmem:[%s1 + $0x38] sm:$0xf]
        %v857 = vld [vmem:[%s1 + $0x3c] sm:$0xf]
        %v858 = vld [vmem:[%s1 + $0x40] sm:$0xf]
        %v859 = vld [vmem:[%s1 + $0x44] sm:$0xf]
        %v860 = vld [vmem:[%s1 + $0x48] sm:$0xf]
        %v861 = vld [vmem:[%s1 + $0x4c] sm:$0xf]
        %v862 = vld [vmem:[%s1 + $0x50] sm:$0xf]
        %v863 = vld [vmem:[%s1 + $0x54] sm:$0xf]
        %v864 = vld [vmem:[%s1 + $0x58] sm:$0xf]
        %v865 = vld [vmem:[%s1 + $0x5c] sm:$0xf]
        %v866 = vld [vmem:[%s1 + $0x60] sm:$0xf]
        %v867 = vld [vmem:[%s1 + $0x64] sm:$0xf]
        %v868 = vld [vmem:[%s1 + $0x68] sm:$0xf]
        %v869 = vld [vmem:[%s1 + $0x6c] sm:$0xf]
        %v870 = vld [vmem:[%s1 + $0x70] sm:$0xf]
        %v871 = vld [vmem:[%s1 + $0x74] sm:$0xf]
        %v872 = vld [vmem:[%s1 + $0x78] sm:$0xf]
        %v873 = vld [vmem:[%s1 + $0x7c] sm:$0xf]
        %v874 = vld [vmem:[%s1 + $0x80] sm:$0xf]
        %v875 = vld [vmem:[%s1 + $0x84] sm:$0xf]
        %v876 = vld [vmem:[%s1 + $0x88] sm:$0xf]
        %v877 = vld [vmem:[%s1 + $0x8c] sm:$0xf]
        %v878 = vld [vmem:[%s1 + $0x90] sm:$0xf]
        %v879 = vld [vmem:[%s1 + $0x94] sm:$0xf]
        %v880 = vld [vmem:[%s1 + $0x98] sm:$0xf]
        %v881 = vld [vmem:[%s1 + $0x9c] sm:$0xf]
        %v882 = vld [vmem:[%s1 + $0xa0] sm:$0xf]
        %v883 = vld [vmem:[%s1 + $0xa4] sm:$0xf]
        %v884 = vld [vmem:[%s1 + $0xa8] sm:$0xf]
        %v885 = vld [vmem:[%s1 + $0xac] sm:$0xf]
        %v886 = vld [vmem:[%s1 + $0xb0] sm:$0xf]
        %v887 = vld [vmem:[%s1 + $0xb4] sm:$0xf]
        %v888 = vld [vmem:[%s1 + $0xb8] sm:$0xf]
        %v889 = vld [vmem:[%s1 + $0xbc] sm:$0xf]
        %s890 = scalar_lea.vmem %s374, 12
        %v891 = vld [vmem:[%s890] sm:$0xf]
        %v892 = vld [vmem:[%s890 + $0x4] sm:$0xf]
        %v893 = vld [vmem:[%s890 + $0x8] sm:$0x1]
        %v894 = vld [vmem:[%s890 + $0xc] sm:$0xf]
        %v895 = vld [vmem:[%s890 + $0x10] sm:$0xf]
        %v896 = vld [vmem:[%s890 + $0x14] sm:$0x1]
        %v897 = vld [vmem:[%s890 + $0x18] sm:$0xf]
        %v898 = vld [vmem:[%s890 + $0x1c] sm:$0xf]
        %v899 = vld [vmem:[%s890 + $0x20] sm:$0x1]
        %v900 = vld [vmem:[%s890 + $0x24] sm:$0xf]
        %v901 = vld [vmem:[%s890 + $0x28] sm:$0xf]
        %v902 = vld [vmem:[%s890 + $0x2c] sm:$0x1]
        %v903 = vld [vmem:[%s890 + $0x30] sm:$0xf]
        %v904 = vld [vmem:[%s890 + $0x34] sm:$0xf]
        %v905 = vld [vmem:[%s890 + $0x38] sm:$0x1]
        %v906 = vld [vmem:[%s890 + $0x3c] sm:$0xf]
        %v907 = vld [vmem:[%s890 + $0x40] sm:$0xf]
        %v908 = vld [vmem:[%s890 + $0x44] sm:$0x1]
        %v909 = vld [vmem:[%s890 + $0x48] sm:$0xf]
        %v910 = vld [vmem:[%s890 + $0x4c] sm:$0xf]
        %v911 = vld [vmem:[%s890 + $0x50] sm:$0x1]
        %v912 = vld [vmem:[%s890 + $0x54] sm:$0xf]
        %v913 = vld [vmem:[%s890 + $0x58] sm:$0xf]
        %v914 = vld [vmem:[%s890 + $0x5c] sm:$0x1]
        %v915 = vld [vmem:[%s890 + $0x60] sm:$0xf]
        %v916 = vld [vmem:[%s890 + $0x64] sm:$0xf]
        %v917 = vld [vmem:[%s890 + $0x68] sm:$0x1]
        %v918 = vld [vmem:[%s890 + $0x6c] sm:$0xf]
        %v919 = vld [vmem:[%s890 + $0x70] sm:$0xf]
        %v920 = vld [vmem:[%s890 + $0x74] sm:$0x1]
        %v921 = vld [vmem:[%s890 + $0x78] sm:$0xf]
        %v922 = vld [vmem:[%s890 + $0x7c] sm:$0xf]
        %v923 = vld [vmem:[%s890 + $0x80] sm:$0x1]
        %v924 = vld [vmem:[%s890 + $0x84] sm:$0xf]
        %v925 = vld [vmem:[%s890 + $0x88] sm:$0xf]
        %v926 = vld [vmem:[%s890 + $0x8c] sm:$0x1]
        %v927 = vld [vmem:[%s890 + $0x90] sm:$0xf]
        %v928 = vld [vmem:[%s890 + $0x94] sm:$0xf]
        %v929 = vld [vmem:[%s890 + $0x98] sm:$0x1]
        %v930 = vld [vmem:[%s890 + $0x9c] sm:$0xf]
        %v931 = vld [vmem:[%s890 + $0xa0] sm:$0xf]
        %v932 = vld [vmem:[%s890 + $0xa4] sm:$0x1]
        %v933 = vld [vmem:[%s890 + $0xa8] sm:$0xf]
        %v934 = vld [vmem:[%s890 + $0xac] sm:$0xf]
        %v935 = vld [vmem:[%s890 + $0xb0] sm:$0x1]
        %v936 = vld [vmem:[%s890 + $0xb4] sm:$0xf]
        %v937 = vld [vmem:[%s890 + $0xb8] sm:$0xf]
        %v938 = vld [vmem:[%s890 + $0xbc] sm:$0x1]
        %v971 = vunpack.c.l.b16 %v891
        %v972 = vunpack.c.l.b16 %v892
        %v973 = vunpack.c.l.b16 %v894
        %v974 = vunpack.c.l.b16 %v895
        %v975 = vunpack.c.l.b16 %v897
        %v976 = vunpack.c.l.b16 %v898
        %v977 = vunpack.c.l.b16 %v900
        %v978 = vunpack.c.l.b16 %v901
        %v979 = vunpack.c.l.b16 %v903
        %v980 = vunpack.c.l.b16 %v904
        %v981 = vunpack.c.l.b16 %v906
        %v982 = vunpack.c.l.b16 %v907
        %v983 = vunpack.c.l.b16 %v909
        %v984 = vunpack.c.l.b16 %v910
        %v985 = vunpack.c.l.b16 %v912
        %v986 = vunpack.c.l.b16 %v913
        %v987 = vunpack.c.l.b16 %v915
        %v988 = vunpack.c.l.b16 %v916
        %v989 = vunpack.c.l.b16 %v918
        %v990 = vunpack.c.l.b16 %v919
        %v991 = vunpack.c.l.b16 %v921
        %v992 = vunpack.c.l.b16 %v922
        %v993 = vunpack.c.l.b16 %v924
        %v994 = vunpack.c.l.b16 %v925
        %v995 = vunpack.c.l.b16 %v927
        %v996 = vunpack.c.l.b16 %v928
        %v997 = vunpack.c.l.b16 %v930
        %v998 = vunpack.c.l.b16 %v931
        %v999 = vunpack.c.l.b16 %v933
        %v1000 = vunpack.c.l.b16 %v934
        %v1001 = vunpack.c.l.b16 %v936
        %v1002 = vunpack.c.l.b16 %v937
        %v1003 = vpack.c.b16 %v972, %v971
        %v1004 = vpack.c.b16 %v974, %v973
        %v1005 = vpack.c.b16 %v976, %v975
        %v1006 = vpack.c.b16 %v978, %v977
        %v1007 = vpack.c.b16 %v980, %v979
        %v1008 = vpack.c.b16 %v982, %v981
        %v1009 = vpack.c.b16 %v984, %v983
        %v1010 = vpack.c.b16 %v986, %v985
        %v1011 = vpack.c.b16 %v988, %v987
        %v1012 = vpack.c.b16 %v990, %v989
        %v1013 = vpack.c.b16 %v992, %v991
        %v1014 = vpack.c.b16 %v994, %v993
        %v1015 = vpack.c.b16 %v996, %v995
        %v1016 = vpack.c.b16 %v998, %v997
        %v1017 = vpack.c.b16 %v1000, %v999
        %v1018 = vpack.c.b16 %v1002, %v1001
        %v1051 = vunpack.c.l.b16 %v893
        %v1052 = vunpack.c.l.b16 %v896
        %v1053 = vunpack.c.l.b16 %v899
        %v1054 = vunpack.c.l.b16 %v902
        %v1055 = vunpack.c.l.b16 %v905
        %v1056 = vunpack.c.l.b16 %v908
        %v1057 = vunpack.c.l.b16 %v911
        %v1058 = vunpack.c.l.b16 %v914
        %v1059 = vunpack.c.l.b16 %v917
        %v1060 = vunpack.c.l.b16 %v920
        %v1061 = vunpack.c.l.b16 %v923
        %v1062 = vunpack.c.l.b16 %v926
        %v1063 = vunpack.c.l.b16 %v929
        %v1064 = vunpack.c.l.b16 %v932
        %v1065 = vunpack.c.l.b16 %v935
        %v1066 = vunpack.c.l.b16 %v938
        %v1067 = vpack.c.b16 %v1051, %v1051
        %v1068 = vpack.c.b16 %v1052, %v1052
        %v1069 = vpack.c.b16 %v1053, %v1053
        %v1070 = vpack.c.b16 %v1054, %v1054
        %v1071 = vpack.c.b16 %v1055, %v1055
        %v1072 = vpack.c.b16 %v1056, %v1056
        %v1073 = vpack.c.b16 %v1057, %v1057
        %v1074 = vpack.c.b16 %v1058, %v1058
        %v1075 = vpack.c.b16 %v1059, %v1059
        %v1076 = vpack.c.b16 %v1060, %v1060
        %v1077 = vpack.c.b16 %v1061, %v1061
        %v1078 = vpack.c.b16 %v1062, %v1062
        %v1079 = vpack.c.b16 %v1063, %v1063
        %v1080 = vpack.c.b16 %v1064, %v1064
        %v1081 = vpack.c.b16 %v1065, %v1065
        %v1082 = vpack.c.b16 %v1066, %v1066
        %v1084 = vshrl.u32 %v1003, 16
        %v1086 = vshll.u32 %v1003, 16
        %v1088 = vrot.slane %v1086, 1
        %v1089 = vor.u32 %v1084, %v1088
        %v1091 = vshll.u32 %v1067, 16
        %v1093 = vrot.slane %v1091, 1
        %v1094 = vsel %vm568, %v1089, %v1093
        %v1096 = vshrl.u32 %v1004, 16
        %v1098 = vshll.u32 %v1004, 16
        %v1100 = vrot.slane %v1098, 1
        %v1101 = vor.u32 %v1096, %v1100
        %v1103 = vshll.u32 %v1068, 16
        %v1105 = vrot.slane %v1103, 1
        %v1106 = vsel %vm568, %v1101, %v1105
        %v1108 = vshrl.u32 %v1005, 16
        %v1110 = vshll.u32 %v1005, 16
        %v1112 = vrot.slane %v1110, 1
        %v1113 = vor.u32 %v1108, %v1112
        %v1115 = vshll.u32 %v1069, 16
        %v1117 = vrot.slane %v1115, 1
        %v1118 = vsel %vm568, %v1113, %v1117
        %v1120 = vshrl.u32 %v1006, 16
        %v1122 = vshll.u32 %v1006, 16
        %v1124 = vrot.slane %v1122, 1
        %v1125 = vor.u32 %v1120, %v1124
        %v1127 = vshll.u32 %v1070, 16
        %v1129 = vrot.slane %v1127, 1
        %v1130 = vsel %vm568, %v1125, %v1129
        %v1132 = vshrl.u32 %v1007, 16
        %v1134 = vshll.u32 %v1007, 16
        %v1136 = vrot.slane %v1134, 1
        %v1137 = vor.u32 %v1132, %v1136
        %v1139 = vshll.u32 %v1071, 16
        %v1141 = vrot.slane %v1139, 1
        %v1142 = vsel %vm568, %v1137, %v1141
        %v1144 = vshrl.u32 %v1008, 16
        %v1146 = vshll.u32 %v1008, 16
        %v1148 = vrot.slane %v1146, 1
        %v1149 = vor.u32 %v1144, %v1148
        %v1151 = vshll.u32 %v1072, 16
        %v1153 = vrot.slane %v1151, 1
        %v1154 = vsel %vm568, %v1149, %v1153
        %v1156 = vshrl.u32 %v1009, 16
        %v1158 = vshll.u32 %v1009, 16
        %v1160 = vrot.slane %v1158, 1
        %v1161 = vor.u32 %v1156, %v1160
        %v1163 = vshll.u32 %v1073, 16
        %v1165 = vrot.slane %v1163, 1
        %v1166 = vsel %vm568, %v1161, %v1165
        %v1168 = vshrl.u32 %v1010, 16
        %v1170 = vshll.u32 %v1010, 16
        %v1172 = vrot.slane %v1170, 1
        %v1173 = vor.u32 %v1168, %v1172
        %v1175 = vshll.u32 %v1074, 16
        %v1177 = vrot.slane %v1175, 1
        %v1178 = vsel %vm568, %v1173, %v1177
        %v1180 = vshrl.u32 %v1011, 16
        %v1182 = vshll.u32 %v1011, 16
        %v1184 = vrot.slane %v1182, 1
        %v1185 = vor.u32 %v1180, %v1184
        %v1187 = vshll.u32 %v1075, 16
        %v1189 = vrot.slane %v1187, 1
        %v1190 = vsel %vm568, %v1185, %v1189
        %v1192 = vshrl.u32 %v1012, 16
        %v1194 = vshll.u32 %v1012, 16
        %v1196 = vrot.slane %v1194, 1
        %v1197 = vor.u32 %v1192, %v1196
        %v1199 = vshll.u32 %v1076, 16
        %v1201 = vrot.slane %v1199, 1
        %v1202 = vsel %vm568, %v1197, %v1201
        %v1204 = vshrl.u32 %v1013, 16
        %v1206 = vshll.u32 %v1013, 16
        %v1208 = vrot.slane %v1206, 1
        %v1209 = vor.u32 %v1204, %v1208
        %v1211 = vshll.u32 %v1077, 16
        %v1213 = vrot.slane %v1211, 1
        %v1214 = vsel %vm568, %v1209, %v1213
        %v1216 = vshrl.u32 %v1014, 16
        %v1218 = vshll.u32 %v1014, 16
        %v1220 = vrot.slane %v1218, 1
        %v1221 = vor.u32 %v1216, %v1220
        %v1223 = vshll.u32 %v1078, 16
        %v1225 = vrot.slane %v1223, 1
        %v1226 = vsel %vm568, %v1221, %v1225
        %v1228 = vshrl.u32 %v1015, 16
        %v1230 = vshll.u32 %v1015, 16
        %v1232 = vrot.slane %v1230, 1
        %v1233 = vor.u32 %v1228, %v1232
        %v1235 = vshll.u32 %v1079, 16
        %v1237 = vrot.slane %v1235, 1
        %v1238 = vsel %vm568, %v1233, %v1237
        %v1240 = vshrl.u32 %v1016, 16
        %v1242 = vshll.u32 %v1016, 16
        %v1244 = vrot.slane %v1242, 1
        %v1245 = vor.u32 %v1240, %v1244
        %v1247 = vshll.u32 %v1080, 16
        %v1249 = vrot.slane %v1247, 1
        %v1250 = vsel %vm568, %v1245, %v1249
        %v1252 = vshrl.u32 %v1017, 16
        %v1254 = vshll.u32 %v1017, 16
        %v1256 = vrot.slane %v1254, 1
        %v1257 = vor.u32 %v1252, %v1256
        %v1259 = vshll.u32 %v1081, 16
        %v1261 = vrot.slane %v1259, 1
        %v1262 = vsel %vm568, %v1257, %v1261
        %v1264 = vshrl.u32 %v1018, 16
        %v1266 = vshll.u32 %v1018, 16
        %v1268 = vrot.slane %v1266, 1
        %v1269 = vor.u32 %v1264, %v1268
        %v1271 = vshll.u32 %v1082, 16
        %v1273 = vrot.slane %v1271, 1
        %v1274 = vsel %vm568, %v1269, %v1273
        %v1291 = vrot.slane %v1003, 1
        %v1292 = vrot.slane %v1067, 1
        %v1293 = vsel %vm777, %v1291, %v1292
        %v1294 = vrot.slane %v1004, 1
        %v1295 = vrot.slane %v1068, 1
        %v1296 = vsel %vm777, %v1294, %v1295
        %v1297 = vrot.slane %v1005, 1
        %v1298 = vrot.slane %v1069, 1
        %v1299 = vsel %vm777, %v1297, %v1298
        %v1300 = vrot.slane %v1006, 1
        %v1301 = vrot.slane %v1070, 1
        %v1302 = vsel %vm777, %v1300, %v1301
        %v1303 = vrot.slane %v1007, 1
        %v1304 = vrot.slane %v1071, 1
        %v1305 = vsel %vm777, %v1303, %v1304
        %v1306 = vrot.slane %v1008, 1
        %v1307 = vrot.slane %v1072, 1
        %v1308 = vsel %vm777, %v1306, %v1307
        %v1309 = vrot.slane %v1009, 1
        %v1310 = vrot.slane %v1073, 1
        %v1311 = vsel %vm777, %v1309, %v1310
        %v1312 = vrot.slane %v1010, 1
        %v1313 = vrot.slane %v1074, 1
        %v1314 = vsel %vm777, %v1312, %v1313
        %v1315 = vrot.slane %v1011, 1
        %v1316 = vrot.slane %v1075, 1
        %v1317 = vsel %vm777, %v1315, %v1316
        %v1318 = vrot.slane %v1012, 1
        %v1319 = vrot.slane %v1076, 1
        %v1320 = vsel %vm777, %v1318, %v1319
        %v1321 = vrot.slane %v1013, 1
        %v1322 = vrot.slane %v1077, 1
        %v1323 = vsel %vm777, %v1321, %v1322
        %v1324 = vrot.slane %v1014, 1
        %v1325 = vrot.slane %v1078, 1
        %v1326 = vsel %vm777, %v1324, %v1325
        %v1327 = vrot.slane %v1015, 1
        %v1328 = vrot.slane %v1079, 1
        %v1329 = vsel %vm777, %v1327, %v1328
        %v1330 = vrot.slane %v1016, 1
        %v1331 = vrot.slane %v1080, 1
        %v1332 = vsel %vm777, %v1330, %v1331
        %v1333 = vrot.slane %v1017, 1
        %v1334 = vrot.slane %v1081, 1
        %v1335 = vsel %vm777, %v1333, %v1334
        %v1336 = vrot.slane %v1018, 1
        %v1337 = vrot.slane %v1082, 1
        %v1338 = vsel %vm777, %v1336, %v1337
        %s1355 = scalar_lea.vmem %s1, 192
        %v1356 = vld [vmem:[%s1355] sm:$0xf]
        %v1357 = vld [vmem:[%s1355 + $0x4] sm:$0xf]
        %v1358 = vld [vmem:[%s1355 + $0x8] sm:$0xf]
        %v1359 = vld [vmem:[%s1355 + $0xc] sm:$0xf]
        %v1360 = vld [vmem:[%s1355 + $0x10] sm:$0xf]
        %v1361 = vld [vmem:[%s1355 + $0x14] sm:$0xf]
        %v1362 = vld [vmem:[%s1355 + $0x18] sm:$0xf]
        %v1363 = vld [vmem:[%s1355 + $0x1c] sm:$0xf]
        %v1364 = vld [vmem:[%s1355 + $0x20] sm:$0xf]
        %v1365 = vld [vmem:[%s1355 + $0x24] sm:$0xf]
        %v1366 = vld [vmem:[%s1355 + $0x28] sm:$0xf]
        %v1367 = vld [vmem:[%s1355 + $0x2c] sm:$0xf]
        %v1368 = vld [vmem:[%s1355 + $0x30] sm:$0xf]
        %v1369 = vld [vmem:[%s1355 + $0x34] sm:$0xf]
        %v1370 = vld [vmem:[%s1355 + $0x38] sm:$0xf]
        %v1371 = vld [vmem:[%s1355 + $0x3c] sm:$0xf]
        %v1372 = vld [vmem:[%s1355 + $0x40] sm:$0xf]
        %v1373 = vld [vmem:[%s1355 + $0x44] sm:$0xf]
        %v1374 = vld [vmem:[%s1355 + $0x48] sm:$0xf]
        %v1375 = vld [vmem:[%s1355 + $0x4c] sm:$0xf]
        %v1376 = vld [vmem:[%s1355 + $0x50] sm:$0xf]
        %v1377 = vld [vmem:[%s1355 + $0x54] sm:$0xf]
        %v1378 = vld [vmem:[%s1355 + $0x58] sm:$0xf]
        %v1379 = vld [vmem:[%s1355 + $0x5c] sm:$0xf]
        %v1380 = vld [vmem:[%s1355 + $0x60] sm:$0xf]
        %v1381 = vld [vmem:[%s1355 + $0x64] sm:$0xf]
        %v1382 = vld [vmem:[%s1355 + $0x68] sm:$0xf]
        %v1383 = vld [vmem:[%s1355 + $0x6c] sm:$0xf]
        %v1384 = vld [vmem:[%s1355 + $0x70] sm:$0xf]
        %v1385 = vld [vmem:[%s1355 + $0x74] sm:$0xf]
        %v1386 = vld [vmem:[%s1355 + $0x78] sm:$0xf]
        %v1387 = vld [vmem:[%s1355 + $0x7c] sm:$0xf]
        %v1388 = vld [vmem:[%s1355 + $0x80] sm:$0xf]
        %v1389 = vld [vmem:[%s1355 + $0x84] sm:$0xf]
        %v1390 = vld [vmem:[%s1355 + $0x88] sm:$0xf]
        %v1391 = vld [vmem:[%s1355 + $0x8c] sm:$0xf]
        %v1392 = vld [vmem:[%s1355 + $0x90] sm:$0xf]
        %v1393 = vld [vmem:[%s1355 + $0x94] sm:$0xf]
        %v1394 = vld [vmem:[%s1355 + $0x98] sm:$0xf]
        %v1395 = vld [vmem:[%s1355 + $0x9c] sm:$0xf]
        %v1396 = vld [vmem:[%s1355 + $0xa0] sm:$0xf]
        %v1397 = vld [vmem:[%s1355 + $0xa4] sm:$0xf]
        %v1398 = vld [vmem:[%s1355 + $0xa8] sm:$0xf]
        %v1399 = vld [vmem:[%s1355 + $0xac] sm:$0xf]
        %v1400 = vld [vmem:[%s1355 + $0xb0] sm:$0xf]
        %v1401 = vld [vmem:[%s1355 + $0xb4] sm:$0xf]
        %v1402 = vld [vmem:[%s1355 + $0xb8] sm:$0xf]
        %v1403 = vld [vmem:[%s1355 + $0xbc] sm:$0xf]
        %v1452 = vunpack.c.l.b16 %v1356
        %v1453 = vunpack.c.l.b16 %v1357
        %v1454 = vunpack.c.l.b16 %v1358
        %v1455 = vunpack.c.l.b16 %v1359
        %v1456 = vunpack.c.l.b16 %v1360
        %v1457 = vunpack.c.l.b16 %v1361
        %v1458 = vunpack.c.l.b16 %v1362
        %v1459 = vunpack.c.l.b16 %v1363
        %v1460 = vunpack.c.l.b16 %v1364
        %v1461 = vunpack.c.l.b16 %v1365
        %v1462 = vunpack.c.l.b16 %v1366
        %v1463 = vunpack.c.l.b16 %v1367
        %v1464 = vunpack.c.l.b16 %v1368
        %v1465 = vunpack.c.l.b16 %v1369
        %v1466 = vunpack.c.l.b16 %v1370
        %v1467 = vunpack.c.l.b16 %v1371
        %v1468 = vunpack.c.l.b16 %v1372
        %v1469 = vunpack.c.l.b16 %v1373
        %v1470 = vunpack.c.l.b16 %v1374
        %v1471 = vunpack.c.l.b16 %v1375
        %v1472 = vunpack.c.l.b16 %v1376
        %v1473 = vunpack.c.l.b16 %v1377
        %v1474 = vunpack.c.l.b16 %v1378
        %v1475 = vunpack.c.l.b16 %v1379
        %v1476 = vunpack.c.l.b16 %v1380
        %v1477 = vunpack.c.l.b16 %v1381
        %v1478 = vunpack.c.l.b16 %v1382
        %v1479 = vunpack.c.l.b16 %v1383
        %v1480 = vunpack.c.l.b16 %v1384
        %v1481 = vunpack.c.l.b16 %v1385
        %v1482 = vunpack.c.l.b16 %v1386
        %v1483 = vunpack.c.l.b16 %v1387
        %v1484 = vunpack.c.l.b16 %v1388
        %v1485 = vunpack.c.l.b16 %v1389
        %v1486 = vunpack.c.l.b16 %v1390
        %v1487 = vunpack.c.l.b16 %v1391
        %v1488 = vunpack.c.l.b16 %v1392
        %v1489 = vunpack.c.l.b16 %v1393
        %v1490 = vunpack.c.l.b16 %v1394
        %v1491 = vunpack.c.l.b16 %v1395
        %v1492 = vunpack.c.l.b16 %v1396
        %v1493 = vunpack.c.l.b16 %v1397
        %v1494 = vunpack.c.l.b16 %v1398
        %v1495 = vunpack.c.l.b16 %v1399
        %v1496 = vunpack.c.l.b16 %v1400
        %v1497 = vunpack.c.l.b16 %v1401
        %v1498 = vunpack.c.l.b16 %v1402
        %v1499 = vunpack.c.l.b16 %v1403
        %v1500 = vpack.c.b16 %v1453, %v1452
        %v1501 = vpack.c.b16 %v1455, %v1454
        %v1502 = vpack.c.b16 %v1457, %v1456
        %v1503 = vpack.c.b16 %v1459, %v1458
        %v1504 = vpack.c.b16 %v1461, %v1460
        %v1505 = vpack.c.b16 %v1463, %v1462
        %v1506 = vpack.c.b16 %v1465, %v1464
        %v1507 = vpack.c.b16 %v1467, %v1466
        %v1508 = vpack.c.b16 %v1469, %v1468
        %v1509 = vpack.c.b16 %v1471, %v1470
        %v1510 = vpack.c.b16 %v1473, %v1472
        %v1511 = vpack.c.b16 %v1475, %v1474
        %v1512 = vpack.c.b16 %v1477, %v1476
        %v1513 = vpack.c.b16 %v1479, %v1478
        %v1514 = vpack.c.b16 %v1481, %v1480
        %v1515 = vpack.c.b16 %v1483, %v1482
        %v1516 = vpack.c.b16 %v1485, %v1484
        %v1517 = vpack.c.b16 %v1487, %v1486
        %v1518 = vpack.c.b16 %v1489, %v1488
        %v1519 = vpack.c.b16 %v1491, %v1490
        %v1520 = vpack.c.b16 %v1493, %v1492
        %v1521 = vpack.c.b16 %v1495, %v1494
        %v1522 = vpack.c.b16 %v1497, %v1496
        %v1523 = vpack.c.b16 %v1499, %v1498
        %1548 = vmatpush.bf16.msra.mxu0 %v1507
        %1549 = vmatpush.bf16.msra.mxu0 %v1506
        %1550 = vmatpush.bf16.msra.mxu0 %v1505
        %1551 = vmatpush.bf16.msra.mxu0 %v1504
        %1552 = vmatpush.bf16.msra.mxu0 %v1503
        %1553 = vmatpush.bf16.msra.mxu0 %v1502
        %1554 = vmatpush.bf16.msra.mxu0 %v1501
        %1555 = vmatpush.bf16.msra.mxu0 %v1500
        %1556 = vmatmul.bf16.gmra.mxu0 %v1003
        %v1557 = vpop.f32.mrf.mxu0
        %v1558 = vadd.f32 0.0, %v1557
        %v1559 = vpop.f32.mrf.mxu0
        %v1560 = vadd.f32 0.0, %v1559
        %1561 = vmatmul.bf16.gmra.mxu0 %v1004
        %v1562 = vpop.f32.mrf.mxu0
        %v1563 = vadd.f32 0.0, %v1562
        %v1564 = vpop.f32.mrf.mxu0
        %v1565 = vadd.f32 0.0, %v1564
        %1566 = vmatmul.bf16.gmra.mxu0 %v1005
        %v1567 = vpop.f32.mrf.mxu0
        %v1568 = vadd.f32 0.0, %v1567
        %v1569 = vpop.f32.mrf.mxu0
        %v1570 = vadd.f32 0.0, %v1569
        %1571 = vmatmul.bf16.gmra.mxu0 %v1006
        %v1572 = vpop.f32.mrf.mxu0
        %v1573 = vadd.f32 0.0, %v1572
        %v1574 = vpop.f32.mrf.mxu0
        %v1575 = vadd.f32 0.0, %v1574
        %1576 = vmatmul.bf16.gmra.mxu0 %v1007
        %v1577 = vpop.f32.mrf.mxu0
        %v1578 = vadd.f32 0.0, %v1577
        %v1579 = vpop.f32.mrf.mxu0
        %v1580 = vadd.f32 0.0, %v1579
        %1581 = vmatmul.bf16.gmra.mxu0 %v1008
        %v1582 = vpop.f32.mrf.mxu0
        %v1583 = vadd.f32 0.0, %v1582
        %v1584 = vpop.f32.mrf.mxu0
        %v1585 = vadd.f32 0.0, %v1584
        %1586 = vmatmul.bf16.gmra.mxu0 %v1009
        %v1587 = vpop.f32.mrf.mxu0
        %v1588 = vadd.f32 0.0, %v1587
        %v1589 = vpop.f32.mrf.mxu0
        %v1590 = vadd.f32 0.0, %v1589
        %1591 = vmatmul.bf16.gmra.mxu0 %v1010
        %v1592 = vpop.f32.mrf.mxu0
        %v1593 = vadd.f32 0.0, %v1592
        %v1594 = vpop.f32.mrf.mxu0
        %v1595 = vadd.f32 0.0, %v1594
        %1596 = vmatmul.bf16.gmra.mxu0 %v1011
        %v1597 = vpop.f32.mrf.mxu0
        %v1598 = vadd.f32 0.0, %v1597
        %v1599 = vpop.f32.mrf.mxu0
        %v1600 = vadd.f32 0.0, %v1599
        %1601 = vmatmul.bf16.gmra.mxu0 %v1012
        %v1602 = vpop.f32.mrf.mxu0
        %v1603 = vadd.f32 0.0, %v1602
        %v1604 = vpop.f32.mrf.mxu0
        %v1605 = vadd.f32 0.0, %v1604
        %1606 = vmatmul.bf16.gmra.mxu0 %v1013
        %v1607 = vpop.f32.mrf.mxu0
        %v1608 = vadd.f32 0.0, %v1607
        %v1609 = vpop.f32.mrf.mxu0
        %v1610 = vadd.f32 0.0, %v1609
        %1611 = vmatmul.bf16.gmra.mxu0 %v1014
        %v1612 = vpop.f32.mrf.mxu0
        %v1613 = vadd.f32 0.0, %v1612
        %v1614 = vpop.f32.mrf.mxu0
        %v1615 = vadd.f32 0.0, %v1614
        %1616 = vmatmul.bf16.gmra.mxu0 %v1015
        %v1617 = vpop.f32.mrf.mxu0
        %v1618 = vadd.f32 0.0, %v1617
        %v1619 = vpop.f32.mrf.mxu0
        %v1620 = vadd.f32 0.0, %v1619
        %1621 = vmatmul.bf16.gmra.mxu0 %v1016
        %v1622 = vpop.f32.mrf.mxu0
        %v1623 = vadd.f32 0.0, %v1622
        %v1624 = vpop.f32.mrf.mxu0
        %v1625 = vadd.f32 0.0, %v1624
        %1626 = vmatmul.bf16.gmra.mxu0 %v1017
        %v1627 = vpop.f32.mrf.mxu0
        %v1628 = vadd.f32 0.0, %v1627
        %v1629 = vpop.f32.mrf.mxu0
        %v1630 = vadd.f32 0.0, %v1629
        %1631 = vmatmul.bf16.gmra.mxu0 %v1018
        %v1632 = vpop.f32.mrf.mxu0
        %v1633 = vadd.f32 0.0, %v1632
        %v1634 = vpop.f32.mrf.mxu0
        %v1635 = vadd.f32 0.0, %v1634
        %1636 = vdwg.mxu0
        %1637 = vmatpush.bf16.msra.mxu0 %v1515
        %1638 = vmatpush.bf16.msra.mxu0 %v1514
        %1639 = vmatpush.bf16.msra.mxu0 %v1513
        %1640 = vmatpush.bf16.msra.mxu0 %v1512
        %1641 = vmatpush.bf16.msra.mxu0 %v1511
        %1642 = vmatpush.bf16.msra.mxu0 %v1510
        %1643 = vmatpush.bf16.msra.mxu0 %v1509
        %1644 = vmatpush.bf16.msra.mxu0 %v1508
        %1645 = vmatmul.bf16.gmra.mxu0 %v1094
        %v1646 = vpop.f32.mrf.mxu0
        %v1647 = vadd.f32 %v1558, %v1646
        %v1648 = vpop.f32.mrf.mxu0
        %v1649 = vadd.f32 %v1560, %v1648
        %1650 = vmatmul.bf16.gmra.mxu0 %v1106
        %v1651 = vpop.f32.mrf.mxu0
        %v1652 = vadd.f32 %v1563, %v1651
        %v1653 = vpop.f32.mrf.mxu0
        %v1654 = vadd.f32 %v1565, %v1653
        %1655 = vmatmul.bf16.gmra.mxu0 %v1118
        %v1656 = vpop.f32.mrf.mxu0
        %v1657 = vadd.f32 %v1568, %v1656
        %v1658 = vpop.f32.mrf.mxu0
        %v1659 = vadd.f32 %v1570, %v1658
        %1660 = vmatmul.bf16.gmra.mxu0 %v1130
        %v1661 = vpop.f32.mrf.mxu0
        %v1662 = vadd.f32 %v1573, %v1661
        %v1663 = vpop.f32.mrf.mxu0
        %v1664 = vadd.f32 %v1575, %v1663
        %1665 = vmatmul.bf16.gmra.mxu0 %v1142
        %v1666 = vpop.f32.mrf.mxu0
        %v1667 = vadd.f32 %v1578, %v1666
        %v1668 = vpop.f32.mrf.mxu0
        %v1669 = vadd.f32 %v1580, %v1668
        %1670 = vmatmul.bf16.gmra.mxu0 %v1154
        %v1671 = vpop.f32.mrf.mxu0
        %v1672 = vadd.f32 %v1583, %v1671
        %v1673 = vpop.f32.mrf.mxu0
        %v1674 = vadd.f32 %v1585, %v1673
        %1675 = vmatmul.bf16.gmra.mxu0 %v1166
        %v1676 = vpop.f32.mrf.mxu0
        %v1677 = vadd.f32 %v1588, %v1676
        %v1678 = vpop.f32.mrf.mxu0
        %v1679 = vadd.f32 %v1590, %v1678
        %1680 = vmatmul.bf16.gmra.mxu0 %v1178
        %v1681 = vpop.f32.mrf.mxu0
        %v1682 = vadd.f32 %v1593, %v1681
        %v1683 = vpop.f32.mrf.mxu0
        %v1684 = vadd.f32 %v1595, %v1683
        %1685 = vmatmul.bf16.gmra.mxu0 %v1190
        %v1686 = vpop.f32.mrf.mxu0
        %v1687 = vadd.f32 %v1598, %v1686
        %v1688 = vpop.f32.mrf.mxu0
        %v1689 = vadd.f32 %v1600, %v1688
        %1690 = vmatmul.bf16.gmra.mxu0 %v1202
        %v1691 = vpop.f32.mrf.mxu0
        %v1692 = vadd.f32 %v1603, %v1691
        %v1693 = vpop.f32.mrf.mxu0
        %v1694 = vadd.f32 %v1605, %v1693
        %1695 = vmatmul.bf16.gmra.mxu0 %v1214
        %v1696 = vpop.f32.mrf.mxu0
        %v1697 = vadd.f32 %v1608, %v1696
        %v1698 = vpop.f32.mrf.mxu0
        %v1699 = vadd.f32 %v1610, %v1698
        %1700 = vmatmul.bf16.gmra.mxu0 %v1226
        %v1701 = vpop.f32.mrf.mxu0
        %v1702 = vadd.f32 %v1613, %v1701
        %v1703 = vpop.f32.mrf.mxu0
        %v1704 = vadd.f32 %v1615, %v1703
        %1705 = vmatmul.bf16.gmra.mxu0 %v1238
        %v1706 = vpop.f32.mrf.mxu0
        %v1707 = vadd.f32 %v1618, %v1706
        %v1708 = vpop.f32.mrf.mxu0
        %v1709 = vadd.f32 %v1620, %v1708
        %1710 = vmatmul.bf16.gmra.mxu0 %v1250
        %v1711 = vpop.f32.mrf.mxu0
        %v1712 = vadd.f32 %v1623, %v1711
        %v1713 = vpop.f32.mrf.mxu0
        %v1714 = vadd.f32 %v1625, %v1713
        %1715 = vmatmul.bf16.gmra.mxu0 %v1262
        %v1716 = vpop.f32.mrf.mxu0
        %v1717 = vadd.f32 %v1628, %v1716
        %v1718 = vpop.f32.mrf.mxu0
        %v1719 = vadd.f32 %v1630, %v1718
        %1720 = vmatmul.bf16.gmra.mxu0 %v1274
        %v1721 = vpop.f32.mrf.mxu0
        %v1722 = vadd.f32 %v1633, %v1721
        %v1723 = vpop.f32.mrf.mxu0
        %v1724 = vadd.f32 %v1635, %v1723
        %1725 = vdwg.mxu0
        %1726 = vmatpush.bf16.msra.mxu0 %v1523
        %1727 = vmatpush.bf16.msra.mxu0 %v1522
        %1728 = vmatpush.bf16.msra.mxu0 %v1521
        %1729 = vmatpush.bf16.msra.mxu0 %v1520
        %1730 = vmatpush.bf16.msra.mxu0 %v1519
        %1731 = vmatpush.bf16.msra.mxu0 %v1518
        %1732 = vmatpush.bf16.msra.mxu0 %v1517
        %1733 = vmatpush.bf16.msra.mxu0 %v1516
        %1734 = vmatmul.bf16.gmra.mxu0 %v1293
        %v1735 = vpop.f32.mrf.mxu0
        %v1736 = vadd.f32 %v1647, %v1735
        %v1737 = vpop.f32.mrf.mxu0
        %v1738 = vadd.f32 %v1649, %v1737
        %1739 = vmatmul.bf16.gmra.mxu0 %v1296
        %v1740 = vpop.f32.mrf.mxu0
        %v1741 = vadd.f32 %v1652, %v1740
        %v1742 = vpop.f32.mrf.mxu0
        %v1743 = vadd.f32 %v1654, %v1742
        %1744 = vmatmul.bf16.gmra.mxu0 %v1299
        %v1745 = vpop.f32.mrf.mxu0
        %v1746 = vadd.f32 %v1657, %v1745
        %v1747 = vpop.f32.mrf.mxu0
        %v1748 = vadd.f32 %v1659, %v1747
        %1749 = vmatmul.bf16.gmra.mxu0 %v1302
        %v1750 = vpop.f32.mrf.mxu0
        %v1751 = vadd.f32 %v1662, %v1750
        %v1752 = vpop.f32.mrf.mxu0
        %v1753 = vadd.f32 %v1664, %v1752
        %1754 = vmatmul.bf16.gmra.mxu0 %v1305
        %v1755 = vpop.f32.mrf.mxu0
        %v1756 = vadd.f32 %v1667, %v1755
        %v1757 = vpop.f32.mrf.mxu0
        %v1758 = vadd.f32 %v1669, %v1757
        %1759 = vmatmul.bf16.gmra.mxu0 %v1308
        %v1760 = vpop.f32.mrf.mxu0
        %v1761 = vadd.f32 %v1672, %v1760
        %v1762 = vpop.f32.mrf.mxu0
        %v1763 = vadd.f32 %v1674, %v1762
        %1764 = vmatmul.bf16.gmra.mxu0 %v1311
        %v1765 = vpop.f32.mrf.mxu0
        %v1766 = vadd.f32 %v1677, %v1765
        %v1767 = vpop.f32.mrf.mxu0
        %v1768 = vadd.f32 %v1679, %v1767
        %1769 = vmatmul.bf16.gmra.mxu0 %v1314
        %v1770 = vpop.f32.mrf.mxu0
        %v1771 = vadd.f32 %v1682, %v1770
        %v1772 = vpop.f32.mrf.mxu0
        %v1773 = vadd.f32 %v1684, %v1772
        %1774 = vmatmul.bf16.gmra.mxu0 %v1317
        %v1775 = vpop.f32.mrf.mxu0
        %v1776 = vadd.f32 %v1687, %v1775
        %v1777 = vpop.f32.mrf.mxu0
        %v1778 = vadd.f32 %v1689, %v1777
        %1779 = vmatmul.bf16.gmra.mxu0 %v1320
        %v1780 = vpop.f32.mrf.mxu0
        %v1781 = vadd.f32 %v1692, %v1780
        %v1782 = vpop.f32.mrf.mxu0
        %v1783 = vadd.f32 %v1694, %v1782
        %1784 = vmatmul.bf16.gmra.mxu0 %v1323
        %v1785 = vpop.f32.mrf.mxu0
        %v1786 = vadd.f32 %v1697, %v1785
        %v1787 = vpop.f32.mrf.mxu0
        %v1788 = vadd.f32 %v1699, %v1787
        %1789 = vmatmul.bf16.gmra.mxu0 %v1326
        %v1790 = vpop.f32.mrf.mxu0
        %v1791 = vadd.f32 %v1702, %v1790
        %v1792 = vpop.f32.mrf.mxu0
        %v1793 = vadd.f32 %v1704, %v1792
        %1794 = vmatmul.bf16.gmra.mxu0 %v1329
        %v1795 = vpop.f32.mrf.mxu0
        %v1796 = vadd.f32 %v1707, %v1795
        %v1797 = vpop.f32.mrf.mxu0
        %v1798 = vadd.f32 %v1709, %v1797
        %1799 = vmatmul.bf16.gmra.mxu0 %v1332
        %v1800 = vpop.f32.mrf.mxu0
        %v1801 = vadd.f32 %v1712, %v1800
        %v1802 = vpop.f32.mrf.mxu0
        %v1803 = vadd.f32 %v1714, %v1802
        %1804 = vmatmul.bf16.gmra.mxu0 %v1335
        %v1805 = vpop.f32.mrf.mxu0
        %v1806 = vadd.f32 %v1717, %v1805
        %v1807 = vpop.f32.mrf.mxu0
        %v1808 = vadd.f32 %v1719, %v1807
        %1809 = vmatmul.bf16.gmra.mxu0 %v1338
        %v1810 = vpop.f32.mrf.mxu0
        %v1811 = vadd.f32 %v1722, %v1810
        %v1812 = vpop.f32.mrf.mxu0
        %v1813 = vadd.f32 %v1724, %v1812
        %1814 = vdwg.mxu0
        %v1863 = vunpack.c.l.b16 %v842
        %v1864 = vunpack.c.l.b16 %v843
        %v1865 = vunpack.c.l.b16 %v844
        %v1866 = vunpack.c.l.b16 %v845
        %v1867 = vunpack.c.l.b16 %v846
        %v1868 = vunpack.c.l.b16 %v847
        %v1869 = vunpack.c.l.b16 %v848
        %v1870 = vunpack.c.l.b16 %v849
        %v1871 = vunpack.c.l.b16 %v850
        %v1872 = vunpack.c.l.b16 %v851
        %v1873 = vunpack.c.l.b16 %v852
        %v1874 = vunpack.c.l.b16 %v853
        %v1875 = vunpack.c.l.b16 %v854
        %v1876 = vunpack.c.l.b16 %v855
        %v1877 = vunpack.c.l.b16 %v856
        %v1878 = vunpack.c.l.b16 %v857
        %v1879 = vunpack.c.l.b16 %v858
        %v1880 = vunpack.c.l.b16 %v859
        %v1881 = vunpack.c.l.b16 %v860
        %v1882 = vunpack.c.l.b16 %v861
        %v1883 = vunpack.c.l.b16 %v862
        %v1884 = vunpack.c.l.b16 %v863
        %v1885 = vunpack.c.l.b16 %v864
        %v1886 = vunpack.c.l.b16 %v865
        %v1887 = vunpack.c.l.b16 %v866
        %v1888 = vunpack.c.l.b16 %v867
        %v1889 = vunpack.c.l.b16 %v868
        %v1890 = vunpack.c.l.b16 %v869
        %v1891 = vunpack.c.l.b16 %v870
        %v1892 = vunpack.c.l.b16 %v871
        %v1893 = vunpack.c.l.b16 %v872
        %v1894 = vunpack.c.l.b16 %v873
        %v1895 = vunpack.c.l.b16 %v874
        %v1896 = vunpack.c.l.b16 %v875
        %v1897 = vunpack.c.l.b16 %v876
        %v1898 = vunpack.c.l.b16 %v877
        %v1899 = vunpack.c.l.b16 %v878
        %v1900 = vunpack.c.l.b16 %v879
        %v1901 = vunpack.c.l.b16 %v880
        %v1902 = vunpack.c.l.b16 %v881
        %v1903 = vunpack.c.l.b16 %v882
        %v1904 = vunpack.c.l.b16 %v883
        %v1905 = vunpack.c.l.b16 %v884
        %v1906 = vunpack.c.l.b16 %v885
        %v1907 = vunpack.c.l.b16 %v886
        %v1908 = vunpack.c.l.b16 %v887
        %v1909 = vunpack.c.l.b16 %v888
        %v1910 = vunpack.c.l.b16 %v889
        %v1911 = vpack.c.b16 %v1864, %v1863
        %v1912 = vpack.c.b16 %v1866, %v1865
        %v1913 = vpack.c.b16 %v1868, %v1867
        %v1914 = vpack.c.b16 %v1870, %v1869
        %v1915 = vpack.c.b16 %v1872, %v1871
        %v1916 = vpack.c.b16 %v1874, %v1873
        %v1917 = vpack.c.b16 %v1876, %v1875
        %v1918 = vpack.c.b16 %v1878, %v1877
        %v1919 = vpack.c.b16 %v1880, %v1879
        %v1920 = vpack.c.b16 %v1882, %v1881
        %v1921 = vpack.c.b16 %v1884, %v1883
        %v1922 = vpack.c.b16 %v1886, %v1885
        %v1923 = vpack.c.b16 %v1888, %v1887
        %v1924 = vpack.c.b16 %v1890, %v1889
        %v1925 = vpack.c.b16 %v1892, %v1891
        %v1926 = vpack.c.b16 %v1894, %v1893
        %v1927 = vpack.c.b16 %v1896, %v1895
        %v1928 = vpack.c.b16 %v1898, %v1897
        %v1929 = vpack.c.b16 %v1900, %v1899
        %v1930 = vpack.c.b16 %v1902, %v1901
        %v1931 = vpack.c.b16 %v1904, %v1903
        %v1932 = vpack.c.b16 %v1906, %v1905
        %v1933 = vpack.c.b16 %v1908, %v1907
        %v1934 = vpack.c.b16 %v1910, %v1909
        %1959 = vmatpush.bf16.msra.mxu0 %v1918
        %1960 = vmatpush.bf16.msra.mxu0 %v1917
        %1961 = vmatpush.bf16.msra.mxu0 %v1916
        %1962 = vmatpush.bf16.msra.mxu0 %v1915
        %1963 = vmatpush.bf16.msra.mxu0 %v1914
        %1964 = vmatpush.bf16.msra.mxu0 %v1913
        %1965 = vmatpush.bf16.msra.mxu0 %v1912
        %1966 = vmatpush.bf16.msra.mxu0 %v1911
        %1967 = vmatmul.bf16.gmra.mxu0 %v488
        %v1968 = vpop.f32.mrf.mxu0
        %v1969 = vadd.f32 %v1736, %v1968
        %v1970 = vpop.f32.mrf.mxu0
        %v1971 = vadd.f32 %v1738, %v1970
        %1972 = vmatmul.bf16.gmra.mxu0 %v489
        %v1973 = vpop.f32.mrf.mxu0
        %v1974 = vadd.f32 %v1741, %v1973
        %v1975 = vpop.f32.mrf.mxu0
        %v1976 = vadd.f32 %v1743, %v1975
        %1977 = vmatmul.bf16.gmra.mxu0 %v490
        %v1978 = vpop.f32.mrf.mxu0
        %v1979 = vadd.f32 %v1746, %v1978
        %v1980 = vpop.f32.mrf.mxu0
        %v1981 = vadd.f32 %v1748, %v1980
        %1982 = vmatmul.bf16.gmra.mxu0 %v491
        %v1983 = vpop.f32.mrf.mxu0
        %v1984 = vadd.f32 %v1751, %v1983
        %v1985 = vpop.f32.mrf.mxu0
        %v1986 = vadd.f32 %v1753, %v1985
        %1987 = vmatmul.bf16.gmra.mxu0 %v492
        %v1988 = vpop.f32.mrf.mxu0
        %v1989 = vadd.f32 %v1756, %v1988
        %v1990 = vpop.f32.mrf.mxu0
        %v1991 = vadd.f32 %v1758, %v1990
        %1992 = vmatmul.bf16.gmra.mxu0 %v493
        %v1993 = vpop.f32.mrf.mxu0
        %v1994 = vadd.f32 %v1761, %v1993
        %v1995 = vpop.f32.mrf.mxu0
        %v1996 = vadd.f32 %v1763, %v1995
        %1997 = vmatmul.bf16.gmra.mxu0 %v494
        %v1998 = vpop.f32.mrf.mxu0
        %v1999 = vadd.f32 %v1766, %v1998
        %v2000 = vpop.f32.mrf.mxu0
        %v2001 = vadd.f32 %v1768, %v2000
        %2002 = vmatmul.bf16.gmra.mxu0 %v495
        %v2003 = vpop.f32.mrf.mxu0
        %v2004 = vadd.f32 %v1771, %v2003
        %v2005 = vpop.f32.mrf.mxu0
        %v2006 = vadd.f32 %v1773, %v2005
        %2007 = vmatmul.bf16.gmra.mxu0 %v496
        %v2008 = vpop.f32.mrf.mxu0
        %v2009 = vadd.f32 %v1776, %v2008
        %v2010 = vpop.f32.mrf.mxu0
        %v2011 = vadd.f32 %v1778, %v2010
        %2012 = vmatmul.bf16.gmra.mxu0 %v497
        %v2013 = vpop.f32.mrf.mxu0
        %v2014 = vadd.f32 %v1781, %v2013
        %v2015 = vpop.f32.mrf.mxu0
        %v2016 = vadd.f32 %v1783, %v2015
        %2017 = vmatmul.bf16.gmra.mxu0 %v498
        %v2018 = vpop.f32.mrf.mxu0
        %v2019 = vadd.f32 %v1786, %v2018
        %v2020 = vpop.f32.mrf.mxu0
        %v2021 = vadd.f32 %v1788, %v2020
        %2022 = vmatmul.bf16.gmra.mxu0 %v499
        %v2023 = vpop.f32.mrf.mxu0
        %v2024 = vadd.f32 %v1791, %v2023
        %v2025 = vpop.f32.mrf.mxu0
        %v2026 = vadd.f32 %v1793, %v2025
        %2027 = vmatmul.bf16.gmra.mxu0 %v500
        %v2028 = vpop.f32.mrf.mxu0
        %v2029 = vadd.f32 %v1796, %v2028
        %v2030 = vpop.f32.mrf.mxu0
        %v2031 = vadd.f32 %v1798, %v2030
        %2032 = vmatmul.bf16.gmra.mxu0 %v501
        %v2033 = vpop.f32.mrf.mxu0
        %v2034 = vadd.f32 %v1801, %v2033
        %v2035 = vpop.f32.mrf.mxu0
        %v2036 = vadd.f32 %v1803, %v2035
        %2037 = vmatmul.bf16.gmra.mxu0 %v502
        %v2038 = vpop.f32.mrf.mxu0
        %v2039 = vadd.f32 %v1806, %v2038
        %v2040 = vpop.f32.mrf.mxu0
        %v2041 = vadd.f32 %v1808, %v2040
        %2042 = vmatmul.bf16.gmra.mxu0 %v503
        %v2043 = vpop.f32.mrf.mxu0
        %v2044 = vadd.f32 %v1811, %v2043
        %v2045 = vpop.f32.mrf.mxu0
        %v2046 = vadd.f32 %v1813, %v2045
        %2047 = vdwg.mxu0
        %2048 = vmatpush.bf16.msra.mxu0 %v1926
        %2049 = vmatpush.bf16.msra.mxu0 %v1925
        %2050 = vmatpush.bf16.msra.mxu0 %v1924
        %2051 = vmatpush.bf16.msra.mxu0 %v1923
        %2052 = vmatpush.bf16.msra.mxu0 %v1922
        %2053 = vmatpush.bf16.msra.mxu0 %v1921
        %2054 = vmatpush.bf16.msra.mxu0 %v1920
        %2055 = vmatpush.bf16.msra.mxu0 %v1919
        %2056 = vmatmul.bf16.gmra.mxu0 %v580
        %v2057 = vpop.f32.mrf.mxu0
        %v2058 = vadd.f32 %v1969, %v2057
        %v2059 = vpop.f32.mrf.mxu0
        %v2060 = vadd.f32 %v1971, %v2059
        %2061 = vmatmul.bf16.gmra.mxu0 %v592
        %v2062 = vpop.f32.mrf.mxu0
        %v2063 = vadd.f32 %v1974, %v2062
        %v2064 = vpop.f32.mrf.mxu0
        %v2065 = vadd.f32 %v1976, %v2064
        %2066 = vmatmul.bf16.gmra.mxu0 %v604
        %v2067 = vpop.f32.mrf.mxu0
        %v2068 = vadd.f32 %v1979, %v2067
        %v2069 = vpop.f32.mrf.mxu0
        %v2070 = vadd.f32 %v1981, %v2069
        %2071 = vmatmul.bf16.gmra.mxu0 %v616
        %v2072 = vpop.f32.mrf.mxu0
        %v2073 = vadd.f32 %v1984, %v2072
        %v2074 = vpop.f32.mrf.mxu0
        %v2075 = vadd.f32 %v1986, %v2074
        %2076 = vmatmul.bf16.gmra.mxu0 %v628
        %v2077 = vpop.f32.mrf.mxu0
        %v2078 = vadd.f32 %v1989, %v2077
        %v2079 = vpop.f32.mrf.mxu0
        %v2080 = vadd.f32 %v1991, %v2079
        %2081 = vmatmul.bf16.gmra.mxu0 %v640
        %v2082 = vpop.f32.mrf.mxu0
        %v2083 = vadd.f32 %v1994, %v2082
        %v2084 = vpop.f32.mrf.mxu0
        %v2085 = vadd.f32 %v1996, %v2084
        %2086 = vmatmul.bf16.gmra.mxu0 %v652
        %v2087 = vpop.f32.mrf.mxu0
        %v2088 = vadd.f32 %v1999, %v2087
        %v2089 = vpop.f32.mrf.mxu0
        %v2090 = vadd.f32 %v2001, %v2089
        %2091 = vmatmul.bf16.gmra.mxu0 %v664
        %v2092 = vpop.f32.mrf.mxu0
        %v2093 = vadd.f32 %v2004, %v2092
        %v2094 = vpop.f32.mrf.mxu0
        %v2095 = vadd.f32 %v2006, %v2094
        %2096 = vmatmul.bf16.gmra.mxu0 %v676
        %v2097 = vpop.f32.mrf.mxu0
        %v2098 = vadd.f32 %v2009, %v2097
        %v2099 = vpop.f32.mrf.mxu0
        %v2100 = vadd.f32 %v2011, %v2099
        %2101 = vmatmul.bf16.gmra.mxu0 %v688
        %v2102 = vpop.f32.mrf.mxu0
        %v2103 = vadd.f32 %v2014, %v2102
        %v2104 = vpop.f32.mrf.mxu0
        %v2105 = vadd.f32 %v2016, %v2104
        %2106 = vmatmul.bf16.gmra.mxu0 %v700
        %v2107 = vpop.f32.mrf.mxu0
        %v2108 = vadd.f32 %v2019, %v2107
        %v2109 = vpop.f32.mrf.mxu0
        %v2110 = vadd.f32 %v2021, %v2109
        %2111 = vmatmul.bf16.gmra.mxu0 %v712
        %v2112 = vpop.f32.mrf.mxu0
        %v2113 = vadd.f32 %v2024, %v2112
        %v2114 = vpop.f32.mrf.mxu0
        %v2115 = vadd.f32 %v2026, %v2114
        %2116 = vmatmul.bf16.gmra.mxu0 %v724
        %v2117 = vpop.f32.mrf.mxu0
        %v2118 = vadd.f32 %v2029, %v2117
        %v2119 = vpop.f32.mrf.mxu0
        %v2120 = vadd.f32 %v2031, %v2119
        %2121 = vmatmul.bf16.gmra.mxu0 %v736
        %v2122 = vpop.f32.mrf.mxu0
        %v2123 = vadd.f32 %v2034, %v2122
        %v2124 = vpop.f32.mrf.mxu0
        %v2125 = vadd.f32 %v2036, %v2124
        %2126 = vmatmul.bf16.gmra.mxu0 %v748
        %v2127 = vpop.f32.mrf.mxu0
        %v2128 = vadd.f32 %v2039, %v2127
        %v2129 = vpop.f32.mrf.mxu0
        %v2130 = vadd.f32 %v2041, %v2129
        %2131 = vmatmul.bf16.gmra.mxu0 %v760
        %v2132 = vpop.f32.mrf.mxu0
        %v2133 = vadd.f32 %v2044, %v2132
        %v2134 = vpop.f32.mrf.mxu0
        %v2135 = vadd.f32 %v2046, %v2134
        %2136 = vdwg.mxu0
        %2137 = vmatpush.bf16.msra.mxu0 %v1934
        %2138 = vmatpush.bf16.msra.mxu0 %v1933
        %2139 = vmatpush.bf16.msra.mxu0 %v1932
        %2140 = vmatpush.bf16.msra.mxu0 %v1931
        %2141 = vmatpush.bf16.msra.mxu0 %v1930
        %2142 = vmatpush.bf16.msra.mxu0 %v1929
        %2143 = vmatpush.bf16.msra.mxu0 %v1928
        %2144 = vmatpush.bf16.msra.mxu0 %v1927
        %2145 = vmatmul.bf16.gmra.mxu0 %v780
        %v2146 = vpop.f32.mrf.mxu0
        %v2147 = vadd.f32 %v2058, %v2146
        %v2148 = vpop.f32.mrf.mxu0
        %v2149 = vadd.f32 %v2060, %v2148
        %2150 = vmatmul.bf16.gmra.mxu0 %v783
        %v2151 = vpop.f32.mrf.mxu0
        %v2152 = vadd.f32 %v2063, %v2151
        %v2153 = vpop.f32.mrf.mxu0
        %v2154 = vadd.f32 %v2065, %v2153
        %2155 = vmatmul.bf16.gmra.mxu0 %v786
        %v2156 = vpop.f32.mrf.mxu0
        %v2157 = vadd.f32 %v2068, %v2156
        %v2158 = vpop.f32.mrf.mxu0
        %v2159 = vadd.f32 %v2070, %v2158
        %2160 = vmatmul.bf16.gmra.mxu0 %v789
        %v2161 = vpop.f32.mrf.mxu0
        %v2162 = vadd.f32 %v2073, %v2161
        %v2163 = vpop.f32.mrf.mxu0
        %v2164 = vadd.f32 %v2075, %v2163
        %2165 = vmatmul.bf16.gmra.mxu0 %v792
        %v2166 = vpop.f32.mrf.mxu0
        %v2167 = vadd.f32 %v2078, %v2166
        %v2168 = vpop.f32.mrf.mxu0
        %v2169 = vadd.f32 %v2080, %v2168
        %2170 = vmatmul.bf16.gmra.mxu0 %v795
        %v2171 = vpop.f32.mrf.mxu0
        %v2172 = vadd.f32 %v2083, %v2171
        %v2173 = vpop.f32.mrf.mxu0
        %v2174 = vadd.f32 %v2085, %v2173
        %2175 = vmatmul.bf16.gmra.mxu0 %v798
        %v2176 = vpop.f32.mrf.mxu0
        %v2177 = vadd.f32 %v2088, %v2176
        %v2178 = vpop.f32.mrf.mxu0
        %v2179 = vadd.f32 %v2090, %v2178
        %2180 = vmatmul.bf16.gmra.mxu0 %v801
        %v2181 = vpop.f32.mrf.mxu0
        %v2182 = vadd.f32 %v2093, %v2181
        %v2183 = vpop.f32.mrf.mxu0
        %v2184 = vadd.f32 %v2095, %v2183
        %2185 = vmatmul.bf16.gmra.mxu0 %v804
        %v2186 = vpop.f32.mrf.mxu0
        %v2187 = vadd.f32 %v2098, %v2186
        %v2188 = vpop.f32.mrf.mxu0
        %v2189 = vadd.f32 %v2100, %v2188
        %2190 = vmatmul.bf16.gmra.mxu0 %v807
        %v2191 = vpop.f32.mrf.mxu0
        %v2192 = vadd.f32 %v2103, %v2191
        %v2193 = vpop.f32.mrf.mxu0
        %v2194 = vadd.f32 %v2105, %v2193
        %2195 = vmatmul.bf16.gmra.mxu0 %v810
        %v2196 = vpop.f32.mrf.mxu0
        %v2197 = vadd.f32 %v2108, %v2196
        %v2198 = vpop.f32.mrf.mxu0
        %v2199 = vadd.f32 %v2110, %v2198
        %2200 = vmatmul.bf16.gmra.mxu0 %v813
        %v2201 = vpop.f32.mrf.mxu0
        %v2202 = vadd.f32 %v2113, %v2201
        %v2203 = vpop.f32.mrf.mxu0
        %v2204 = vadd.f32 %v2115, %v2203
        %2205 = vmatmul.bf16.gmra.mxu0 %v816
        %v2206 = vpop.f32.mrf.mxu0
        %v2207 = vadd.f32 %v2118, %v2206
        %v2208 = vpop.f32.mrf.mxu0
        %v2209 = vadd.f32 %v2120, %v2208
        %2210 = vmatmul.bf16.gmra.mxu0 %v819
        %v2211 = vpop.f32.mrf.mxu0
        %v2212 = vadd.f32 %v2123, %v2211
        %v2213 = vpop.f32.mrf.mxu0
        %v2214 = vadd.f32 %v2125, %v2213
        %2215 = vmatmul.bf16.gmra.mxu0 %v822
        %v2216 = vpop.f32.mrf.mxu0
        %v2217 = vadd.f32 %v2128, %v2216
        %v2218 = vpop.f32.mrf.mxu0
        %v2219 = vadd.f32 %v2130, %v2218
        %2220 = vmatmul.bf16.gmra.mxu0 %v825
        %v2221 = vpop.f32.mrf.mxu0
        %v2222 = vadd.f32 %v2133, %v2221
        %v2223 = vpop.f32.mrf.mxu0
        %v2224 = vadd.f32 %v2135, %v2223
        %2225 = vdwg.mxu0
        %s2226 = scalar_lea.vmem %s374, 24
        %v2227 = vld [vmem:[%s2226] sm:$0xf]
        %v2228 = vld [vmem:[%s2226 + $0x4] sm:$0xf]
        %v2229 = vld [vmem:[%s2226 + $0x8] sm:$0x1]
        %v2230 = vld [vmem:[%s2226 + $0xc] sm:$0xf]
        %v2231 = vld [vmem:[%s2226 + $0x10] sm:$0xf]
        %v2232 = vld [vmem:[%s2226 + $0x14] sm:$0x1]
        %v2233 = vld [vmem:[%s2226 + $0x18] sm:$0xf]
        %v2234 = vld [vmem:[%s2226 + $0x1c] sm:$0xf]
        %v2235 = vld [vmem:[%s2226 + $0x20] sm:$0x1]
        %v2236 = vld [vmem:[%s2226 + $0x24] sm:$0xf]
        %v2237 = vld [vmem:[%s2226 + $0x28] sm:$0xf]
        %v2238 = vld [vmem:[%s2226 + $0x2c] sm:$0x1]
        %v2239 = vld [vmem:[%s2226 + $0x30] sm:$0xf]
        %v2240 = vld [vmem:[%s2226 + $0x34] sm:$0xf]
        %v2241 = vld [vmem:[%s2226 + $0x38] sm:$0x1]
        %v2242 = vld [vmem:[%s2226 + $0x3c] sm:$0xf]
        %v2243 = vld [vmem:[%s2226 + $0x40] sm:$0xf]
        %v2244 = vld [vmem:[%s2226 + $0x44] sm:$0x1]
        %v2245 = vld [vmem:[%s2226 + $0x48] sm:$0xf]
        %v2246 = vld [vmem:[%s2226 + $0x4c] sm:$0xf]
        %v2247 = vld [vmem:[%s2226 + $0x50] sm:$0x1]
        %v2248 = vld [vmem:[%s2226 + $0x54] sm:$0xf]
        %v2249 = vld [vmem:[%s2226 + $0x58] sm:$0xf]
        %v2250 = vld [vmem:[%s2226 + $0x5c] sm:$0x1]
        %v2251 = vld [vmem:[%s2226 + $0x60] sm:$0xf]
        %v2252 = vld [vmem:[%s2226 + $0x64] sm:$0xf]
        %v2253 = vld [vmem:[%s2226 + $0x68] sm:$0x1]
        %v2254 = vld [vmem:[%s2226 + $0x6c] sm:$0xf]
        %v2255 = vld [vmem:[%s2226 + $0x70] sm:$0xf]
        %v2256 = vld [vmem:[%s2226 + $0x74] sm:$0x1]
        %v2257 = vld [vmem:[%s2226 + $0x78] sm:$0xf]
        %v2258 = vld [vmem:[%s2226 + $0x7c] sm:$0xf]
        %v2259 = vld [vmem:[%s2226 + $0x80] sm:$0x1]
        %v2260 = vld [vmem:[%s2226 + $0x84] sm:$0xf]
        %v2261 = vld [vmem:[%s2226 + $0x88] sm:$0xf]
        %v2262 = vld [vmem:[%s2226 + $0x8c] sm:$0x1]
        %v2263 = vld [vmem:[%s2226 + $0x90] sm:$0xf]
        %v2264 = vld [vmem:[%s2226 + $0x94] sm:$0xf]
        %v2265 = vld [vmem:[%s2226 + $0x98] sm:$0x1]
        %v2266 = vld [vmem:[%s2226 + $0x9c] sm:$0xf]
        %v2267 = vld [vmem:[%s2226 + $0xa0] sm:$0xf]
        %v2268 = vld [vmem:[%s2226 + $0xa4] sm:$0x1]
        %v2269 = vld [vmem:[%s2226 + $0xa8] sm:$0xf]
        %v2270 = vld [vmem:[%s2226 + $0xac] sm:$0xf]
        %v2271 = vld [vmem:[%s2226 + $0xb0] sm:$0x1]
        %v2272 = vld [vmem:[%s2226 + $0xb4] sm:$0xf]
        %v2273 = vld [vmem:[%s2226 + $0xb8] sm:$0xf]
        %v2274 = vld [vmem:[%s2226 + $0xbc] sm:$0x1]
        %v2307 = vunpack.c.l.b16 %v2227
        %v2308 = vunpack.c.l.b16 %v2228
        %v2309 = vunpack.c.l.b16 %v2230
        %v2310 = vunpack.c.l.b16 %v2231
        %v2311 = vunpack.c.l.b16 %v2233
        %v2312 = vunpack.c.l.b16 %v2234
        %v2313 = vunpack.c.l.b16 %v2236
        %v2314 = vunpack.c.l.b16 %v2237
        %v2315 = vunpack.c.l.b16 %v2239
        %v2316 = vunpack.c.l.b16 %v2240
        %v2317 = vunpack.c.l.b16 %v2242
        %v2318 = vunpack.c.l.b16 %v2243
        %v2319 = vunpack.c.l.b16 %v2245
        %v2320 = vunpack.c.l.b16 %v2246
        %v2321 = vunpack.c.l.b16 %v2248
        %v2322 = vunpack.c.l.b16 %v2249
        %v2323 = vunpack.c.l.b16 %v2251
        %v2324 = vunpack.c.l.b16 %v2252
        %v2325 = vunpack.c.l.b16 %v2254
        %v2326 = vunpack.c.l.b16 %v2255
        %v2327 = vunpack.c.l.b16 %v2257
        %v2328 = vunpack.c.l.b16 %v2258
        %v2329 = vunpack.c.l.b16 %v2260
        %v2330 = vunpack.c.l.b16 %v2261
        %v2331 = vunpack.c.l.b16 %v2263
        %v2332 = vunpack.c.l.b16 %v2264
        %v2333 = vunpack.c.l.b16 %v2266
        %v2334 = vunpack.c.l.b16 %v2267
        %v2335 = vunpack.c.l.b16 %v2269
        %v2336 = vunpack.c.l.b16 %v2270
        %v2337 = vunpack.c.l.b16 %v2272
        %v2338 = vunpack.c.l.b16 %v2273
        %v2339 = vpack.c.b16 %v2308, %v2307
        %v2340 = vpack.c.b16 %v2310, %v2309
        %v2341 = vpack.c.b16 %v2312, %v2311
        %v2342 = vpack.c.b16 %v2314, %v2313
        %v2343 = vpack.c.b16 %v2316, %v2315
        %v2344 = vpack.c.b16 %v2318, %v2317
        %v2345 = vpack.c.b16 %v2320, %v2319
        %v2346 = vpack.c.b16 %v2322, %v2321
        %v2347 = vpack.c.b16 %v2324, %v2323
        %v2348 = vpack.c.b16 %v2326, %v2325
        %v2349 = vpack.c.b16 %v2328, %v2327
        %v2350 = vpack.c.b16 %v2330, %v2329
        %v2351 = vpack.c.b16 %v2332, %v2331
        %v2352 = vpack.c.b16 %v2334, %v2333
        %v2353 = vpack.c.b16 %v2336, %v2335
        %v2354 = vpack.c.b16 %v2338, %v2337
        %v2387 = vunpack.c.l.b16 %v2229
        %v2388 = vunpack.c.l.b16 %v2232
        %v2389 = vunpack.c.l.b16 %v2235
        %v2390 = vunpack.c.l.b16 %v2238
        %v2391 = vunpack.c.l.b16 %v2241
        %v2392 = vunpack.c.l.b16 %v2244
        %v2393 = vunpack.c.l.b16 %v2247
        %v2394 = vunpack.c.l.b16 %v2250
        %v2395 = vunpack.c.l.b16 %v2253
        %v2396 = vunpack.c.l.b16 %v2256
        %v2397 = vunpack.c.l.b16 %v2259
        %v2398 = vunpack.c.l.b16 %v2262
        %v2399 = vunpack.c.l.b16 %v2265
        %v2400 = vunpack.c.l.b16 %v2268
        %v2401 = vunpack.c.l.b16 %v2271
        %v2402 = vunpack.c.l.b16 %v2274
        %v2403 = vpack.c.b16 %v2387, %v2387
        %v2404 = vpack.c.b16 %v2388, %v2388
        %v2405 = vpack.c.b16 %v2389, %v2389
        %v2406 = vpack.c.b16 %v2390, %v2390
        %v2407 = vpack.c.b16 %v2391, %v2391
        %v2408 = vpack.c.b16 %v2392, %v2392
        %v2409 = vpack.c.b16 %v2393, %v2393
        %v2410 = vpack.c.b16 %v2394, %v2394
        %v2411 = vpack.c.b16 %v2395, %v2395
        %v2412 = vpack.c.b16 %v2396, %v2396
        %v2413 = vpack.c.b16 %v2397, %v2397
        %v2414 = vpack.c.b16 %v2398, %v2398
        %v2415 = vpack.c.b16 %v2399, %v2399
        %v2416 = vpack.c.b16 %v2400, %v2400
        %v2417 = vpack.c.b16 %v2401, %v2401
        %v2418 = vpack.c.b16 %v2402, %v2402
        %v2420 = vshrl.u32 %v2339, 16
        %v2422 = vshll.u32 %v2339, 16
        %v2424 = vrot.slane %v2422, 1
        %v2425 = vor.u32 %v2420, %v2424
        %v2427 = vshll.u32 %v2403, 16
        %v2429 = vrot.slane %v2427, 1
        %v2430 = vsel %vm568, %v2425, %v2429
        %v2432 = vshrl.u32 %v2340, 16
        %v2434 = vshll.u32 %v2340, 16
        %v2436 = vrot.slane %v2434, 1
        %v2437 = vor.u32 %v2432, %v2436
        %v2439 = vshll.u32 %v2404, 16
        %v2441 = vrot.slane %v2439, 1
        %v2442 = vsel %vm568, %v2437, %v2441
        %v2444 = vshrl.u32 %v2341, 16
        %v2446 = vshll.u32 %v2341, 16
        %v2448 = vrot.slane %v2446, 1
        %v2449 = vor.u32 %v2444, %v2448
        %v2451 = vshll.u32 %v2405, 16
        %v2453 = vrot.slane %v2451, 1
        %v2454 = vsel %vm568, %v2449, %v2453
        %v2456 = vshrl.u32 %v2342, 16
        %v2458 = vshll.u32 %v2342, 16
        %v2460 = vrot.slane %v2458, 1
        %v2461 = vor.u32 %v2456, %v2460
        %v2463 = vshll.u32 %v2406, 16
        %v2465 = vrot.slane %v2463, 1
        %v2466 = vsel %vm568, %v2461, %v2465
        %v2468 = vshrl.u32 %v2343, 16
        %v2470 = vshll.u32 %v2343, 16
        %v2472 = vrot.slane %v2470, 1
        %v2473 = vor.u32 %v2468, %v2472
        %v2475 = vshll.u32 %v2407, 16
        %v2477 = vrot.slane %v2475, 1
        %v2478 = vsel %vm568, %v2473, %v2477
        %v2480 = vshrl.u32 %v2344, 16
        %v2482 = vshll.u32 %v2344, 16
        %v2484 = vrot.slane %v2482, 1
        %v2485 = vor.u32 %v2480, %v2484
        %v2487 = vshll.u32 %v2408, 16
        %v2489 = vrot.slane %v2487, 1
        %v2490 = vsel %vm568, %v2485, %v2489
        %v2492 = vshrl.u32 %v2345, 16
        %v2494 = vshll.u32 %v2345, 16
        %v2496 = vrot.slane %v2494, 1
        %v2497 = vor.u32 %v2492, %v2496
        %v2499 = vshll.u32 %v2409, 16
        %v2501 = vrot.slane %v2499, 1
        %v2502 = vsel %vm568, %v2497, %v2501
        %v2504 = vshrl.u32 %v2346, 16
        %v2506 = vshll.u32 %v2346, 16
        %v2508 = vrot.slane %v2506, 1
        %v2509 = vor.u32 %v2504, %v2508
        %v2511 = vshll.u32 %v2410, 16
        %v2513 = vrot.slane %v2511, 1
        %v2514 = vsel %vm568, %v2509, %v2513
        %v2516 = vshrl.u32 %v2347, 16
        %v2518 = vshll.u32 %v2347, 16
        %v2520 = vrot.slane %v2518, 1
        %v2521 = vor.u32 %v2516, %v2520
        %v2523 = vshll.u32 %v2411, 16
        %v2525 = vrot.slane %v2523, 1
        %v2526 = vsel %vm568, %v2521, %v2525
        %v2528 = vshrl.u32 %v2348, 16
        %v2530 = vshll.u32 %v2348, 16
        %v2532 = vrot.slane %v2530, 1
        %v2533 = vor.u32 %v2528, %v2532
        %v2535 = vshll.u32 %v2412, 16
        %v2537 = vrot.slane %v2535, 1
        %v2538 = vsel %vm568, %v2533, %v2537
        %v2540 = vshrl.u32 %v2349, 16
        %v2542 = vshll.u32 %v2349, 16
        %v2544 = vrot.slane %v2542, 1
        %v2545 = vor.u32 %v2540, %v2544
        %v2547 = vshll.u32 %v2413, 16
        %v2549 = vrot.slane %v2547, 1
        %v2550 = vsel %vm568, %v2545, %v2549
        %v2552 = vshrl.u32 %v2350, 16
        %v2554 = vshll.u32 %v2350, 16
        %v2556 = vrot.slane %v2554, 1
        %v2557 = vor.u32 %v2552, %v2556
        %v2559 = vshll.u32 %v2414, 16
        %v2561 = vrot.slane %v2559, 1
        %v2562 = vsel %vm568, %v2557, %v2561
        %v2564 = vshrl.u32 %v2351, 16
        %v2566 = vshll.u32 %v2351, 16
        %v2568 = vrot.slane %v2566, 1
        %v2569 = vor.u32 %v2564, %v2568
        %v2571 = vshll.u32 %v2415, 16
        %v2573 = vrot.slane %v2571, 1
        %v2574 = vsel %vm568, %v2569, %v2573
        %v2576 = vshrl.u32 %v2352, 16
        %v2578 = vshll.u32 %v2352, 16
        %v2580 = vrot.slane %v2578, 1
        %v2581 = vor.u32 %v2576, %v2580
        %v2583 = vshll.u32 %v2416, 16
        %v2585 = vrot.slane %v2583, 1
        %v2586 = vsel %vm568, %v2581, %v2585
        %v2588 = vshrl.u32 %v2353, 16
        %v2590 = vshll.u32 %v2353, 16
        %v2592 = vrot.slane %v2590, 1
        %v2593 = vor.u32 %v2588, %v2592
        %v2595 = vshll.u32 %v2417, 16
        %v2597 = vrot.slane %v2595, 1
        %v2598 = vsel %vm568, %v2593, %v2597
        %v2600 = vshrl.u32 %v2354, 16
        %v2602 = vshll.u32 %v2354, 16
        %v2604 = vrot.slane %v2602, 1
        %v2605 = vor.u32 %v2600, %v2604
        %v2607 = vshll.u32 %v2418, 16
        %v2609 = vrot.slane %v2607, 1
        %v2610 = vsel %vm568, %v2605, %v2609
        %v2627 = vrot.slane %v2339, 1
        %v2628 = vrot.slane %v2403, 1
        %v2629 = vsel %vm777, %v2627, %v2628
        %v2630 = vrot.slane %v2340, 1
        %v2631 = vrot.slane %v2404, 1
        %v2632 = vsel %vm777, %v2630, %v2631
        %v2633 = vrot.slane %v2341, 1
        %v2634 = vrot.slane %v2405, 1
        %v2635 = vsel %vm777, %v2633, %v2634
        %v2636 = vrot.slane %v2342, 1
        %v2637 = vrot.slane %v2406, 1
        %v2638 = vsel %vm777, %v2636, %v2637
        %v2639 = vrot.slane %v2343, 1
        %v2640 = vrot.slane %v2407, 1
        %v2641 = vsel %vm777, %v2639, %v2640
        %v2642 = vrot.slane %v2344, 1
        %v2643 = vrot.slane %v2408, 1
        %v2644 = vsel %vm777, %v2642, %v2643
        %v2645 = vrot.slane %v2345, 1
        %v2646 = vrot.slane %v2409, 1
        %v2647 = vsel %vm777, %v2645, %v2646
        %v2648 = vrot.slane %v2346, 1
        %v2649 = vrot.slane %v2410, 1
        %v2650 = vsel %vm777, %v2648, %v2649
        %v2651 = vrot.slane %v2347, 1
        %v2652 = vrot.slane %v2411, 1
        %v2653 = vsel %vm777, %v2651, %v2652
        %v2654 = vrot.slane %v2348, 1
        %v2655 = vrot.slane %v2412, 1
        %v2656 = vsel %vm777, %v2654, %v2655
        %v2657 = vrot.slane %v2349, 1
        %v2658 = vrot.slane %v2413, 1
        %v2659 = vsel %vm777, %v2657, %v2658
        %v2660 = vrot.slane %v2350, 1
        %v2661 = vrot.slane %v2414, 1
        %v2662 = vsel %vm777, %v2660, %v2661
        %v2663 = vrot.slane %v2351, 1
        %v2664 = vrot.slane %v2415, 1
        %v2665 = vsel %vm777, %v2663, %v2664
        %v2666 = vrot.slane %v2352, 1
        %v2667 = vrot.slane %v2416, 1
        %v2668 = vsel %vm777, %v2666, %v2667
        %v2669 = vrot.slane %v2353, 1
        %v2670 = vrot.slane %v2417, 1
        %v2671 = vsel %vm777, %v2669, %v2670
        %v2672 = vrot.slane %v2354, 1
        %v2673 = vrot.slane %v2418, 1
        %v2674 = vsel %vm777, %v2672, %v2673
        %s2691 = scalar_lea.vmem %s1, 384
        %v2692 = vld [vmem:[%s2691] sm:$0xf]
        %v2693 = vld [vmem:[%s2691 + $0x4] sm:$0xf]
        %v2694 = vld [vmem:[%s2691 + $0x8] sm:$0xf]
        %v2695 = vld [vmem:[%s2691 + $0xc] sm:$0xf]
        %v2696 = vld [vmem:[%s2691 + $0x10] sm:$0xf]
        %v2697 = vld [vmem:[%s2691 + $0x14] sm:$0xf]
        %v2698 = vld [vmem:[%s2691 + $0x18] sm:$0xf]
        %v2699 = vld [vmem:[%s2691 + $0x1c] sm:$0xf]
        %v2700 = vld [vmem:[%s2691 + $0x20] sm:$0xf]
        %v2701 = vld [vmem:[%s2691 + $0x24] sm:$0xf]
        %v2702 = vld [vmem:[%s2691 + $0x28] sm:$0xf]
        %v2703 = vld [vmem:[%s2691 + $0x2c] sm:$0xf]
        %v2704 = vld [vmem:[%s2691 + $0x30] sm:$0xf]
        %v2705 = vld [vmem:[%s2691 + $0x34] sm:$0xf]
        %v2706 = vld [vmem:[%s2691 + $0x38] sm:$0xf]
        %v2707 = vld [vmem:[%s2691 + $0x3c] sm:$0xf]
        %v2708 = vld [vmem:[%s2691 + $0x40] sm:$0xf]
        %v2709 = vld [vmem:[%s2691 + $0x44] sm:$0xf]
        %v2710 = vld [vmem:[%s2691 + $0x48] sm:$0xf]
        %v2711 = vld [vmem:[%s2691 + $0x4c] sm:$0xf]
        %v2712 = vld [vmem:[%s2691 + $0x50] sm:$0xf]
        %v2713 = vld [vmem:[%s2691 + $0x54] sm:$0xf]
        %v2714 = vld [vmem:[%s2691 + $0x58] sm:$0xf]
        %v2715 = vld [vmem:[%s2691 + $0x5c] sm:$0xf]
        %v2716 = vld [vmem:[%s2691 + $0x60] sm:$0xf]
        %v2717 = vld [vmem:[%s2691 + $0x64] sm:$0xf]
        %v2718 = vld [vmem:[%s2691 + $0x68] sm:$0xf]
        %v2719 = vld [vmem:[%s2691 + $0x6c] sm:$0xf]
        %v2720 = vld [vmem:[%s2691 + $0x70] sm:$0xf]
        %v2721 = vld [vmem:[%s2691 + $0x74] sm:$0xf]
        %v2722 = vld [vmem:[%s2691 + $0x78] sm:$0xf]
        %v2723 = vld [vmem:[%s2691 + $0x7c] sm:$0xf]
        %v2724 = vld [vmem:[%s2691 + $0x80] sm:$0xf]
        %v2725 = vld [vmem:[%s2691 + $0x84] sm:$0xf]
        %v2726 = vld [vmem:[%s2691 + $0x88] sm:$0xf]
        %v2727 = vld [vmem:[%s2691 + $0x8c] sm:$0xf]
        %v2728 = vld [vmem:[%s2691 + $0x90] sm:$0xf]
        %v2729 = vld [vmem:[%s2691 + $0x94] sm:$0xf]
        %v2730 = vld [vmem:[%s2691 + $0x98] sm:$0xf]
        %v2731 = vld [vmem:[%s2691 + $0x9c] sm:$0xf]
        %v2732 = vld [vmem:[%s2691 + $0xa0] sm:$0xf]
        %v2733 = vld [vmem:[%s2691 + $0xa4] sm:$0xf]
        %v2734 = vld [vmem:[%s2691 + $0xa8] sm:$0xf]
        %v2735 = vld [vmem:[%s2691 + $0xac] sm:$0xf]
        %v2736 = vld [vmem:[%s2691 + $0xb0] sm:$0xf]
        %v2737 = vld [vmem:[%s2691 + $0xb4] sm:$0xf]
        %v2738 = vld [vmem:[%s2691 + $0xb8] sm:$0xf]
        %v2739 = vld [vmem:[%s2691 + $0xbc] sm:$0xf]
        %v2788 = vunpack.c.l.b16 %v2692
        %v2789 = vunpack.c.l.b16 %v2693
        %v2790 = vunpack.c.l.b16 %v2694
        %v2791 = vunpack.c.l.b16 %v2695
        %v2792 = vunpack.c.l.b16 %v2696
        %v2793 = vunpack.c.l.b16 %v2697
        %v2794 = vunpack.c.l.b16 %v2698
        %v2795 = vunpack.c.l.b16 %v2699
        %v2796 = vunpack.c.l.b16 %v2700
        %v2797 = vunpack.c.l.b16 %v2701
        %v2798 = vunpack.c.l.b16 %v2702
        %v2799 = vunpack.c.l.b16 %v2703
        %v2800 = vunpack.c.l.b16 %v2704
        %v2801 = vunpack.c.l.b16 %v2705
        %v2802 = vunpack.c.l.b16 %v2706
        %v2803 = vunpack.c.l.b16 %v2707
        %v2804 = vunpack.c.l.b16 %v2708
        %v2805 = vunpack.c.l.b16 %v2709
        %v2806 = vunpack.c.l.b16 %v2710
        %v2807 = vunpack.c.l.b16 %v2711
        %v2808 = vunpack.c.l.b16 %v2712
        %v2809 = vunpack.c.l.b16 %v2713
        %v2810 = vunpack.c.l.b16 %v2714
        %v2811 = vunpack.c.l.b16 %v2715
        %v2812 = vunpack.c.l.b16 %v2716
        %v2813 = vunpack.c.l.b16 %v2717
        %v2814 = vunpack.c.l.b16 %v2718
        %v2815 = vunpack.c.l.b16 %v2719
        %v2816 = vunpack.c.l.b16 %v2720
        %v2817 = vunpack.c.l.b16 %v2721
        %v2818 = vunpack.c.l.b16 %v2722
        %v2819 = vunpack.c.l.b16 %v2723
        %v2820 = vunpack.c.l.b16 %v2724
        %v2821 = vunpack.c.l.b16 %v2725
        %v2822 = vunpack.c.l.b16 %v2726
        %v2823 = vunpack.c.l.b16 %v2727
        %v2824 = vunpack.c.l.b16 %v2728
        %v2825 = vunpack.c.l.b16 %v2729
        %v2826 = vunpack.c.l.b16 %v2730
        %v2827 = vunpack.c.l.b16 %v2731
        %v2828 = vunpack.c.l.b16 %v2732
        %v2829 = vunpack.c.l.b16 %v2733
        %v2830 = vunpack.c.l.b16 %v2734
        %v2831 = vunpack.c.l.b16 %v2735
        %v2832 = vunpack.c.l.b16 %v2736
        %v2833 = vunpack.c.l.b16 %v2737
        %v2834 = vunpack.c.l.b16 %v2738
        %v2835 = vunpack.c.l.b16 %v2739
        %v2836 = vpack.c.b16 %v2789, %v2788
        %v2837 = vpack.c.b16 %v2791, %v2790
        %v2838 = vpack.c.b16 %v2793, %v2792
        %v2839 = vpack.c.b16 %v2795, %v2794
        %v2840 = vpack.c.b16 %v2797, %v2796
        %v2841 = vpack.c.b16 %v2799, %v2798
        %v2842 = vpack.c.b16 %v2801, %v2800
        %v2843 = vpack.c.b16 %v2803, %v2802
        %v2844 = vpack.c.b16 %v2805, %v2804
        %v2845 = vpack.c.b16 %v2807, %v2806
        %v2846 = vpack.c.b16 %v2809, %v2808
        %v2847 = vpack.c.b16 %v2811, %v2810
        %v2848 = vpack.c.b16 %v2813, %v2812
        %v2849 = vpack.c.b16 %v2815, %v2814
        %v2850 = vpack.c.b16 %v2817, %v2816
        %v2851 = vpack.c.b16 %v2819, %v2818
        %v2852 = vpack.c.b16 %v2821, %v2820
        %v2853 = vpack.c.b16 %v2823, %v2822
        %v2854 = vpack.c.b16 %v2825, %v2824
        %v2855 = vpack.c.b16 %v2827, %v2826
        %v2856 = vpack.c.b16 %v2829, %v2828
        %v2857 = vpack.c.b16 %v2831, %v2830
        %v2858 = vpack.c.b16 %v2833, %v2832
        %v2859 = vpack.c.b16 %v2835, %v2834
        %2884 = vmatpush.bf16.msra.mxu0 %v2843
        %2885 = vmatpush.bf16.msra.mxu0 %v2842
        %2886 = vmatpush.bf16.msra.mxu0 %v2841
        %2887 = vmatpush.bf16.msra.mxu0 %v2840
        %2888 = vmatpush.bf16.msra.mxu0 %v2839
        %2889 = vmatpush.bf16.msra.mxu0 %v2838
        %2890 = vmatpush.bf16.msra.mxu0 %v2837
        %2891 = vmatpush.bf16.msra.mxu0 %v2836
        %2892 = vmatmul.bf16.gmra.mxu0 %v2339
        %v2893 = vpop.f32.mrf.mxu0
        %v2894 = vadd.f32 0.0, %v2893
        %v2895 = vpop.f32.mrf.mxu0
        %v2896 = vadd.f32 0.0, %v2895
        %2897 = vmatmul.bf16.gmra.mxu0 %v2340
        %v2898 = vpop.f32.mrf.mxu0
        %v2899 = vadd.f32 0.0, %v2898
        %v2900 = vpop.f32.mrf.mxu0
        %v2901 = vadd.f32 0.0, %v2900
        %2902 = vmatmul.bf16.gmra.mxu0 %v2341
        %v2903 = vpop.f32.mrf.mxu0
        %v2904 = vadd.f32 0.0, %v2903
        %v2905 = vpop.f32.mrf.mxu0
        %v2906 = vadd.f32 0.0, %v2905
        %2907 = vmatmul.bf16.gmra.mxu0 %v2342
        %v2908 = vpop.f32.mrf.mxu0
        %v2909 = vadd.f32 0.0, %v2908
        %v2910 = vpop.f32.mrf.mxu0
        %v2911 = vadd.f32 0.0, %v2910
        %2912 = vmatmul.bf16.gmra.mxu0 %v2343
        %v2913 = vpop.f32.mrf.mxu0
        %v2914 = vadd.f32 0.0, %v2913
        %v2915 = vpop.f32.mrf.mxu0
        %v2916 = vadd.f32 0.0, %v2915
        %2917 = vmatmul.bf16.gmra.mxu0 %v2344
        %v2918 = vpop.f32.mrf.mxu0
        %v2919 = vadd.f32 0.0, %v2918
        %v2920 = vpop.f32.mrf.mxu0
        %v2921 = vadd.f32 0.0, %v2920
        %2922 = vmatmul.bf16.gmra.mxu0 %v2345
        %v2923 = vpop.f32.mrf.mxu0
        %v2924 = vadd.f32 0.0, %v2923
        %v2925 = vpop.f32.mrf.mxu0
        %v2926 = vadd.f32 0.0, %v2925
        %2927 = vmatmul.bf16.gmra.mxu0 %v2346
        %v2928 = vpop.f32.mrf.mxu0
        %v2929 = vadd.f32 0.0, %v2928
        %v2930 = vpop.f32.mrf.mxu0
        %v2931 = vadd.f32 0.0, %v2930
        %2932 = vmatmul.bf16.gmra.mxu0 %v2347
        %v2933 = vpop.f32.mrf.mxu0
        %v2934 = vadd.f32 0.0, %v2933
        %v2935 = vpop.f32.mrf.mxu0
        %v2936 = vadd.f32 0.0, %v2935
        %2937 = vmatmul.bf16.gmra.mxu0 %v2348
        %v2938 = vpop.f32.mrf.mxu0
        %v2939 = vadd.f32 0.0, %v2938
        %v2940 = vpop.f32.mrf.mxu0
        %v2941 = vadd.f32 0.0, %v2940
        %2942 = vmatmul.bf16.gmra.mxu0 %v2349
        %v2943 = vpop.f32.mrf.mxu0
        %v2944 = vadd.f32 0.0, %v2943
        %v2945 = vpop.f32.mrf.mxu0
        %v2946 = vadd.f32 0.0, %v2945
        %2947 = vmatmul.bf16.gmra.mxu0 %v2350
        %v2948 = vpop.f32.mrf.mxu0
        %v2949 = vadd.f32 0.0, %v2948
        %v2950 = vpop.f32.mrf.mxu0
        %v2951 = vadd.f32 0.0, %v2950
        %2952 = vmatmul.bf16.gmra.mxu0 %v2351
        %v2953 = vpop.f32.mrf.mxu0
        %v2954 = vadd.f32 0.0, %v2953
        %v2955 = vpop.f32.mrf.mxu0
        %v2956 = vadd.f32 0.0, %v2955
        %2957 = vmatmul.bf16.gmra.mxu0 %v2352
        %v2958 = vpop.f32.mrf.mxu0
        %v2959 = vadd.f32 0.0, %v2958
        %v2960 = vpop.f32.mrf.mxu0
        %v2961 = vadd.f32 0.0, %v2960
        %2962 = vmatmul.bf16.gmra.mxu0 %v2353
        %v2963 = vpop.f32.mrf.mxu0
        %v2964 = vadd.f32 0.0, %v2963
        %v2965 = vpop.f32.mrf.mxu0
        %v2966 = vadd.f32 0.0, %v2965
        %2967 = vmatmul.bf16.gmra.mxu0 %v2354
        %v2968 = vpop.f32.mrf.mxu0
        %v2969 = vadd.f32 0.0, %v2968
        %v2970 = vpop.f32.mrf.mxu0
        %v2971 = vadd.f32 0.0, %v2970
        %2972 = vdwg.mxu0
        %2973 = vmatpush.bf16.msra.mxu0 %v2851
        %2974 = vmatpush.bf16.msra.mxu0 %v2850
        %2975 = vmatpush.bf16.msra.mxu0 %v2849
        %2976 = vmatpush.bf16.msra.mxu0 %v2848
        %2977 = vmatpush.bf16.msra.mxu0 %v2847
        %2978 = vmatpush.bf16.msra.mxu0 %v2846
        %2979 = vmatpush.bf16.msra.mxu0 %v2845
        %2980 = vmatpush.bf16.msra.mxu0 %v2844
        %2981 = vmatmul.bf16.gmra.mxu0 %v2430
        %v2982 = vpop.f32.mrf.mxu0
        %v2983 = vadd.f32 %v2894, %v2982
        %v2984 = vpop.f32.mrf.mxu0
        %v2985 = vadd.f32 %v2896, %v2984
        %2986 = vmatmul.bf16.gmra.mxu0 %v2442
        %v2987 = vpop.f32.mrf.mxu0
        %v2988 = vadd.f32 %v2899, %v2987
        %v2989 = vpop.f32.mrf.mxu0
        %v2990 = vadd.f32 %v2901, %v2989
        %2991 = vmatmul.bf16.gmra.mxu0 %v2454
        %v2992 = vpop.f32.mrf.mxu0
        %v2993 = vadd.f32 %v2904, %v2992
        %v2994 = vpop.f32.mrf.mxu0
        %v2995 = vadd.f32 %v2906, %v2994
        %2996 = vmatmul.bf16.gmra.mxu0 %v2466
        %v2997 = vpop.f32.mrf.mxu0
        %v2998 = vadd.f32 %v2909, %v2997
        %v2999 = vpop.f32.mrf.mxu0
        %v3000 = vadd.f32 %v2911, %v2999
        %3001 = vmatmul.bf16.gmra.mxu0 %v2478
        %v3002 = vpop.f32.mrf.mxu0
        %v3003 = vadd.f32 %v2914, %v3002
        %v3004 = vpop.f32.mrf.mxu0
        %v3005 = vadd.f32 %v2916, %v3004
        %3006 = vmatmul.bf16.gmra.mxu0 %v2490
        %v3007 = vpop.f32.mrf.mxu0
        %v3008 = vadd.f32 %v2919, %v3007
        %v3009 = vpop.f32.mrf.mxu0
        %v3010 = vadd.f32 %v2921, %v3009
        %3011 = vmatmul.bf16.gmra.mxu0 %v2502
        %v3012 = vpop.f32.mrf.mxu0
        %v3013 = vadd.f32 %v2924, %v3012
        %v3014 = vpop.f32.mrf.mxu0
        %v3015 = vadd.f32 %v2926, %v3014
        %3016 = vmatmul.bf16.gmra.mxu0 %v2514
        %v3017 = vpop.f32.mrf.mxu0
        %v3018 = vadd.f32 %v2929, %v3017
        %v3019 = vpop.f32.mrf.mxu0
        %v3020 = vadd.f32 %v2931, %v3019
        %3021 = vmatmul.bf16.gmra.mxu0 %v2526
        %v3022 = vpop.f32.mrf.mxu0
        %v3023 = vadd.f32 %v2934, %v3022
        %v3024 = vpop.f32.mrf.mxu0
        %v3025 = vadd.f32 %v2936, %v3024
        %3026 = vmatmul.bf16.gmra.mxu0 %v2538
        %v3027 = vpop.f32.mrf.mxu0
        %v3028 = vadd.f32 %v2939, %v3027
        %v3029 = vpop.f32.mrf.mxu0
        %v3030 = vadd.f32 %v2941, %v3029
        %3031 = vmatmul.bf16.gmra.mxu0 %v2550
        %v3032 = vpop.f32.mrf.mxu0
        %v3033 = vadd.f32 %v2944, %v3032
        %v3034 = vpop.f32.mrf.mxu0
        %v3035 = vadd.f32 %v2946, %v3034
        %3036 = vmatmul.bf16.gmra.mxu0 %v2562
        %v3037 = vpop.f32.mrf.mxu0
        %v3038 = vadd.f32 %v2949, %v3037
        %v3039 = vpop.f32.mrf.mxu0
        %v3040 = vadd.f32 %v2951, %v3039
        %3041 = vmatmul.bf16.gmra.mxu0 %v2574
        %v3042 = vpop.f32.mrf.mxu0
        %v3043 = vadd.f32 %v2954, %v3042
        %v3044 = vpop.f32.mrf.mxu0
        %v3045 = vadd.f32 %v2956, %v3044
        %3046 = vmatmul.bf16.gmra.mxu0 %v2586
        %v3047 = vpop.f32.mrf.mxu0
        %v3048 = vadd.f32 %v2959, %v3047
        %v3049 = vpop.f32.mrf.mxu0
        %v3050 = vadd.f32 %v2961, %v3049
        %3051 = vmatmul.bf16.gmra.mxu0 %v2598
        %v3052 = vpop.f32.mrf.mxu0
        %v3053 = vadd.f32 %v2964, %v3052
        %v3054 = vpop.f32.mrf.mxu0
        %v3055 = vadd.f32 %v2966, %v3054
        %3056 = vmatmul.bf16.gmra.mxu0 %v2610
        %v3057 = vpop.f32.mrf.mxu0
        %v3058 = vadd.f32 %v2969, %v3057
        %v3059 = vpop.f32.mrf.mxu0
        %v3060 = vadd.f32 %v2971, %v3059
        %3061 = vdwg.mxu0
        %3062 = vmatpush.bf16.msra.mxu0 %v2859
        %3063 = vmatpush.bf16.msra.mxu0 %v2858
        %3064 = vmatpush.bf16.msra.mxu0 %v2857
        %3065 = vmatpush.bf16.msra.mxu0 %v2856
        %3066 = vmatpush.bf16.msra.mxu0 %v2855
        %3067 = vmatpush.bf16.msra.mxu0 %v2854
        %3068 = vmatpush.bf16.msra.mxu0 %v2853
        %3069 = vmatpush.bf16.msra.mxu0 %v2852
        %3070 = vmatmul.bf16.gmra.mxu0 %v2629
        %v3071 = vpop.f32.mrf.mxu0
        %v3072 = vadd.f32 %v2983, %v3071
        %v3073 = vpop.f32.mrf.mxu0
        %v3074 = vadd.f32 %v2985, %v3073
        %3075 = vmatmul.bf16.gmra.mxu0 %v2632
        %v3076 = vpop.f32.mrf.mxu0
        %v3077 = vadd.f32 %v2988, %v3076
        %v3078 = vpop.f32.mrf.mxu0
        %v3079 = vadd.f32 %v2990, %v3078
        %3080 = vmatmul.bf16.gmra.mxu0 %v2635
        %v3081 = vpop.f32.mrf.mxu0
        %v3082 = vadd.f32 %v2993, %v3081
        %v3083 = vpop.f32.mrf.mxu0
        %v3084 = vadd.f32 %v2995, %v3083
        %3085 = vmatmul.bf16.gmra.mxu0 %v2638
        %v3086 = vpop.f32.mrf.mxu0
        %v3087 = vadd.f32 %v2998, %v3086
        %v3088 = vpop.f32.mrf.mxu0
        %v3089 = vadd.f32 %v3000, %v3088
        %3090 = vmatmul.bf16.gmra.mxu0 %v2641
        %v3091 = vpop.f32.mrf.mxu0
        %v3092 = vadd.f32 %v3003, %v3091
        %v3093 = vpop.f32.mrf.mxu0
        %v3094 = vadd.f32 %v3005, %v3093
        %3095 = vmatmul.bf16.gmra.mxu0 %v2644
        %v3096 = vpop.f32.mrf.mxu0
        %v3097 = vadd.f32 %v3008, %v3096
        %v3098 = vpop.f32.mrf.mxu0
        %v3099 = vadd.f32 %v3010, %v3098
        %3100 = vmatmul.bf16.gmra.mxu0 %v2647
        %v3101 = vpop.f32.mrf.mxu0
        %v3102 = vadd.f32 %v3013, %v3101
        %v3103 = vpop.f32.mrf.mxu0
        %v3104 = vadd.f32 %v3015, %v3103
        %3105 = vmatmul.bf16.gmra.mxu0 %v2650
        %v3106 = vpop.f32.mrf.mxu0
        %v3107 = vadd.f32 %v3018, %v3106
        %v3108 = vpop.f32.mrf.mxu0
        %v3109 = vadd.f32 %v3020, %v3108
        %3110 = vmatmul.bf16.gmra.mxu0 %v2653
        %v3111 = vpop.f32.mrf.mxu0
        %v3112 = vadd.f32 %v3023, %v3111
        %v3113 = vpop.f32.mrf.mxu0
        %v3114 = vadd.f32 %v3025, %v3113
        %3115 = vmatmul.bf16.gmra.mxu0 %v2656
        %v3116 = vpop.f32.mrf.mxu0
        %v3117 = vadd.f32 %v3028, %v3116
        %v3118 = vpop.f32.mrf.mxu0
        %v3119 = vadd.f32 %v3030, %v3118
        %3120 = vmatmul.bf16.gmra.mxu0 %v2659
        %v3121 = vpop.f32.mrf.mxu0
        %v3122 = vadd.f32 %v3033, %v3121
        %v3123 = vpop.f32.mrf.mxu0
        %v3124 = vadd.f32 %v3035, %v3123
        %3125 = vmatmul.bf16.gmra.mxu0 %v2662
        %v3126 = vpop.f32.mrf.mxu0
        %v3127 = vadd.f32 %v3038, %v3126
        %v3128 = vpop.f32.mrf.mxu0
        %v3129 = vadd.f32 %v3040, %v3128
        %3130 = vmatmul.bf16.gmra.mxu0 %v2665
        %v3131 = vpop.f32.mrf.mxu0
        %v3132 = vadd.f32 %v3043, %v3131
        %v3133 = vpop.f32.mrf.mxu0
        %v3134 = vadd.f32 %v3045, %v3133
        %3135 = vmatmul.bf16.gmra.mxu0 %v2668
        %v3136 = vpop.f32.mrf.mxu0
        %v3137 = vadd.f32 %v3048, %v3136
        %v3138 = vpop.f32.mrf.mxu0
        %v3139 = vadd.f32 %v3050, %v3138
        %3140 = vmatmul.bf16.gmra.mxu0 %v2671
        %v3141 = vpop.f32.mrf.mxu0
        %v3142 = vadd.f32 %v3053, %v3141
        %v3143 = vpop.f32.mrf.mxu0
        %v3144 = vadd.f32 %v3055, %v3143
        %3145 = vmatmul.bf16.gmra.mxu0 %v2674
        %v3146 = vpop.f32.mrf.mxu0
        %v3147 = vadd.f32 %v3058, %v3146
        %v3148 = vpop.f32.mrf.mxu0
        %v3149 = vadd.f32 %v3060, %v3148
        %3150 = vdwg.mxu0
        %v3151 = vadd.f32 %v2147, %v3072
        %v3152 = vadd.f32 %v2149, %v3074
        %v3153 = vadd.f32 %v2152, %v3077
        %v3154 = vadd.f32 %v2154, %v3079
        %v3155 = vadd.f32 %v2157, %v3082
        %v3156 = vadd.f32 %v2159, %v3084
        %v3157 = vadd.f32 %v2162, %v3087
        %v3158 = vadd.f32 %v2164, %v3089
        %v3159 = vadd.f32 %v2167, %v3092
        %v3160 = vadd.f32 %v2169, %v3094
        %v3161 = vadd.f32 %v2172, %v3097
        %v3162 = vadd.f32 %v2174, %v3099
        %v3163 = vadd.f32 %v2177, %v3102
        %v3164 = vadd.f32 %v2179, %v3104
        %v3165 = vadd.f32 %v2182, %v3107
        %v3166 = vadd.f32 %v2184, %v3109
        %v3167 = vadd.f32 %v2187, %v3112
        %v3168 = vadd.f32 %v2189, %v3114
        %v3169 = vadd.f32 %v2192, %v3117
        %v3170 = vadd.f32 %v2194, %v3119
        %v3171 = vadd.f32 %v2197, %v3122
        %v3172 = vadd.f32 %v2199, %v3124
        %v3173 = vadd.f32 %v2202, %v3127
        %v3174 = vadd.f32 %v2204, %v3129
        %v3175 = vadd.f32 %v2207, %v3132
        %v3176 = vadd.f32 %v2209, %v3134
        %v3177 = vadd.f32 %v2212, %v3137
        %v3178 = vadd.f32 %v2214, %v3139
        %v3179 = vadd.f32 %v2217, %v3142
        %v3180 = vadd.f32 %v2219, %v3144
        %v3181 = vadd.f32 %v2222, %v3147
        %v3182 = vadd.f32 %v2224, %v3149
        %v3183 = vld [vmem:[%s2] sm:$0x1]
        %v3185 = vperm.slane %v3183, 0
        %v3187 = vmul.f32 %v3151, %v3185
        %v3188 = vmul.f32 %v3152, %v3185
        %v3189 = vmul.f32 %v3153, %v3185
        %v3190 = vmul.f32 %v3154, %v3185
        %v3191 = vmul.f32 %v3155, %v3185
        %v3192 = vmul.f32 %v3156, %v3185
        %v3193 = vmul.f32 %v3157, %v3185
        %v3194 = vmul.f32 %v3158, %v3185
        %v3195 = vmul.f32 %v3159, %v3185
        %v3196 = vmul.f32 %v3160, %v3185
        %v3197 = vmul.f32 %v3161, %v3185
        %v3198 = vmul.f32 %v3162, %v3185
        %v3199 = vmul.f32 %v3163, %v3185
        %v3200 = vmul.f32 %v3164, %v3185
        %v3201 = vmul.f32 %v3165, %v3185
        %v3202 = vmul.f32 %v3166, %v3185
        %v3203 = vmul.f32 %v3167, %v3185
        %v3204 = vmul.f32 %v3168, %v3185
        %v3205 = vmul.f32 %v3169, %v3185
        %v3206 = vmul.f32 %v3170, %v3185
        %v3207 = vmul.f32 %v3171, %v3185
        %v3208 = vmul.f32 %v3172, %v3185
        %v3209 = vmul.f32 %v3173, %v3185
        %v3210 = vmul.f32 %v3174, %v3185
        %v3211 = vmul.f32 %v3175, %v3185
        %v3212 = vmul.f32 %v3176, %v3185
        %v3213 = vmul.f32 %v3177, %v3185
        %v3214 = vmul.f32 %v3178, %v3185
        %v3215 = vmul.f32 %v3179, %v3185
        %v3216 = vmul.f32 %v3180, %v3185
        %v3217 = vmul.f32 %v3181, %v3185
        %v3218 = vmul.f32 %v3182, %v3185
        %v3219 = vld [vmem:[%s3] sm:$0x1]
        %v3221 = vperm.slane %v3219, 0
        %v3223 = vadd.f32 %v3187, %v3221
        %v3224 = vadd.f32 %v3188, %v3221
        %v3225 = vadd.f32 %v3189, %v3221
        %v3226 = vadd.f32 %v3190, %v3221
        %v3227 = vadd.f32 %v3191, %v3221
        %v3228 = vadd.f32 %v3192, %v3221
        %v3229 = vadd.f32 %v3193, %v3221
        %v3230 = vadd.f32 %v3194, %v3221
        %v3231 = vadd.f32 %v3195, %v3221
        %v3232 = vadd.f32 %v3196, %v3221
        %v3233 = vadd.f32 %v3197, %v3221
        %v3234 = vadd.f32 %v3198, %v3221
        %v3235 = vadd.f32 %v3199, %v3221
        %v3236 = vadd.f32 %v3200, %v3221
        %v3237 = vadd.f32 %v3201, %v3221
        %v3238 = vadd.f32 %v3202, %v3221
        %v3239 = vadd.f32 %v3203, %v3221
        %v3240 = vadd.f32 %v3204, %v3221
        %v3241 = vadd.f32 %v3205, %v3221
        %v3242 = vadd.f32 %v3206, %v3221
        %v3243 = vadd.f32 %v3207, %v3221
        %v3244 = vadd.f32 %v3208, %v3221
        %v3245 = vadd.f32 %v3209, %v3221
        %v3246 = vadd.f32 %v3210, %v3221
        %v3247 = vadd.f32 %v3211, %v3221
        %v3248 = vadd.f32 %v3212, %v3221
        %v3249 = vadd.f32 %v3213, %v3221
        %v3250 = vadd.f32 %v3214, %v3221
        %v3251 = vadd.f32 %v3215, %v3221
        %v3252 = vadd.f32 %v3216, %v3221
        %v3253 = vadd.f32 %v3217, %v3221
        %v3254 = vadd.f32 %v3218, %v3221
        %v3255 = vmax.f32 %v3223, 0.0
        %v3256 = vmax.f32 %v3224, 0.0
        %v3257 = vmax.f32 %v3225, 0.0
        %v3258 = vmax.f32 %v3226, 0.0
        %v3259 = vmax.f32 %v3227, 0.0
        %v3260 = vmax.f32 %v3228, 0.0
        %v3261 = vmax.f32 %v3229, 0.0
        %v3262 = vmax.f32 %v3230, 0.0
        %v3263 = vmax.f32 %v3231, 0.0
        %v3264 = vmax.f32 %v3232, 0.0
        %v3265 = vmax.f32 %v3233, 0.0
        %v3266 = vmax.f32 %v3234, 0.0
        %v3267 = vmax.f32 %v3235, 0.0
        %v3268 = vmax.f32 %v3236, 0.0
        %v3269 = vmax.f32 %v3237, 0.0
        %v3270 = vmax.f32 %v3238, 0.0
        %v3271 = vmax.f32 %v3239, 0.0
        %v3272 = vmax.f32 %v3240, 0.0
        %v3273 = vmax.f32 %v3241, 0.0
        %v3274 = vmax.f32 %v3242, 0.0
        %v3275 = vmax.f32 %v3243, 0.0
        %v3276 = vmax.f32 %v3244, 0.0
        %v3277 = vmax.f32 %v3245, 0.0
        %v3278 = vmax.f32 %v3246, 0.0
        %v3279 = vmax.f32 %v3247, 0.0
        %v3280 = vmax.f32 %v3248, 0.0
        %v3281 = vmax.f32 %v3249, 0.0
        %v3282 = vmax.f32 %v3250, 0.0
        %v3283 = vmax.f32 %v3251, 0.0
        %v3284 = vmax.f32 %v3252, 0.0
        %v3285 = vmax.f32 %v3253, 0.0
        %v3286 = vmax.f32 %v3254, 0.0
        %3287 = vst [vmem:[#allocation2] sm:$0xf] 0
        %3288 = vst [vmem:[#allocation2 + $0x4] sm:$0xf] 0
        %3289 = vst [vmem:[#allocation2 + $0x8] sm:$0x1] 0
        %s3290 = scalar_lea.vmem [#allocation2], 204
        %3291 = vst [vmem:[%s3290] sm:$0xf] 0
        %3292 = vst [vmem:[%s3290 + $0x4] sm:$0xf] 0
        %3293 = vst [vmem:[%s3290 + $0x8] sm:$0x1] 0
        %s3294 = scalar_lea.vmem [#allocation2], 12
        %vm3295 = vcmask 1040384
        %vm3296 = vsmask.f32 256
        %vm3297 = vmand %vm3295, %vm3296
        %v3298 = vld [vmem:[%s3294] sm:$0x1]
        %v3299 = vsel %vm3297, 0, %v3298
        %3300 = vst [vmem:[%s3294] sm:$0x1] %v3299
        %v3301 = vld [vmem:[%s3294 + $0xc] sm:$0x1]
        %v3302 = vsel %vm3297, 0, %v3301
        %3303 = vst [vmem:[%s3294 + $0xc] sm:$0x1] %v3302
        %v3304 = vld [vmem:[%s3294 + $0x18] sm:$0x1]
        %v3305 = vsel %vm3297, 0, %v3304
        %3306 = vst [vmem:[%s3294 + $0x18] sm:$0x1] %v3305
        %v3307 = vld [vmem:[%s3294 + $0x24] sm:$0x1]
        %v3308 = vsel %vm3297, 0, %v3307
        %3309 = vst [vmem:[%s3294 + $0x24] sm:$0x1] %v3308
        %v3310 = vld [vmem:[%s3294 + $0x30] sm:$0x1]
        %v3311 = vsel %vm3297, 0, %v3310
        %3312 = vst [vmem:[%s3294 + $0x30] sm:$0x1] %v3311
        %v3313 = vld [vmem:[%s3294 + $0x3c] sm:$0x1]
        %v3314 = vsel %vm3297, 0, %v3313
        %3315 = vst [vmem:[%s3294 + $0x3c] sm:$0x1] %v3314
        %v3316 = vld [vmem:[%s3294 + $0x48] sm:$0x1]
        %v3317 = vsel %vm3297, 0, %v3316
        %3318 = vst [vmem:[%s3294 + $0x48] sm:$0x1] %v3317
        %v3319 = vld [vmem:[%s3294 + $0x54] sm:$0x1]
        %v3320 = vsel %vm3297, 0, %v3319
        %3321 = vst [vmem:[%s3294 + $0x54] sm:$0x1] %v3320
        %v3322 = vld [vmem:[%s3294 + $0x60] sm:$0x1]
        %v3323 = vsel %vm3297, 0, %v3322
        %3324 = vst [vmem:[%s3294 + $0x60] sm:$0x1] %v3323
        %v3325 = vld [vmem:[%s3294 + $0x6c] sm:$0x1]
        %v3326 = vsel %vm3297, 0, %v3325
        %3327 = vst [vmem:[%s3294 + $0x6c] sm:$0x1] %v3326
        %v3328 = vld [vmem:[%s3294 + $0x78] sm:$0x1]
        %v3329 = vsel %vm3297, 0, %v3328
        %3330 = vst [vmem:[%s3294 + $0x78] sm:$0x1] %v3329
        %v3331 = vld [vmem:[%s3294 + $0x84] sm:$0x1]
        %v3332 = vsel %vm3297, 0, %v3331
        %3333 = vst [vmem:[%s3294 + $0x84] sm:$0x1] %v3332
        %v3334 = vld [vmem:[%s3294 + $0x90] sm:$0x1]
        %v3335 = vsel %vm3297, 0, %v3334
        %3336 = vst [vmem:[%s3294 + $0x90] sm:$0x1] %v3335
        %v3337 = vld [vmem:[%s3294 + $0x9c] sm:$0x1]
        %v3338 = vsel %vm3297, 0, %v3337
        %3339 = vst [vmem:[%s3294 + $0x9c] sm:$0x1] %v3338
        %v3340 = vld [vmem:[%s3294 + $0xa8] sm:$0x1]
        %v3341 = vsel %vm3297, 0, %v3340
        %3342 = vst [vmem:[%s3294 + $0xa8] sm:$0x1] %v3341
        %v3343 = vld [vmem:[%s3294 + $0xb4] sm:$0x1]
        %v3344 = vsel %vm3297, 0, %v3343
        %3345 = vst [vmem:[%s3294 + $0xb4] sm:$0x1] %v3344
        %vm3346 = vsmask.f32 7938
        %vm3347 = vmand %vm3295, %vm3346
        %v3348 = vld [vmem:[%s3294 + $0x8] sm:$0x1]
        %v3349 = vsel %vm3347, 0, %v3348
        %3350 = vst [vmem:[%s3294 + $0x8] sm:$0x1] %v3349
        %v3351 = vld [vmem:[%s3294 + $0x14] sm:$0x1]
        %v3352 = vsel %vm3347, 0, %v3351
        %3353 = vst [vmem:[%s3294 + $0x14] sm:$0x1] %v3352
        %v3354 = vld [vmem:[%s3294 + $0x20] sm:$0x1]
        %v3355 = vsel %vm3347, 0, %v3354
        %3356 = vst [vmem:[%s3294 + $0x20] sm:$0x1] %v3355
        %v3357 = vld [vmem:[%s3294 + $0x2c] sm:$0x1]
        %v3358 = vsel %vm3347, 0, %v3357
        %3359 = vst [vmem:[%s3294 + $0x2c] sm:$0x1] %v3358
        %v3360 = vld [vmem:[%s3294 + $0x38] sm:$0x1]
        %v3361 = vsel %vm3347, 0, %v3360
        %3362 = vst [vmem:[%s3294 + $0x38] sm:$0x1] %v3361
        %v3363 = vld [vmem:[%s3294 + $0x44] sm:$0x1]
        %v3364 = vsel %vm3347, 0, %v3363
        %3365 = vst [vmem:[%s3294 + $0x44] sm:$0x1] %v3364
        %v3366 = vld [vmem:[%s3294 + $0x50] sm:$0x1]
        %v3367 = vsel %vm3347, 0, %v3366
        %3368 = vst [vmem:[%s3294 + $0x50] sm:$0x1] %v3367
        %v3369 = vld [vmem:[%s3294 + $0x5c] sm:$0x1]
        %v3370 = vsel %vm3347, 0, %v3369
        %3371 = vst [vmem:[%s3294 + $0x5c] sm:$0x1] %v3370
        %v3372 = vld [vmem:[%s3294 + $0x68] sm:$0x1]
        %v3373 = vsel %vm3347, 0, %v3372
        %3374 = vst [vmem:[%s3294 + $0x68] sm:$0x1] %v3373
        %v3375 = vld [vmem:[%s3294 + $0x74] sm:$0x1]
        %v3376 = vsel %vm3347, 0, %v3375
        %3377 = vst [vmem:[%s3294 + $0x74] sm:$0x1] %v3376
        %v3378 = vld [vmem:[%s3294 + $0x80] sm:$0x1]
        %v3379 = vsel %vm3347, 0, %v3378
        %3380 = vst [vmem:[%s3294 + $0x80] sm:$0x1] %v3379
        %v3381 = vld [vmem:[%s3294 + $0x8c] sm:$0x1]
        %v3382 = vsel %vm3347, 0, %v3381
        %3383 = vst [vmem:[%s3294 + $0x8c] sm:$0x1] %v3382
        %v3384 = vld [vmem:[%s3294 + $0x98] sm:$0x1]
        %v3385 = vsel %vm3347, 0, %v3384
        %3386 = vst [vmem:[%s3294 + $0x98] sm:$0x1] %v3385
        %v3387 = vld [vmem:[%s3294 + $0xa4] sm:$0x1]
        %v3388 = vsel %vm3347, 0, %v3387
        %3389 = vst [vmem:[%s3294 + $0xa4] sm:$0x1] %v3388
        %v3390 = vld [vmem:[%s3294 + $0xb0] sm:$0x1]
        %v3391 = vsel %vm3347, 0, %v3390
        %3392 = vst [vmem:[%s3294 + $0xb0] sm:$0x1] %v3391
        %v3393 = vld [vmem:[%s3294 + $0xbc] sm:$0x1]
        %v3394 = vsel %vm3347, 0, %v3393
        %3395 = vst [vmem:[%s3294 + $0xbc] sm:$0x1] %v3394
        %v3396 = vpack.c.bf16 %v3255, %v3255
        %v3397 = vpack.c.bf16 %v3256, %v3256
        %v3398 = vpack.c.bf16 %v3257, %v3257
        %v3399 = vpack.c.bf16 %v3258, %v3258
        %v3400 = vpack.c.bf16 %v3259, %v3259
        %v3401 = vpack.c.bf16 %v3260, %v3260
        %v3402 = vpack.c.bf16 %v3261, %v3261
        %v3403 = vpack.c.bf16 %v3262, %v3262
        %v3404 = vpack.c.bf16 %v3263, %v3263
        %v3405 = vpack.c.bf16 %v3264, %v3264
        %v3406 = vpack.c.bf16 %v3265, %v3265
        %v3407 = vpack.c.bf16 %v3266, %v3266
        %v3408 = vpack.c.bf16 %v3267, %v3267
        %v3409 = vpack.c.bf16 %v3268, %v3268
        %v3410 = vpack.c.bf16 %v3269, %v3269
        %v3411 = vpack.c.bf16 %v3270, %v3270
        %v3412 = vpack.c.bf16 %v3271, %v3271
        %v3413 = vpack.c.bf16 %v3272, %v3272
        %v3414 = vpack.c.bf16 %v3273, %v3273
        %v3415 = vpack.c.bf16 %v3274, %v3274
        %v3416 = vpack.c.bf16 %v3275, %v3275
        %v3417 = vpack.c.bf16 %v3276, %v3276
        %v3418 = vpack.c.bf16 %v3277, %v3277
        %v3419 = vpack.c.bf16 %v3278, %v3278
        %v3420 = vpack.c.bf16 %v3279, %v3279
        %v3421 = vpack.c.bf16 %v3280, %v3280
        %v3422 = vpack.c.bf16 %v3281, %v3281
        %v3423 = vpack.c.bf16 %v3282, %v3282
        %v3424 = vpack.c.bf16 %v3283, %v3283
        %v3425 = vpack.c.bf16 %v3284, %v3284
        %v3426 = vpack.c.bf16 %v3285, %v3285
        %v3427 = vpack.c.bf16 %v3286, %v3286
        %vm3428 = vsmask.f32 4368
        %vm3429 = vmor %vm3296, %vm3428
        %v3431 = vshrl.u32 %v3396, 16
        %v3433 = vrot.slane %v3431, 7
        %v3434 = vshll.u32 %v3396, 16
        %v3436 = vor.u32 %v3433, %v3434
        %v3437 = vrot.slane %v3433, 4
        %v3439 = vshrl.u32 %v3397, 16
        %v3441 = vrot.slane %v3439, 7
        %v3442 = vshll.u32 %v3397, 16
        %v3444 = vor.u32 %v3441, %v3442
        %v3445 = vsel %vm3429, %v3437, %v3444
        %v3446 = vrot.slane %v3441, 4
        %v3448 = vshrl.u32 %v3398, 16
        %v3450 = vrot.slane %v3448, 7
        %v3451 = vshll.u32 %v3398, 16
        %v3453 = vor.u32 %v3450, %v3451
        %v3454 = vrot.slane %v3450, 4
        %v3456 = vshrl.u32 %v3399, 16
        %v3458 = vrot.slane %v3456, 7
        %v3459 = vshll.u32 %v3399, 16
        %v3461 = vor.u32 %v3458, %v3459
        %v3462 = vsel %vm3429, %v3454, %v3461
        %v3463 = vrot.slane %v3458, 4
        %v3465 = vshrl.u32 %v3400, 16
        %v3467 = vrot.slane %v3465, 7
        %v3468 = vshll.u32 %v3400, 16
        %v3470 = vor.u32 %v3467, %v3468
        %v3471 = vrot.slane %v3467, 4
        %v3473 = vshrl.u32 %v3401, 16
        %v3475 = vrot.slane %v3473, 7
        %v3476 = vshll.u32 %v3401, 16
        %v3478 = vor.u32 %v3475, %v3476
        %v3479 = vsel %vm3429, %v3471, %v3478
        %v3480 = vrot.slane %v3475, 4
        %v3482 = vshrl.u32 %v3402, 16
        %v3484 = vrot.slane %v3482, 7
        %v3485 = vshll.u32 %v3402, 16
        %v3487 = vor.u32 %v3484, %v3485
        %v3488 = vrot.slane %v3484, 4
        %v3490 = vshrl.u32 %v3403, 16
        %v3492 = vrot.slane %v3490, 7
        %v3493 = vshll.u32 %v3403, 16
        %v3495 = vor.u32 %v3492, %v3493
        %v3496 = vsel %vm3429, %v3488, %v3495
        %v3497 = vrot.slane %v3492, 4
        %v3499 = vshrl.u32 %v3404, 16
        %v3501 = vrot.slane %v3499, 7
        %v3502 = vshll.u32 %v3404, 16
        %v3504 = vor.u32 %v3501, %v3502
        %v3505 = vrot.slane %v3501, 4
        %v3507 = vshrl.u32 %v3405, 16
        %v3509 = vrot.slane %v3507, 7
        %v3510 = vshll.u32 %v3405, 16
        %v3512 = vor.u32 %v3509, %v3510
        %v3513 = vsel %vm3429, %v3505, %v3512
        %v3514 = vrot.slane %v3509, 4
        %v3516 = vshrl.u32 %v3406, 16
        %v3518 = vrot.slane %v3516, 7
        %v3519 = vshll.u32 %v3406, 16
        %v3521 = vor.u32 %v3518, %v3519
        %v3522 = vrot.slane %v3518, 4
        %v3524 = vshrl.u32 %v3407, 16
        %v3526 = vrot.slane %v3524, 7
        %v3527 = vshll.u32 %v3407, 16
        %v3529 = vor.u32 %v3526, %v3527
        %v3530 = vsel %vm3429, %v3522, %v3529
        %v3531 = vrot.slane %v3526, 4
        %v3533 = vshrl.u32 %v3408, 16
        %v3535 = vrot.slane %v3533, 7
        %v3536 = vshll.u32 %v3408, 16
        %v3538 = vor.u32 %v3535, %v3536
        %v3539 = vrot.slane %v3535, 4
        %v3541 = vshrl.u32 %v3409, 16
        %v3543 = vrot.slane %v3541, 7
        %v3544 = vshll.u32 %v3409, 16
        %v3546 = vor.u32 %v3543, %v3544
        %v3547 = vsel %vm3429, %v3539, %v3546
        %v3548 = vrot.slane %v3543, 4
        %v3550 = vshrl.u32 %v3410, 16
        %v3552 = vrot.slane %v3550, 7
        %v3553 = vshll.u32 %v3410, 16
        %v3555 = vor.u32 %v3552, %v3553
        %v3556 = vrot.slane %v3552, 4
        %v3558 = vshrl.u32 %v3411, 16
        %v3560 = vrot.slane %v3558, 7
        %v3561 = vshll.u32 %v3411, 16
        %v3563 = vor.u32 %v3560, %v3561
        %v3564 = vsel %vm3429, %v3556, %v3563
        %v3565 = vrot.slane %v3560, 4
        %v3567 = vshrl.u32 %v3412, 16
        %v3569 = vrot.slane %v3567, 7
        %v3570 = vshll.u32 %v3412, 16
        %v3572 = vor.u32 %v3569, %v3570
        %v3573 = vrot.slane %v3569, 4
        %v3575 = vshrl.u32 %v3413, 16
        %v3577 = vrot.slane %v3575, 7
        %v3578 = vshll.u32 %v3413, 16
        %v3580 = vor.u32 %v3577, %v3578
        %v3581 = vsel %vm3429, %v3573, %v3580
        %v3582 = vrot.slane %v3577, 4
        %v3584 = vshrl.u32 %v3414, 16
        %v3586 = vrot.slane %v3584, 7
        %v3587 = vshll.u32 %v3414, 16
        %v3589 = vor.u32 %v3586, %v3587
        %v3590 = vrot.slane %v3586, 4
        %v3592 = vshrl.u32 %v3415, 16
        %v3594 = vrot.slane %v3592, 7
        %v3595 = vshll.u32 %v3415, 16
        %v3597 = vor.u32 %v3594, %v3595
        %v3598 = vsel %vm3429, %v3590, %v3597
        %v3599 = vrot.slane %v3594, 4
        %v3601 = vshrl.u32 %v3416, 16
        %v3603 = vrot.slane %v3601, 7
        %v3604 = vshll.u32 %v3416, 16
        %v3606 = vor.u32 %v3603, %v3604
        %v3607 = vrot.slane %v3603, 4
        %v3609 = vshrl.u32 %v3417, 16
        %v3611 = vrot.slane %v3609, 7
        %v3612 = vshll.u32 %v3417, 16
        %v3614 = vor.u32 %v3611, %v3612
        %v3615 = vsel %vm3429, %v3607, %v3614
        %v3616 = vrot.slane %v3611, 4
        %v3618 = vshrl.u32 %v3418, 16
        %v3620 = vrot.slane %v3618, 7
        %v3621 = vshll.u32 %v3418, 16
        %v3623 = vor.u32 %v3620, %v3621
        %v3624 = vrot.slane %v3620, 4
        %v3626 = vshrl.u32 %v3419, 16
        %v3628 = vrot.slane %v3626, 7
        %v3629 = vshll.u32 %v3419, 16
        %v3631 = vor.u32 %v3628, %v3629
        %v3632 = vsel %vm3429, %v3624, %v3631
        %v3633 = vrot.slane %v3628, 4
        %v3635 = vshrl.u32 %v3420, 16
        %v3637 = vrot.slane %v3635, 7
        %v3638 = vshll.u32 %v3420, 16
        %v3640 = vor.u32 %v3637, %v3638
        %v3641 = vrot.slane %v3637, 4
        %v3643 = vshrl.u32 %v3421, 16
        %v3645 = vrot.slane %v3643, 7
        %v3646 = vshll.u32 %v3421, 16
        %v3648 = vor.u32 %v3645, %v3646
        %v3649 = vsel %vm3429, %v3641, %v3648
        %v3650 = vrot.slane %v3645, 4
        %v3652 = vshrl.u32 %v3422, 16
        %v3654 = vrot.slane %v3652, 7
        %v3655 = vshll.u32 %v3422, 16
        %v3657 = vor.u32 %v3654, %v3655
        %v3658 = vrot.slane %v3654, 4
        %v3660 = vshrl.u32 %v3423, 16
        %v3662 = vrot.slane %v3660, 7
        %v3663 = vshll.u32 %v3423, 16
        %v3665 = vor.u32 %v3662, %v3663
        %v3666 = vsel %vm3429, %v3658, %v3665
        %v3667 = vrot.slane %v3662, 4
        %v3669 = vshrl.u32 %v3424, 16
        %v3671 = vrot.slane %v3669, 7
        %v3672 = vshll.u32 %v3424, 16
        %v3674 = vor.u32 %v3671, %v3672
        %v3675 = vrot.slane %v3671, 4
        %v3677 = vshrl.u32 %v3425, 16
        %v3679 = vrot.slane %v3677, 7
        %v3680 = vshll.u32 %v3425, 16
        %v3682 = vor.u32 %v3679, %v3680
        %v3683 = vsel %vm3429, %v3675, %v3682
        %v3684 = vrot.slane %v3679, 4
        %v3686 = vshrl.u32 %v3426, 16
        %v3688 = vrot.slane %v3686, 7
        %v3689 = vshll.u32 %v3426, 16
        %v3691 = vor.u32 %v3688, %v3689
        %v3692 = vrot.slane %v3688, 4
        %v3694 = vshrl.u32 %v3427, 16
        %v3696 = vrot.slane %v3694, 7
        %v3697 = vshll.u32 %v3427, 16
        %v3699 = vor.u32 %v3696, %v3697
        %v3700 = vsel %vm3429, %v3692, %v3699
        %v3701 = vrot.slane %v3696, 4
        %vm3750 = vcmask 1043456
        %vm3751 = vmand %vm3750, %vm3346
        %v3752 = vld [vmem:[%s3294] sm:$0xf]
        %v3753 = vsel %vm3751, %v3436, %v3752
        %3754 = vst [vmem:[%s3294] sm:$0xf] %v3753
        %3755 = vst [vmem:[%s3294 + $0x4] sm:$0xf] %v3445
        %v3756 = vld [vmem:[%s3294 + $0x8] sm:$0x1]
        %v3757 = vsel %vm3297, %v3446, %v3756
        %3758 = vst [vmem:[%s3294 + $0x8] sm:$0x1] %v3757
        %v3759 = vld [vmem:[%s3294 + $0xc] sm:$0xf]
        %v3760 = vsel %vm3751, %v3453, %v3759
        %3761 = vst [vmem:[%s3294 + $0xc] sm:$0xf] %v3760
        %3762 = vst [vmem:[%s3294 + $0x10] sm:$0xf] %v3462
        %v3763 = vld [vmem:[%s3294 + $0x14] sm:$0x1]
        %v3764 = vsel %vm3297, %v3463, %v3763
        %3765 = vst [vmem:[%s3294 + $0x14] sm:$0x1] %v3764
        %v3766 = vld [vmem:[%s3294 + $0x18] sm:$0xf]
        %v3767 = vsel %vm3751, %v3470, %v3766
        %3768 = vst [vmem:[%s3294 + $0x18] sm:$0xf] %v3767
        %3769 = vst [vmem:[%s3294 + $0x1c] sm:$0xf] %v3479
        %v3770 = vld [vmem:[%s3294 + $0x20] sm:$0x1]
        %v3771 = vsel %vm3297, %v3480, %v3770
        %3772 = vst [vmem:[%s3294 + $0x20] sm:$0x1] %v3771
        %v3773 = vld [vmem:[%s3294 + $0x24] sm:$0xf]
        %v3774 = vsel %vm3751, %v3487, %v3773
        %3775 = vst [vmem:[%s3294 + $0x24] sm:$0xf] %v3774
        %3776 = vst [vmem:[%s3294 + $0x28] sm:$0xf] %v3496
        %v3777 = vld [vmem:[%s3294 + $0x2c] sm:$0x1]
        %v3778 = vsel %vm3297, %v3497, %v3777
        %3779 = vst [vmem:[%s3294 + $0x2c] sm:$0x1] %v3778
        %v3780 = vld [vmem:[%s3294 + $0x30] sm:$0xf]
        %v3781 = vsel %vm3751, %v3504, %v3780
        %3782 = vst [vmem:[%s3294 + $0x30] sm:$0xf] %v3781
        %3783 = vst [vmem:[%s3294 + $0x34] sm:$0xf] %v3513
        %v3784 = vld [vmem:[%s3294 + $0x38] sm:$0x1]
        %v3785 = vsel %vm3297, %v3514, %v3784
        %3786 = vst [vmem:[%s3294 + $0x38] sm:$0x1] %v3785
        %v3787 = vld [vmem:[%s3294 + $0x3c] sm:$0xf]
        %v3788 = vsel %vm3751, %v3521, %v3787
        %3789 = vst [vmem:[%s3294 + $0x3c] sm:$0xf] %v3788
        %3790 = vst [vmem:[%s3294 + $0x40] sm:$0xf] %v3530
        %v3791 = vld [vmem:[%s3294 + $0x44] sm:$0x1]
        %v3792 = vsel %vm3297, %v3531, %v3791
        %3793 = vst [vmem:[%s3294 + $0x44] sm:$0x1] %v3792
        %v3794 = vld [vmem:[%s3294 + $0x48] sm:$0xf]
        %v3795 = vsel %vm3751, %v3538, %v3794
        %3796 = vst [vmem:[%s3294 + $0x48] sm:$0xf] %v3795
        %3797 = vst [vmem:[%s3294 + $0x4c] sm:$0xf] %v3547
        %v3798 = vld [vmem:[%s3294 + $0x50] sm:$0x1]
        %v3799 = vsel %vm3297, %v3548, %v3798
        %3800 = vst [vmem:[%s3294 + $0x50] sm:$0x1] %v3799
        %v3801 = vld [vmem:[%s3294 + $0x54] sm:$0xf]
        %v3802 = vsel %vm3751, %v3555, %v3801
        %3803 = vst [vmem:[%s3294 + $0x54] sm:$0xf] %v3802
        %3804 = vst [vmem:[%s3294 + $0x58] sm:$0xf] %v3564
        %v3805 = vld [vmem:[%s3294 + $0x5c] sm:$0x1]
        %v3806 = vsel %vm3297, %v3565, %v3805
        %3807 = vst [vmem:[%s3294 + $0x5c] sm:$0x1] %v3806
        %v3808 = vld [vmem:[%s3294 + $0x60] sm:$0xf]
        %v3809 = vsel %vm3751, %v3572, %v3808
        %3810 = vst [vmem:[%s3294 + $0x60] sm:$0xf] %v3809
        %3811 = vst [vmem:[%s3294 + $0x64] sm:$0xf] %v3581
        %v3812 = vld [vmem:[%s3294 + $0x68] sm:$0x1]
        %v3813 = vsel %vm3297, %v3582, %v3812
        %3814 = vst [vmem:[%s3294 + $0x68] sm:$0x1] %v3813
        %v3815 = vld [vmem:[%s3294 + $0x6c] sm:$0xf]
        %v3816 = vsel %vm3751, %v3589, %v3815
        %3817 = vst [vmem:[%s3294 + $0x6c] sm:$0xf] %v3816
        %3818 = vst [vmem:[%s3294 + $0x70] sm:$0xf] %v3598
        %v3819 = vld [vmem:[%s3294 + $0x74] sm:$0x1]
        %v3820 = vsel %vm3297, %v3599, %v3819
        %3821 = vst [vmem:[%s3294 + $0x74] sm:$0x1] %v3820
        %v3822 = vld [vmem:[%s3294 + $0x78] sm:$0xf]
        %v3823 = vsel %vm3751, %v3606, %v3822
        %3824 = vst [vmem:[%s3294 + $0x78] sm:$0xf] %v3823
        %3825 = vst [vmem:[%s3294 + $0x7c] sm:$0xf] %v3615
        %v3826 = vld [vmem:[%s3294 + $0x80] sm:$0x1]
        %v3827 = vsel %vm3297, %v3616, %v3826
        %3828 = vst [vmem:[%s3294 + $0x80] sm:$0x1] %v3827
        %v3829 = vld [vmem:[%s3294 + $0x84] sm:$0xf]
        %v3830 = vsel %vm3751, %v3623, %v3829
        %3831 = vst [vmem:[%s3294 + $0x84] sm:$0xf] %v3830
        %3832 = vst [vmem:[%s3294 + $0x88] sm:$0xf] %v3632
        %v3833 = vld [vmem:[%s3294 + $0x8c] sm:$0x1]
        %v3834 = vsel %vm3297, %v3633, %v3833
        %3835 = vst [vmem:[%s3294 + $0x8c] sm:$0x1] %v3834
        %v3836 = vld [vmem:[%s3294 + $0x90] sm:$0xf]
        %v3837 = vsel %vm3751, %v3640, %v3836
        %3838 = vst [vmem:[%s3294 + $0x90] sm:$0xf] %v3837
        %3839 = vst [vmem:[%s3294 + $0x94] sm:$0xf] %v3649
        %v3840 = vld [vmem:[%s3294 + $0x98] sm:$0x1]
        %v3841 = vsel %vm3297, %v3650, %v3840
        %3842 = vst [vmem:[%s3294 + $0x98] sm:$0x1] %v3841
        %v3843 = vld [vmem:[%s3294 + $0x9c] sm:$0xf]
        %v3844 = vsel %vm3751, %v3657, %v3843
        %3845 = vst [vmem:[%s3294 + $0x9c] sm:$0xf] %v3844
        %3846 = vst [vmem:[%s3294 + $0xa0] sm:$0xf] %v3666
        %v3847 = vld [vmem:[%s3294 + $0xa4] sm:$0x1]
        %v3848 = vsel %vm3297, %v3667, %v3847
        %3849 = vst [vmem:[%s3294 + $0xa4] sm:$0x1] %v3848
        %v3850 = vld [vmem:[%s3294 + $0xa8] sm:$0xf]
        %v3851 = vsel %vm3751, %v3674, %v3850
        %3852 = vst [vmem:[%s3294 + $0xa8] sm:$0xf] %v3851
        %3853 = vst [vmem:[%s3294 + $0xac] sm:$0xf] %v3683
        %v3854 = vld [vmem:[%s3294 + $0xb0] sm:$0x1]
        %v3855 = vsel %vm3297, %v3684, %v3854
        %3856 = vst [vmem:[%s3294 + $0xb0] sm:$0x1] %v3855
        %v3857 = vld [vmem:[%s3294 + $0xb4] sm:$0xf]
        %v3858 = vsel %vm3751, %v3691, %v3857
        %3859 = vst [vmem:[%s3294 + $0xb4] sm:$0xf] %v3858
        %3860 = vst [vmem:[%s3294 + $0xb8] sm:$0xf] %v3700
        %v3861 = vld [vmem:[%s3294 + $0xbc] sm:$0x1]
        %v3862 = vsel %vm3297, %v3701, %v3861
        %3863 = vst [vmem:[%s3294 + $0xbc] sm:$0x1] %v3862
        %v3864 = vld [vmem:[#allocation2] sm:$0xf]
        %v3865 = vld [vmem:[#allocation2 + $0x4] sm:$0xf]
        %v3866 = vld [vmem:[#allocation2 + $0x8] sm:$0x1]
        %v3867 = vld [vmem:[#allocation2 + $0xc] sm:$0xf]
        %v3868 = vld [vmem:[#allocation2 + $0x10] sm:$0xf]
        %v3869 = vld [vmem:[#allocation2 + $0x14] sm:$0x1]
        %v3870 = vld [vmem:[#allocation2 + $0x18] sm:$0xf]
        %v3871 = vld [vmem:[#allocation2 + $0x1c] sm:$0xf]
        %v3872 = vld [vmem:[#allocation2 + $0x20] sm:$0x1]
        %v3873 = vld [vmem:[#allocation2 + $0x24] sm:$0xf]
        %v3874 = vld [vmem:[#allocation2 + $0x28] sm:$0xf]
        %v3875 = vld [vmem:[#allocation2 + $0x2c] sm:$0x1]
        %v3876 = vld [vmem:[#allocation2 + $0x30] sm:$0xf]
        %v3877 = vld [vmem:[#allocation2 + $0x34] sm:$0xf]
        %v3878 = vld [vmem:[#allocation2 + $0x38] sm:$0x1]
        %v3879 = vld [vmem:[#allocation2 + $0x3c] sm:$0xf]
        %v3880 = vld [vmem:[#allocation2 + $0x40] sm:$0xf]
        %v3881 = vld [vmem:[#allocation2 + $0x44] sm:$0x1]
        %v3882 = vld [vmem:[#allocation2 + $0x48] sm:$0xf]
        %v3883 = vld [vmem:[#allocation2 + $0x4c] sm:$0xf]
        %v3884 = vld [vmem:[#allocation2 + $0x50] sm:$0x1]
        %v3885 = vld [vmem:[#allocation2 + $0x54] sm:$0xf]
        %v3886 = vld [vmem:[#allocation2 + $0x58] sm:$0xf]
        %v3887 = vld [vmem:[#allocation2 + $0x5c] sm:$0x1]
        %v3888 = vld [vmem:[#allocation2 + $0x60] sm:$0xf]
        %v3889 = vld [vmem:[#allocation2 + $0x64] sm:$0xf]
        %v3890 = vld [vmem:[#allocation2 + $0x68] sm:$0x1]
        %v3891 = vld [vmem:[#allocation2 + $0x6c] sm:$0xf]
        %v3892 = vld [vmem:[#allocation2 + $0x70] sm:$0xf]
        %v3893 = vld [vmem:[#allocation2 + $0x74] sm:$0x1]
        %v3894 = vld [vmem:[#allocation2 + $0x78] sm:$0xf]
        %v3895 = vld [vmem:[#allocation2 + $0x7c] sm:$0xf]
        %v3896 = vld [vmem:[#allocation2 + $0x80] sm:$0x1]
        %v3897 = vld [vmem:[#allocation2 + $0x84] sm:$0xf]
        %v3898 = vld [vmem:[#allocation2 + $0x88] sm:$0xf]
        %v3899 = vld [vmem:[#allocation2 + $0x8c] sm:$0x1]
        %v3900 = vld [vmem:[#allocation2 + $0x90] sm:$0xf]
        %v3901 = vld [vmem:[#allocation2 + $0x94] sm:$0xf]
        %v3902 = vld [vmem:[#allocation2 + $0x98] sm:$0x1]
        %v3903 = vld [vmem:[#allocation2 + $0x9c] sm:$0xf]
        %v3904 = vld [vmem:[#allocation2 + $0xa0] sm:$0xf]
        %v3905 = vld [vmem:[#allocation2 + $0xa4] sm:$0x1]
        %v3906 = vld [vmem:[#allocation2 + $0xa8] sm:$0xf]
        %v3907 = vld [vmem:[#allocation2 + $0xac] sm:$0xf]
        %v3908 = vld [vmem:[#allocation2 + $0xb0] sm:$0x1]
        %v3909 = vld [vmem:[#allocation2 + $0xb4] sm:$0xf]
        %v3910 = vld [vmem:[#allocation2 + $0xb8] sm:$0xf]
        %v3911 = vld [vmem:[#allocation2 + $0xbc] sm:$0x1]
        %v3944 = vunpack.c.l.b16 %v3864
        %v3945 = vunpack.c.l.b16 %v3865
        %v3946 = vunpack.c.l.b16 %v3867
        %v3947 = vunpack.c.l.b16 %v3868
        %v3948 = vunpack.c.l.b16 %v3870
        %v3949 = vunpack.c.l.b16 %v3871
        %v3950 = vunpack.c.l.b16 %v3873
        %v3951 = vunpack.c.l.b16 %v3874
        %v3952 = vunpack.c.l.b16 %v3876
        %v3953 = vunpack.c.l.b16 %v3877
        %v3954 = vunpack.c.l.b16 %v3879
        %v3955 = vunpack.c.l.b16 %v3880
        %v3956 = vunpack.c.l.b16 %v3882
        %v3957 = vunpack.c.l.b16 %v3883
        %v3958 = vunpack.c.l.b16 %v3885
        %v3959 = vunpack.c.l.b16 %v3886
        %v3960 = vunpack.c.l.b16 %v3888
        %v3961 = vunpack.c.l.b16 %v3889
        %v3962 = vunpack.c.l.b16 %v3891
        %v3963 = vunpack.c.l.b16 %v3892
        %v3964 = vunpack.c.l.b16 %v3894
        %v3965 = vunpack.c.l.b16 %v3895
        %v3966 = vunpack.c.l.b16 %v3897
        %v3967 = vunpack.c.l.b16 %v3898
        %v3968 = vunpack.c.l.b16 %v3900
        %v3969 = vunpack.c.l.b16 %v3901
        %v3970 = vunpack.c.l.b16 %v3903
        %v3971 = vunpack.c.l.b16 %v3904
        %v3972 = vunpack.c.l.b16 %v3906
        %v3973 = vunpack.c.l.b16 %v3907
        %v3974 = vunpack.c.l.b16 %v3909
        %v3975 = vunpack.c.l.b16 %v3910
        %v3976 = vpack.c.b16 %v3945, %v3944
        %v3977 = vpack.c.b16 %v3947, %v3946
        %v3978 = vpack.c.b16 %v3949, %v3948
        %v3979 = vpack.c.b16 %v3951, %v3950
        %v3980 = vpack.c.b16 %v3953, %v3952
        %v3981 = vpack.c.b16 %v3955, %v3954
        %v3982 = vpack.c.b16 %v3957, %v3956
        %v3983 = vpack.c.b16 %v3959, %v3958
        %v3984 = vpack.c.b16 %v3961, %v3960
        %v3985 = vpack.c.b16 %v3963, %v3962
        %v3986 = vpack.c.b16 %v3965, %v3964
        %v3987 = vpack.c.b16 %v3967, %v3966
        %v3988 = vpack.c.b16 %v3969, %v3968
        %v3989 = vpack.c.b16 %v3971, %v3970
        %v3990 = vpack.c.b16 %v3973, %v3972
        %v3991 = vpack.c.b16 %v3975, %v3974
        %v4024 = vunpack.c.l.b16 %v3866
        %v4025 = vunpack.c.l.b16 %v3869
        %v4026 = vunpack.c.l.b16 %v3872
        %v4027 = vunpack.c.l.b16 %v3875
        %v4028 = vunpack.c.l.b16 %v3878
        %v4029 = vunpack.c.l.b16 %v3881
        %v4030 = vunpack.c.l.b16 %v3884
        %v4031 = vunpack.c.l.b16 %v3887
        %v4032 = vunpack.c.l.b16 %v3890
        %v4033 = vunpack.c.l.b16 %v3893
        %v4034 = vunpack.c.l.b16 %v3896
        %v4035 = vunpack.c.l.b16 %v3899
        %v4036 = vunpack.c.l.b16 %v3902
        %v4037 = vunpack.c.l.b16 %v3905
        %v4038 = vunpack.c.l.b16 %v3908
        %v4039 = vunpack.c.l.b16 %v3911
        %v4040 = vpack.c.b16 %v4024, %v4024
        %v4041 = vpack.c.b16 %v4025, %v4025
        %v4042 = vpack.c.b16 %v4026, %v4026
        %v4043 = vpack.c.b16 %v4027, %v4027
        %v4044 = vpack.c.b16 %v4028, %v4028
        %v4045 = vpack.c.b16 %v4029, %v4029
        %v4046 = vpack.c.b16 %v4030, %v4030
        %v4047 = vpack.c.b16 %v4031, %v4031
        %v4048 = vpack.c.b16 %v4032, %v4032
        %v4049 = vpack.c.b16 %v4033, %v4033
        %v4050 = vpack.c.b16 %v4034, %v4034
        %v4051 = vpack.c.b16 %v4035, %v4035
        %v4052 = vpack.c.b16 %v4036, %v4036
        %v4053 = vpack.c.b16 %v4037, %v4037
        %v4054 = vpack.c.b16 %v4038, %v4038
        %v4055 = vpack.c.b16 %v4039, %v4039
        %v4057 = vshrl.u32 %v3976, 16
        %v4059 = vshll.u32 %v3976, 16
        %v4061 = vrot.slane %v4059, 1
        %v4062 = vor.u32 %v4057, %v4061
        %v4064 = vshll.u32 %v4040, 16
        %v4066 = vrot.slane %v4064, 1
        %v4067 = vsel %vm568, %v4062, %v4066
        %v4069 = vshrl.u32 %v3977, 16
        %v4071 = vshll.u32 %v3977, 16
        %v4073 = vrot.slane %v4071, 1
        %v4074 = vor.u32 %v4069, %v4073
        %v4076 = vshll.u32 %v4041, 16
        %v4078 = vrot.slane %v4076, 1
        %v4079 = vsel %vm568, %v4074, %v4078
        %v4081 = vshrl.u32 %v3978, 16
        %v4083 = vshll.u32 %v3978, 16
        %v4085 = vrot.slane %v4083, 1
        %v4086 = vor.u32 %v4081, %v4085
        %v4088 = vshll.u32 %v4042, 16
        %v4090 = vrot.slane %v4088, 1
        %v4091 = vsel %vm568, %v4086, %v4090
        %v4093 = vshrl.u32 %v3979, 16
        %v4095 = vshll.u32 %v3979, 16
        %v4097 = vrot.slane %v4095, 1
        %v4098 = vor.u32 %v4093, %v4097
        %v4100 = vshll.u32 %v4043, 16
        %v4102 = vrot.slane %v4100, 1
        %v4103 = vsel %vm568, %v4098, %v4102
        %v4105 = vshrl.u32 %v3980, 16
        %v4107 = vshll.u32 %v3980, 16
        %v4109 = vrot.slane %v4107, 1
        %v4110 = vor.u32 %v4105, %v4109
        %v4112 = vshll.u32 %v4044, 16
        %v4114 = vrot.slane %v4112, 1
        %v4115 = vsel %vm568, %v4110, %v4114
        %v4117 = vshrl.u32 %v3981, 16
        %v4119 = vshll.u32 %v3981, 16
        %v4121 = vrot.slane %v4119, 1
        %v4122 = vor.u32 %v4117, %v4121
        %v4124 = vshll.u32 %v4045, 16
        %v4126 = vrot.slane %v4124, 1
        %v4127 = vsel %vm568, %v4122, %v4126
        %v4129 = vshrl.u32 %v3982, 16
        %v4131 = vshll.u32 %v3982, 16
        %v4133 = vrot.slane %v4131, 1
        %v4134 = vor.u32 %v4129, %v4133
        %v4136 = vshll.u32 %v4046, 16
        %v4138 = vrot.slane %v4136, 1
        %v4139 = vsel %vm568, %v4134, %v4138
        %v4141 = vshrl.u32 %v3983, 16
        %v4143 = vshll.u32 %v3983, 16
        %v4145 = vrot.slane %v4143, 1
        %v4146 = vor.u32 %v4141, %v4145
        %v4148 = vshll.u32 %v4047, 16
        %v4150 = vrot.slane %v4148, 1
        %v4151 = vsel %vm568, %v4146, %v4150
        %v4153 = vshrl.u32 %v3984, 16
        %v4155 = vshll.u32 %v3984, 16
        %v4157 = vrot.slane %v4155, 1
        %v4158 = vor.u32 %v4153, %v4157
        %v4160 = vshll.u32 %v4048, 16
        %v4162 = vrot.slane %v4160, 1
        %v4163 = vsel %vm568, %v4158, %v4162
        %v4165 = vshrl.u32 %v3985, 16
        %v4167 = vshll.u32 %v3985, 16
        %v4169 = vrot.slane %v4167, 1
        %v4170 = vor.u32 %v4165, %v4169
        %v4172 = vshll.u32 %v4049, 16
        %v4174 = vrot.slane %v4172, 1
        %v4175 = vsel %vm568, %v4170, %v4174
        %v4177 = vshrl.u32 %v3986, 16
        %v4179 = vshll.u32 %v3986, 16
        %v4181 = vrot.slane %v4179, 1
        %v4182 = vor.u32 %v4177, %v4181
        %v4184 = vshll.u32 %v4050, 16
        %v4186 = vrot.slane %v4184, 1
        %v4187 = vsel %vm568, %v4182, %v4186
        %v4189 = vshrl.u32 %v3987, 16
        %v4191 = vshll.u32 %v3987, 16
        %v4193 = vrot.slane %v4191, 1
        %v4194 = vor.u32 %v4189, %v4193
        %v4196 = vshll.u32 %v4051, 16
        %v4198 = vrot.slane %v4196, 1
        %v4199 = vsel %vm568, %v4194, %v4198
        %v4201 = vshrl.u32 %v3988, 16
        %v4203 = vshll.u32 %v3988, 16
        %v4205 = vrot.slane %v4203, 1
        %v4206 = vor.u32 %v4201, %v4205
        %v4208 = vshll.u32 %v4052, 16
        %v4210 = vrot.slane %v4208, 1
        %v4211 = vsel %vm568, %v4206, %v4210
        %v4213 = vshrl.u32 %v3989, 16
        %v4215 = vshll.u32 %v3989, 16
        %v4217 = vrot.slane %v4215, 1
        %v4218 = vor.u32 %v4213, %v4217
        %v4220 = vshll.u32 %v4053, 16
        %v4222 = vrot.slane %v4220, 1
        %v4223 = vsel %vm568, %v4218, %v4222
        %v4225 = vshrl.u32 %v3990, 16
        %v4227 = vshll.u32 %v3990, 16
        %v4229 = vrot.slane %v4227, 1
        %v4230 = vor.u32 %v4225, %v4229
        %v4232 = vshll.u32 %v4054, 16
        %v4234 = vrot.slane %v4232, 1
        %v4235 = vsel %vm568, %v4230, %v4234
        %v4237 = vshrl.u32 %v3991, 16
        %v4239 = vshll.u32 %v3991, 16
        %v4241 = vrot.slane %v4239, 1
        %v4242 = vor.u32 %v4237, %v4241
        %v4244 = vshll.u32 %v4055, 16
        %v4246 = vrot.slane %v4244, 1
        %v4247 = vsel %vm568, %v4242, %v4246
        %v4264 = vrot.slane %v3976, 1
        %v4265 = vrot.slane %v4040, 1
        %v4266 = vsel %vm777, %v4264, %v4265
        %v4267 = vrot.slane %v3977, 1
        %v4268 = vrot.slane %v4041, 1
        %v4269 = vsel %vm777, %v4267, %v4268
        %v4270 = vrot.slane %v3978, 1
        %v4271 = vrot.slane %v4042, 1
        %v4272 = vsel %vm777, %v4270, %v4271
        %v4273 = vrot.slane %v3979, 1
        %v4274 = vrot.slane %v4043, 1
        %v4275 = vsel %vm777, %v4273, %v4274
        %v4276 = vrot.slane %v3980, 1
        %v4277 = vrot.slane %v4044, 1
        %v4278 = vsel %vm777, %v4276, %v4277
        %v4279 = vrot.slane %v3981, 1
        %v4280 = vrot.slane %v4045, 1
        %v4281 = vsel %vm777, %v4279, %v4280
        %v4282 = vrot.slane %v3982, 1
        %v4283 = vrot.slane %v4046, 1
        %v4284 = vsel %vm777, %v4282, %v4283
        %v4285 = vrot.slane %v3983, 1
        %v4286 = vrot.slane %v4047, 1
        %v4287 = vsel %vm777, %v4285, %v4286
        %v4288 = vrot.slane %v3984, 1
        %v4289 = vrot.slane %v4048, 1
        %v4290 = vsel %vm777, %v4288, %v4289
        %v4291 = vrot.slane %v3985, 1
        %v4292 = vrot.slane %v4049, 1
        %v4293 = vsel %vm777, %v4291, %v4292
        %v4294 = vrot.slane %v3986, 1
        %v4295 = vrot.slane %v4050, 1
        %v4296 = vsel %vm777, %v4294, %v4295
        %v4297 = vrot.slane %v3987, 1
        %v4298 = vrot.slane %v4051, 1
        %v4299 = vsel %vm777, %v4297, %v4298
        %v4300 = vrot.slane %v3988, 1
        %v4301 = vrot.slane %v4052, 1
        %v4302 = vsel %vm777, %v4300, %v4301
        %v4303 = vrot.slane %v3989, 1
        %v4304 = vrot.slane %v4053, 1
        %v4305 = vsel %vm777, %v4303, %v4304
        %v4306 = vrot.slane %v3990, 1
        %v4307 = vrot.slane %v4054, 1
        %v4308 = vsel %vm777, %v4306, %v4307
        %v4309 = vrot.slane %v3991, 1
        %v4310 = vrot.slane %v4055, 1
        %v4311 = vsel %vm777, %v4309, %v4310
        %v4328 = vld [vmem:[#allocation3] sm:$0xf]
        %v4329 = vld [vmem:[#allocation3 + $0x4] sm:$0xf]
        %v4330 = vld [vmem:[#allocation3 + $0x8] sm:$0xf]
        %v4331 = vld [vmem:[#allocation3 + $0xc] sm:$0xf]
        %v4332 = vld [vmem:[#allocation3 + $0x10] sm:$0xf]
        %v4333 = vld [vmem:[#allocation3 + $0x14] sm:$0xf]
        %v4334 = vld [vmem:[#allocation3 + $0x18] sm:$0xf]
        %v4335 = vld [vmem:[#allocation3 + $0x1c] sm:$0xf]
        %v4336 = vld [vmem:[#allocation3 + $0x20] sm:$0xf]
        %v4337 = vld [vmem:[#allocation3 + $0x24] sm:$0xf]
        %v4338 = vld [vmem:[#allocation3 + $0x28] sm:$0xf]
        %v4339 = vld [vmem:[#allocation3 + $0x2c] sm:$0xf]
        %v4340 = vld [vmem:[#allocation3 + $0x30] sm:$0xf]
        %v4341 = vld [vmem:[#allocation3 + $0x34] sm:$0xf]
        %v4342 = vld [vmem:[#allocation3 + $0x38] sm:$0xf]
        %v4343 = vld [vmem:[#allocation3 + $0x3c] sm:$0xf]
        %v4344 = vld [vmem:[#allocation3 + $0x40] sm:$0xf]
        %v4345 = vld [vmem:[#allocation3 + $0x44] sm:$0xf]
        %v4346 = vld [vmem:[#allocation3 + $0x48] sm:$0xf]
        %v4347 = vld [vmem:[#allocation3 + $0x4c] sm:$0xf]
        %v4348 = vld [vmem:[#allocation3 + $0x50] sm:$0xf]
        %v4349 = vld [vmem:[#allocation3 + $0x54] sm:$0xf]
        %v4350 = vld [vmem:[#allocation3 + $0x58] sm:$0xf]
        %v4351 = vld [vmem:[#allocation3 + $0x5c] sm:$0xf]
        %v4352 = vld [vmem:[#allocation3 + $0x60] sm:$0xf]
        %v4353 = vld [vmem:[#allocation3 + $0x64] sm:$0xf]
        %v4354 = vld [vmem:[#allocation3 + $0x68] sm:$0xf]
        %v4355 = vld [vmem:[#allocation3 + $0x6c] sm:$0xf]
        %v4356 = vld [vmem:[#allocation3 + $0x70] sm:$0xf]
        %v4357 = vld [vmem:[#allocation3 + $0x74] sm:$0xf]
        %v4358 = vld [vmem:[#allocation3 + $0x78] sm:$0xf]
        %v4359 = vld [vmem:[#allocation3 + $0x7c] sm:$0xf]
        %v4360 = vld [vmem:[#allocation3 + $0x80] sm:$0xf]
        %v4361 = vld [vmem:[#allocation3 + $0x84] sm:$0xf]
        %v4362 = vld [vmem:[#allocation3 + $0x88] sm:$0xf]
        %v4363 = vld [vmem:[#allocation3 + $0x8c] sm:$0xf]
        %v4364 = vld [vmem:[#allocation3 + $0x90] sm:$0xf]
        %v4365 = vld [vmem:[#allocation3 + $0x94] sm:$0xf]
        %v4366 = vld [vmem:[#allocation3 + $0x98] sm:$0xf]
        %v4367 = vld [vmem:[#allocation3 + $0x9c] sm:$0xf]
        %v4368 = vld [vmem:[#allocation3 + $0xa0] sm:$0xf]
        %v4369 = vld [vmem:[#allocation3 + $0xa4] sm:$0xf]
        %v4370 = vld [vmem:[#allocation3 + $0xa8] sm:$0xf]
        %v4371 = vld [vmem:[#allocation3 + $0xac] sm:$0xf]
        %v4372 = vld [vmem:[#allocation3 + $0xb0] sm:$0xf]
        %v4373 = vld [vmem:[#allocation3 + $0xb4] sm:$0xf]
        %v4374 = vld [vmem:[#allocation3 + $0xb8] sm:$0xf]
        %v4375 = vld [vmem:[#allocation3 + $0xbc] sm:$0xf]
        %v4376 = vld [vmem:[%s3294] sm:$0xf]
        %v4377 = vld [vmem:[%s3294 + $0x4] sm:$0xf]
        %v4378 = vld [vmem:[%s3294 + $0x8] sm:$0x1]
        %v4379 = vld [vmem:[%s3294 + $0xc] sm:$0xf]
        %v4380 = vld [vmem:[%s3294 + $0x10] sm:$0xf]
        %v4381 = vld [vmem:[%s3294 + $0x14] sm:$0x1]
        %v4382 = vld [vmem:[%s3294 + $0x18] sm:$0xf]
        %v4383 = vld [vmem:[%s3294 + $0x1c] sm:$0xf]
        %v4384 = vld [vmem:[%s3294 + $0x20] sm:$0x1]
        %v4385 = vld [vmem:[%s3294 + $0x24] sm:$0xf]
        %v4386 = vld [vmem:[%s3294 + $0x28] sm:$0xf]
        %v4387 = vld [vmem:[%s3294 + $0x2c] sm:$0x1]
        %v4388 = vld [vmem:[%s3294 + $0x30] sm:$0xf]
        %v4389 = vld [vmem:[%s3294 + $0x34] sm:$0xf]
        %v4390 = vld [vmem:[%s3294 + $0x38] sm:$0x1]
        %v4391 = vld [vmem:[%s3294 + $0x3c] sm:$0xf]
        %v4392 = vld [vmem:[%s3294 + $0x40] sm:$0xf]
        %v4393 = vld [vmem:[%s3294 + $0x44] sm:$0x1]
        %v4394 = vld [vmem:[%s3294 + $0x48] sm:$0xf]
        %v4395 = vld [vmem:[%s3294 + $0x4c] sm:$0xf]
        %v4396 = vld [vmem:[%s3294 + $0x50] sm:$0x1]
        %v4397 = vld [vmem:[%s3294 + $0x54] sm:$0xf]
        %v4398 = vld [vmem:[%s3294 + $0x58] sm:$0xf]
        %v4399 = vld [vmem:[%s3294 + $0x5c] sm:$0x1]
        %v4400 = vld [vmem:[%s3294 + $0x60] sm:$0xf]
        %v4401 = vld [vmem:[%s3294 + $0x64] sm:$0xf]
        %v4402 = vld [vmem:[%s3294 + $0x68] sm:$0x1]
        %v4403 = vld [vmem:[%s3294 + $0x6c] sm:$0xf]
        %v4404 = vld [vmem:[%s3294 + $0x70] sm:$0xf]
        %v4405 = vld [vmem:[%s3294 + $0x74] sm:$0x1]
        %v4406 = vld [vmem:[%s3294 + $0x78] sm:$0xf]
        %v4407 = vld [vmem:[%s3294 + $0x7c] sm:$0xf]
        %v4408 = vld [vmem:[%s3294 + $0x80] sm:$0x1]
        %v4409 = vld [vmem:[%s3294 + $0x84] sm:$0xf]
        %v4410 = vld [vmem:[%s3294 + $0x88] sm:$0xf]
        %v4411 = vld [vmem:[%s3294 + $0x8c] sm:$0x1]
        %v4412 = vld [vmem:[%s3294 + $0x90] sm:$0xf]
        %v4413 = vld [vmem:[%s3294 + $0x94] sm:$0xf]
        %v4414 = vld [vmem:[%s3294 + $0x98] sm:$0x1]
        %v4415 = vld [vmem:[%s3294 + $0x9c] sm:$0xf]
        %v4416 = vld [vmem:[%s3294 + $0xa0] sm:$0xf]
        %v4417 = vld [vmem:[%s3294 + $0xa4] sm:$0x1]
        %v4418 = vld [vmem:[%s3294 + $0xa8] sm:$0xf]
        %v4419 = vld [vmem:[%s3294 + $0xac] sm:$0xf]
        %v4420 = vld [vmem:[%s3294 + $0xb0] sm:$0x1]
        %v4421 = vld [vmem:[%s3294 + $0xb4] sm:$0xf]
        %v4422 = vld [vmem:[%s3294 + $0xb8] sm:$0xf]
        %v4423 = vld [vmem:[%s3294 + $0xbc] sm:$0x1]
        %v4456 = vunpack.c.l.b16 %v4376
        %v4457 = vunpack.c.l.b16 %v4377
        %v4458 = vunpack.c.l.b16 %v4379
        %v4459 = vunpack.c.l.b16 %v4380
        %v4460 = vunpack.c.l.b16 %v4382
        %v4461 = vunpack.c.l.b16 %v4383
        %v4462 = vunpack.c.l.b16 %v4385
        %v4463 = vunpack.c.l.b16 %v4386
        %v4464 = vunpack.c.l.b16 %v4388
        %v4465 = vunpack.c.l.b16 %v4389
        %v4466 = vunpack.c.l.b16 %v4391
        %v4467 = vunpack.c.l.b16 %v4392
        %v4468 = vunpack.c.l.b16 %v4394
        %v4469 = vunpack.c.l.b16 %v4395
        %v4470 = vunpack.c.l.b16 %v4397
        %v4471 = vunpack.c.l.b16 %v4398
        %v4472 = vunpack.c.l.b16 %v4400
        %v4473 = vunpack.c.l.b16 %v4401
        %v4474 = vunpack.c.l.b16 %v4403
        %v4475 = vunpack.c.l.b16 %v4404
        %v4476 = vunpack.c.l.b16 %v4406
        %v4477 = vunpack.c.l.b16 %v4407
        %v4478 = vunpack.c.l.b16 %v4409
        %v4479 = vunpack.c.l.b16 %v4410
        %v4480 = vunpack.c.l.b16 %v4412
        %v4481 = vunpack.c.l.b16 %v4413
        %v4482 = vunpack.c.l.b16 %v4415
        %v4483 = vunpack.c.l.b16 %v4416
        %v4484 = vunpack.c.l.b16 %v4418
        %v4485 = vunpack.c.l.b16 %v4419
        %v4486 = vunpack.c.l.b16 %v4421
        %v4487 = vunpack.c.l.b16 %v4422
        %v4488 = vpack.c.b16 %v4457, %v4456
        %v4489 = vpack.c.b16 %v4459, %v4458
        %v4490 = vpack.c.b16 %v4461, %v4460
        %v4491 = vpack.c.b16 %v4463, %v4462
        %v4492 = vpack.c.b16 %v4465, %v4464
        %v4493 = vpack.c.b16 %v4467, %v4466
        %v4494 = vpack.c.b16 %v4469, %v4468
        %v4495 = vpack.c.b16 %v4471, %v4470
        %v4496 = vpack.c.b16 %v4473, %v4472
        %v4497 = vpack.c.b16 %v4475, %v4474
        %v4498 = vpack.c.b16 %v4477, %v4476
        %v4499 = vpack.c.b16 %v4479, %v4478
        %v4500 = vpack.c.b16 %v4481, %v4480
        %v4501 = vpack.c.b16 %v4483, %v4482
        %v4502 = vpack.c.b16 %v4485, %v4484
        %v4503 = vpack.c.b16 %v4487, %v4486
        %v4536 = vunpack.c.l.b16 %v4378
        %v4537 = vunpack.c.l.b16 %v4381
        %v4538 = vunpack.c.l.b16 %v4384
        %v4539 = vunpack.c.l.b16 %v4387
        %v4540 = vunpack.c.l.b16 %v4390
        %v4541 = vunpack.c.l.b16 %v4393
        %v4542 = vunpack.c.l.b16 %v4396
        %v4543 = vunpack.c.l.b16 %v4399
        %v4544 = vunpack.c.l.b16 %v4402
        %v4545 = vunpack.c.l.b16 %v4405
        %v4546 = vunpack.c.l.b16 %v4408
        %v4547 = vunpack.c.l.b16 %v4411
        %v4548 = vunpack.c.l.b16 %v4414
        %v4549 = vunpack.c.l.b16 %v4417
        %v4550 = vunpack.c.l.b16 %v4420
        %v4551 = vunpack.c.l.b16 %v4423
        %v4552 = vpack.c.b16 %v4536, %v4536
        %v4553 = vpack.c.b16 %v4537, %v4537
        %v4554 = vpack.c.b16 %v4538, %v4538
        %v4555 = vpack.c.b16 %v4539, %v4539
        %v4556 = vpack.c.b16 %v4540, %v4540
        %v4557 = vpack.c.b16 %v4541, %v4541
        %v4558 = vpack.c.b16 %v4542, %v4542
        %v4559 = vpack.c.b16 %v4543, %v4543
        %v4560 = vpack.c.b16 %v4544, %v4544
        %v4561 = vpack.c.b16 %v4545, %v4545
        %v4562 = vpack.c.b16 %v4546, %v4546
        %v4563 = vpack.c.b16 %v4547, %v4547
        %v4564 = vpack.c.b16 %v4548, %v4548
        %v4565 = vpack.c.b16 %v4549, %v4549
        %v4566 = vpack.c.b16 %v4550, %v4550
        %v4567 = vpack.c.b16 %v4551, %v4551
        %v4569 = vshrl.u32 %v4488, 16
        %v4571 = vshll.u32 %v4488, 16
        %v4573 = vrot.slane %v4571, 1
        %v4574 = vor.u32 %v4569, %v4573
        %v4576 = vshll.u32 %v4552, 16
        %v4578 = vrot.slane %v4576, 1
        %v4579 = vsel %vm568, %v4574, %v4578
        %v4581 = vshrl.u32 %v4489, 16
        %v4583 = vshll.u32 %v4489, 16
        %v4585 = vrot.slane %v4583, 1
        %v4586 = vor.u32 %v4581, %v4585
        %v4588 = vshll.u32 %v4553, 16
        %v4590 = vrot.slane %v4588, 1
        %v4591 = vsel %vm568, %v4586, %v4590
        %v4593 = vshrl.u32 %v4490, 16
        %v4595 = vshll.u32 %v4490, 16
        %v4597 = vrot.slane %v4595, 1
        %v4598 = vor.u32 %v4593, %v4597
        %v4600 = vshll.u32 %v4554, 16
        %v4602 = vrot.slane %v4600, 1
        %v4603 = vsel %vm568, %v4598, %v4602
        %v4605 = vshrl.u32 %v4491, 16
        %v4607 = vshll.u32 %v4491, 16
        %v4609 = vrot.slane %v4607, 1
        %v4610 = vor.u32 %v4605, %v4609
        %v4612 = vshll.u32 %v4555, 16
        %v4614 = vrot.slane %v4612, 1
        %v4615 = vsel %vm568, %v4610, %v4614
        %v4617 = vshrl.u32 %v4492, 16
        %v4619 = vshll.u32 %v4492, 16
        %v4621 = vrot.slane %v4619, 1
        %v4622 = vor.u32 %v4617, %v4621
        %v4624 = vshll.u32 %v4556, 16
        %v4626 = vrot.slane %v4624, 1
        %v4627 = vsel %vm568, %v4622, %v4626
        %v4629 = vshrl.u32 %v4493, 16
        %v4631 = vshll.u32 %v4493, 16
        %v4633 = vrot.slane %v4631, 1
        %v4634 = vor.u32 %v4629, %v4633
        %v4636 = vshll.u32 %v4557, 16
        %v4638 = vrot.slane %v4636, 1
        %v4639 = vsel %vm568, %v4634, %v4638
        %v4641 = vshrl.u32 %v4494, 16
        %v4643 = vshll.u32 %v4494, 16
        %v4645 = vrot.slane %v4643, 1
        %v4646 = vor.u32 %v4641, %v4645
        %v4648 = vshll.u32 %v4558, 16
        %v4650 = vrot.slane %v4648, 1
        %v4651 = vsel %vm568, %v4646, %v4650
        %v4653 = vshrl.u32 %v4495, 16
        %v4655 = vshll.u32 %v4495, 16
        %v4657 = vrot.slane %v4655, 1
        %v4658 = vor.u32 %v4653, %v4657
        %v4660 = vshll.u32 %v4559, 16
        %v4662 = vrot.slane %v4660, 1
        %v4663 = vsel %vm568, %v4658, %v4662
        %v4665 = vshrl.u32 %v4496, 16
        %v4667 = vshll.u32 %v4496, 16
        %v4669 = vrot.slane %v4667, 1
        %v4670 = vor.u32 %v4665, %v4669
        %v4672 = vshll.u32 %v4560, 16
        %v4674 = vrot.slane %v4672, 1
        %v4675 = vsel %vm568, %v4670, %v4674
        %v4677 = vshrl.u32 %v4497, 16
        %v4679 = vshll.u32 %v4497, 16
        %v4681 = vrot.slane %v4679, 1
        %v4682 = vor.u32 %v4677, %v4681
        %v4684 = vshll.u32 %v4561, 16
        %v4686 = vrot.slane %v4684, 1
        %v4687 = vsel %vm568, %v4682, %v4686
        %v4689 = vshrl.u32 %v4498, 16
        %v4691 = vshll.u32 %v4498, 16
        %v4693 = vrot.slane %v4691, 1
        %v4694 = vor.u32 %v4689, %v4693
        %v4696 = vshll.u32 %v4562, 16
        %v4698 = vrot.slane %v4696, 1
        %v4699 = vsel %vm568, %v4694, %v4698
        %v4701 = vshrl.u32 %v4499, 16
        %v4703 = vshll.u32 %v4499, 16
        %v4705 = vrot.slane %v4703, 1
        %v4706 = vor.u32 %v4701, %v4705
        %v4708 = vshll.u32 %v4563, 16
        %v4710 = vrot.slane %v4708, 1
        %v4711 = vsel %vm568, %v4706, %v4710
        %v4713 = vshrl.u32 %v4500, 16
        %v4715 = vshll.u32 %v4500, 16
        %v4717 = vrot.slane %v4715, 1
        %v4718 = vor.u32 %v4713, %v4717
        %v4720 = vshll.u32 %v4564, 16
        %v4722 = vrot.slane %v4720, 1
        %v4723 = vsel %vm568, %v4718, %v4722
        %v4725 = vshrl.u32 %v4501, 16
        %v4727 = vshll.u32 %v4501, 16
        %v4729 = vrot.slane %v4727, 1
        %v4730 = vor.u32 %v4725, %v4729
        %v4732 = vshll.u32 %v4565, 16
        %v4734 = vrot.slane %v4732, 1
        %v4735 = vsel %vm568, %v4730, %v4734
        %v4737 = vshrl.u32 %v4502, 16
        %v4739 = vshll.u32 %v4502, 16
        %v4741 = vrot.slane %v4739, 1
        %v4742 = vor.u32 %v4737, %v4741
        %v4744 = vshll.u32 %v4566, 16
        %v4746 = vrot.slane %v4744, 1
        %v4747 = vsel %vm568, %v4742, %v4746
        %v4749 = vshrl.u32 %v4503, 16
        %v4751 = vshll.u32 %v4503, 16
        %v4753 = vrot.slane %v4751, 1
        %v4754 = vor.u32 %v4749, %v4753
        %v4756 = vshll.u32 %v4567, 16
        %v4758 = vrot.slane %v4756, 1
        %v4759 = vsel %vm568, %v4754, %v4758
        %v4776 = vrot.slane %v4488, 1
        %v4777 = vrot.slane %v4552, 1
        %v4778 = vsel %vm777, %v4776, %v4777
        %v4779 = vrot.slane %v4489, 1
        %v4780 = vrot.slane %v4553, 1
        %v4781 = vsel %vm777, %v4779, %v4780
        %v4782 = vrot.slane %v4490, 1
        %v4783 = vrot.slane %v4554, 1
        %v4784 = vsel %vm777, %v4782, %v4783
        %v4785 = vrot.slane %v4491, 1
        %v4786 = vrot.slane %v4555, 1
        %v4787 = vsel %vm777, %v4785, %v4786
        %v4788 = vrot.slane %v4492, 1
        %v4789 = vrot.slane %v4556, 1
        %v4790 = vsel %vm777, %v4788, %v4789
        %v4791 = vrot.slane %v4493, 1
        %v4792 = vrot.slane %v4557, 1
        %v4793 = vsel %vm777, %v4791, %v4792
        %v4794 = vrot.slane %v4494, 1
        %v4795 = vrot.slane %v4558, 1
        %v4796 = vsel %vm777, %v4794, %v4795
        %v4797 = vrot.slane %v4495, 1
        %v4798 = vrot.slane %v4559, 1
        %v4799 = vsel %vm777, %v4797, %v4798
        %v4800 = vrot.slane %v4496, 1
        %v4801 = vrot.slane %v4560, 1
        %v4802 = vsel %vm777, %v4800, %v4801
        %v4803 = vrot.slane %v4497, 1
        %v4804 = vrot.slane %v4561, 1
        %v4805 = vsel %vm777, %v4803, %v4804
        %v4806 = vrot.slane %v4498, 1
        %v4807 = vrot.slane %v4562, 1
        %v4808 = vsel %vm777, %v4806, %v4807
        %v4809 = vrot.slane %v4499, 1
        %v4810 = vrot.slane %v4563, 1
        %v4811 = vsel %vm777, %v4809, %v4810
        %v4812 = vrot.slane %v4500, 1
        %v4813 = vrot.slane %v4564, 1
        %v4814 = vsel %vm777, %v4812, %v4813
        %v4815 = vrot.slane %v4501, 1
        %v4816 = vrot.slane %v4565, 1
        %v4817 = vsel %vm777, %v4815, %v4816
        %v4818 = vrot.slane %v4502, 1
        %v4819 = vrot.slane %v4566, 1
        %v4820 = vsel %vm777, %v4818, %v4819
        %v4821 = vrot.slane %v4503, 1
        %v4822 = vrot.slane %v4567, 1
        %v4823 = vsel %vm777, %v4821, %v4822
        %s4840 = scalar_lea.vmem [#allocation3], 192
        %v4841 = vld [vmem:[%s4840] sm:$0xf]
        %v4842 = vld [vmem:[%s4840 + $0x4] sm:$0xf]
        %v4843 = vld [vmem:[%s4840 + $0x8] sm:$0xf]
        %v4844 = vld [vmem:[%s4840 + $0xc] sm:$0xf]
        %v4845 = vld [vmem:[%s4840 + $0x10] sm:$0xf]
        %v4846 = vld [vmem:[%s4840 + $0x14] sm:$0xf]
        %v4847 = vld [vmem:[%s4840 + $0x18] sm:$0xf]
        %v4848 = vld [vmem:[%s4840 + $0x1c] sm:$0xf]
        %v4849 = vld [vmem:[%s4840 + $0x20] sm:$0xf]
        %v4850 = vld [vmem:[%s4840 + $0x24] sm:$0xf]
        %v4851 = vld [vmem:[%s4840 + $0x28] sm:$0xf]
        %v4852 = vld [vmem:[%s4840 + $0x2c] sm:$0xf]
        %v4853 = vld [vmem:[%s4840 + $0x30] sm:$0xf]
        %v4854 = vld [vmem:[%s4840 + $0x34] sm:$0xf]
        %v4855 = vld [vmem:[%s4840 + $0x38] sm:$0xf]
        %v4856 = vld [vmem:[%s4840 + $0x3c] sm:$0xf]
        %v4857 = vld [vmem:[%s4840 + $0x40] sm:$0xf]
        %v4858 = vld [vmem:[%s4840 + $0x44] sm:$0xf]
        %v4859 = vld [vmem:[%s4840 + $0x48] sm:$0xf]
        %v4860 = vld [vmem:[%s4840 + $0x4c] sm:$0xf]
        %v4861 = vld [vmem:[%s4840 + $0x50] sm:$0xf]
        %v4862 = vld [vmem:[%s4840 + $0x54] sm:$0xf]
        %v4863 = vld [vmem:[%s4840 + $0x58] sm:$0xf]
        %v4864 = vld [vmem:[%s4840 + $0x5c] sm:$0xf]
        %v4865 = vld [vmem:[%s4840 + $0x60] sm:$0xf]
        %v4866 = vld [vmem:[%s4840 + $0x64] sm:$0xf]
        %v4867 = vld [vmem:[%s4840 + $0x68] sm:$0xf]
        %v4868 = vld [vmem:[%s4840 + $0x6c] sm:$0xf]
        %v4869 = vld [vmem:[%s4840 + $0x70] sm:$0xf]
        %v4870 = vld [vmem:[%s4840 + $0x74] sm:$0xf]
        %v4871 = vld [vmem:[%s4840 + $0x78] sm:$0xf]
        %v4872 = vld [vmem:[%s4840 + $0x7c] sm:$0xf]
        %v4873 = vld [vmem:[%s4840 + $0x80] sm:$0xf]
        %v4874 = vld [vmem:[%s4840 + $0x84] sm:$0xf]
        %v4875 = vld [vmem:[%s4840 + $0x88] sm:$0xf]
        %v4876 = vld [vmem:[%s4840 + $0x8c] sm:$0xf]
        %v4877 = vld [vmem:[%s4840 + $0x90] sm:$0xf]
        %v4878 = vld [vmem:[%s4840 + $0x94] sm:$0xf]
        %v4879 = vld [vmem:[%s4840 + $0x98] sm:$0xf]
        %v4880 = vld [vmem:[%s4840 + $0x9c] sm:$0xf]
        %v4881 = vld [vmem:[%s4840 + $0xa0] sm:$0xf]
        %v4882 = vld [vmem:[%s4840 + $0xa4] sm:$0xf]
        %v4883 = vld [vmem:[%s4840 + $0xa8] sm:$0xf]
        %v4884 = vld [vmem:[%s4840 + $0xac] sm:$0xf]
        %v4885 = vld [vmem:[%s4840 + $0xb0] sm:$0xf]
        %v4886 = vld [vmem:[%s4840 + $0xb4] sm:$0xf]
        %v4887 = vld [vmem:[%s4840 + $0xb8] sm:$0xf]
        %v4888 = vld [vmem:[%s4840 + $0xbc] sm:$0xf]
        %v4937 = vunpack.c.l.b16 %v4841
        %v4938 = vunpack.c.l.b16 %v4842
        %v4939 = vunpack.c.l.b16 %v4843
        %v4940 = vunpack.c.l.b16 %v4844
        %v4941 = vunpack.c.l.b16 %v4845
        %v4942 = vunpack.c.l.b16 %v4846
        %v4943 = vunpack.c.l.b16 %v4847
        %v4944 = vunpack.c.l.b16 %v4848
        %v4945 = vunpack.c.l.b16 %v4849
        %v4946 = vunpack.c.l.b16 %v4850
        %v4947 = vunpack.c.l.b16 %v4851
        %v4948 = vunpack.c.l.b16 %v4852
        %v4949 = vunpack.c.l.b16 %v4853
        %v4950 = vunpack.c.l.b16 %v4854
        %v4951 = vunpack.c.l.b16 %v4855
        %v4952 = vunpack.c.l.b16 %v4856
        %v4953 = vunpack.c.l.b16 %v4857
        %v4954 = vunpack.c.l.b16 %v4858
        %v4955 = vunpack.c.l.b16 %v4859
        %v4956 = vunpack.c.l.b16 %v4860
        %v4957 = vunpack.c.l.b16 %v4861
        %v4958 = vunpack.c.l.b16 %v4862
        %v4959 = vunpack.c.l.b16 %v4863
        %v4960 = vunpack.c.l.b16 %v4864
        %v4961 = vunpack.c.l.b16 %v4865
        %v4962 = vunpack.c.l.b16 %v4866
        %v4963 = vunpack.c.l.b16 %v4867
        %v4964 = vunpack.c.l.b16 %v4868
        %v4965 = vunpack.c.l.b16 %v4869
        %v4966 = vunpack.c.l.b16 %v4870
        %v4967 = vunpack.c.l.b16 %v4871
        %v4968 = vunpack.c.l.b16 %v4872
        %v4969 = vunpack.c.l.b16 %v4873
        %v4970 = vunpack.c.l.b16 %v4874
        %v4971 = vunpack.c.l.b16 %v4875
        %v4972 = vunpack.c.l.b16 %v4876
        %v4973 = vunpack.c.l.b16 %v4877
        %v4974 = vunpack.c.l.b16 %v4878
        %v4975 = vunpack.c.l.b16 %v4879
        %v4976 = vunpack.c.l.b16 %v4880
        %v4977 = vunpack.c.l.b16 %v4881
        %v4978 = vunpack.c.l.b16 %v4882
        %v4979 = vunpack.c.l.b16 %v4883
        %v4980 = vunpack.c.l.b16 %v4884
        %v4981 = vunpack.c.l.b16 %v4885
        %v4982 = vunpack.c.l.b16 %v4886
        %v4983 = vunpack.c.l.b16 %v4887
        %v4984 = vunpack.c.l.b16 %v4888
        %v4985 = vpack.c.b16 %v4938, %v4937
        %v4986 = vpack.c.b16 %v4940, %v4939
        %v4987 = vpack.c.b16 %v4942, %v4941
        %v4988 = vpack.c.b16 %v4944, %v4943
        %v4989 = vpack.c.b16 %v4946, %v4945
        %v4990 = vpack.c.b16 %v4948, %v4947
        %v4991 = vpack.c.b16 %v4950, %v4949
        %v4992 = vpack.c.b16 %v4952, %v4951
        %v4993 = vpack.c.b16 %v4954, %v4953
        %v4994 = vpack.c.b16 %v4956, %v4955
        %v4995 = vpack.c.b16 %v4958, %v4957
        %v4996 = vpack.c.b16 %v4960, %v4959
        %v4997 = vpack.c.b16 %v4962, %v4961
        %v4998 = vpack.c.b16 %v4964, %v4963
        %v4999 = vpack.c.b16 %v4966, %v4965
        %v5000 = vpack.c.b16 %v4968, %v4967
        %v5001 = vpack.c.b16 %v4970, %v4969
        %v5002 = vpack.c.b16 %v4972, %v4971
        %v5003 = vpack.c.b16 %v4974, %v4973
        %v5004 = vpack.c.b16 %v4976, %v4975
        %v5005 = vpack.c.b16 %v4978, %v4977
        %v5006 = vpack.c.b16 %v4980, %v4979
        %v5007 = vpack.c.b16 %v4982, %v4981
        %v5008 = vpack.c.b16 %v4984, %v4983
        %5033 = vmatpush.bf16.msra.mxu0 %v4992
        %5034 = vmatpush.bf16.msra.mxu0 %v4991
        %5035 = vmatpush.bf16.msra.mxu0 %v4990
        %5036 = vmatpush.bf16.msra.mxu0 %v4989
        %5037 = vmatpush.bf16.msra.mxu0 %v4988
        %5038 = vmatpush.bf16.msra.mxu0 %v4987
        %5039 = vmatpush.bf16.msra.mxu0 %v4986
        %5040 = vmatpush.bf16.msra.mxu0 %v4985
        %5041 = vmatmul.bf16.gmra.mxu0 %v4488
        %v5042 = vpop.f32.mrf.mxu0
        %v5043 = vadd.f32 0.0, %v5042
        %v5044 = vpop.f32.mrf.mxu0
        %v5045 = vadd.f32 0.0, %v5044
        %5046 = vmatmul.bf16.gmra.mxu0 %v4489
        %v5047 = vpop.f32.mrf.mxu0
        %v5048 = vadd.f32 0.0, %v5047
        %v5049 = vpop.f32.mrf.mxu0
        %v5050 = vadd.f32 0.0, %v5049
        %5051 = vmatmul.bf16.gmra.mxu0 %v4490
        %v5052 = vpop.f32.mrf.mxu0
        %v5053 = vadd.f32 0.0, %v5052
        %v5054 = vpop.f32.mrf.mxu0
        %v5055 = vadd.f32 0.0, %v5054
        %5056 = vmatmul.bf16.gmra.mxu0 %v4491
        %v5057 = vpop.f32.mrf.mxu0
        %v5058 = vadd.f32 0.0, %v5057
        %v5059 = vpop.f32.mrf.mxu0
        %v5060 = vadd.f32 0.0, %v5059
        %5061 = vmatmul.bf16.gmra.mxu0 %v4492
        %v5062 = vpop.f32.mrf.mxu0
        %v5063 = vadd.f32 0.0, %v5062
        %v5064 = vpop.f32.mrf.mxu0
        %v5065 = vadd.f32 0.0, %v5064
        %5066 = vmatmul.bf16.gmra.mxu0 %v4493
        %v5067 = vpop.f32.mrf.mxu0
        %v5068 = vadd.f32 0.0, %v5067
        %v5069 = vpop.f32.mrf.mxu0
        %v5070 = vadd.f32 0.0, %v5069
        %5071 = vmatmul.bf16.gmra.mxu0 %v4494
        %v5072 = vpop.f32.mrf.mxu0
        %v5073 = vadd.f32 0.0, %v5072
        %v5074 = vpop.f32.mrf.mxu0
        %v5075 = vadd.f32 0.0, %v5074
        %5076 = vmatmul.bf16.gmra.mxu0 %v4495
        %v5077 = vpop.f32.mrf.mxu0
        %v5078 = vadd.f32 0.0, %v5077
        %v5079 = vpop.f32.mrf.mxu0
        %v5080 = vadd.f32 0.0, %v5079
        %5081 = vmatmul.bf16.gmra.mxu0 %v4496
        %v5082 = vpop.f32.mrf.mxu0
        %v5083 = vadd.f32 0.0, %v5082
        %v5084 = vpop.f32.mrf.mxu0
        %v5085 = vadd.f32 0.0, %v5084
        %5086 = vmatmul.bf16.gmra.mxu0 %v4497
        %v5087 = vpop.f32.mrf.mxu0
        %v5088 = vadd.f32 0.0, %v5087
        %v5089 = vpop.f32.mrf.mxu0
        %v5090 = vadd.f32 0.0, %v5089
        %5091 = vmatmul.bf16.gmra.mxu0 %v4498
        %v5092 = vpop.f32.mrf.mxu0
        %v5093 = vadd.f32 0.0, %v5092
        %v5094 = vpop.f32.mrf.mxu0
        %v5095 = vadd.f32 0.0, %v5094
        %5096 = vmatmul.bf16.gmra.mxu0 %v4499
        %v5097 = vpop.f32.mrf.mxu0
        %v5098 = vadd.f32 0.0, %v5097
        %v5099 = vpop.f32.mrf.mxu0
        %v5100 = vadd.f32 0.0, %v5099
        %5101 = vmatmul.bf16.gmra.mxu0 %v4500
        %v5102 = vpop.f32.mrf.mxu0
        %v5103 = vadd.f32 0.0, %v5102
        %v5104 = vpop.f32.mrf.mxu0
        %v5105 = vadd.f32 0.0, %v5104
        %5106 = vmatmul.bf16.gmra.mxu0 %v4501
        %v5107 = vpop.f32.mrf.mxu0
        %v5108 = vadd.f32 0.0, %v5107
        %v5109 = vpop.f32.mrf.mxu0
        %v5110 = vadd.f32 0.0, %v5109
        %5111 = vmatmul.bf16.gmra.mxu0 %v4502
        %v5112 = vpop.f32.mrf.mxu0
        %v5113 = vadd.f32 0.0, %v5112
        %v5114 = vpop.f32.mrf.mxu0
        %v5115 = vadd.f32 0.0, %v5114
        %5116 = vmatmul.bf16.gmra.mxu0 %v4503
        %v5117 = vpop.f32.mrf.mxu0
        %v5118 = vadd.f32 0.0, %v5117
        %v5119 = vpop.f32.mrf.mxu0
        %v5120 = vadd.f32 0.0, %v5119
        %5121 = vdwg.mxu0
        %5122 = vmatpush.bf16.msra.mxu0 %v5000
        %5123 = vmatpush.bf16.msra.mxu0 %v4999
        %5124 = vmatpush.bf16.msra.mxu0 %v4998
        %5125 = vmatpush.bf16.msra.mxu0 %v4997
        %5126 = vmatpush.bf16.msra.mxu0 %v4996
        %5127 = vmatpush.bf16.msra.mxu0 %v4995
        %5128 = vmatpush.bf16.msra.mxu0 %v4994
        %5129 = vmatpush.bf16.msra.mxu0 %v4993
        %5130 = vmatmul.bf16.gmra.mxu0 %v4579
        %v5131 = vpop.f32.mrf.mxu0
        %v5132 = vadd.f32 %v5043, %v5131
        %v5133 = vpop.f32.mrf.mxu0
        %v5134 = vadd.f32 %v5045, %v5133
        %5135 = vmatmul.bf16.gmra.mxu0 %v4591
        %v5136 = vpop.f32.mrf.mxu0
        %v5137 = vadd.f32 %v5048, %v5136
        %v5138 = vpop.f32.mrf.mxu0
        %v5139 = vadd.f32 %v5050, %v5138
        %5140 = vmatmul.bf16.gmra.mxu0 %v4603
        %v5141 = vpop.f32.mrf.mxu0
        %v5142 = vadd.f32 %v5053, %v5141
        %v5143 = vpop.f32.mrf.mxu0
        %v5144 = vadd.f32 %v5055, %v5143
        %5145 = vmatmul.bf16.gmra.mxu0 %v4615
        %v5146 = vpop.f32.mrf.mxu0
        %v5147 = vadd.f32 %v5058, %v5146
        %v5148 = vpop.f32.mrf.mxu0
        %v5149 = vadd.f32 %v5060, %v5148
        %5150 = vmatmul.bf16.gmra.mxu0 %v4627
        %v5151 = vpop.f32.mrf.mxu0
        %v5152 = vadd.f32 %v5063, %v5151
        %v5153 = vpop.f32.mrf.mxu0
        %v5154 = vadd.f32 %v5065, %v5153
        %5155 = vmatmul.bf16.gmra.mxu0 %v4639
        %v5156 = vpop.f32.mrf.mxu0
        %v5157 = vadd.f32 %v5068, %v5156
        %v5158 = vpop.f32.mrf.mxu0
        %v5159 = vadd.f32 %v5070, %v5158
        %5160 = vmatmul.bf16.gmra.mxu0 %v4651
        %v5161 = vpop.f32.mrf.mxu0
        %v5162 = vadd.f32 %v5073, %v5161
        %v5163 = vpop.f32.mrf.mxu0
        %v5164 = vadd.f32 %v5075, %v5163
        %5165 = vmatmul.bf16.gmra.mxu0 %v4663
        %v5166 = vpop.f32.mrf.mxu0
        %v5167 = vadd.f32 %v5078, %v5166
        %v5168 = vpop.f32.mrf.mxu0
        %v5169 = vadd.f32 %v5080, %v5168
        %5170 = vmatmul.bf16.gmra.mxu0 %v4675
        %v5171 = vpop.f32.mrf.mxu0
        %v5172 = vadd.f32 %v5083, %v5171
        %v5173 = vpop.f32.mrf.mxu0
        %v5174 = vadd.f32 %v5085, %v5173
        %5175 = vmatmul.bf16.gmra.mxu0 %v4687
        %v5176 = vpop.f32.mrf.mxu0
        %v5177 = vadd.f32 %v5088, %v5176
        %v5178 = vpop.f32.mrf.mxu0
        %v5179 = vadd.f32 %v5090, %v5178
        %5180 = vmatmul.bf16.gmra.mxu0 %v4699
        %v5181 = vpop.f32.mrf.mxu0
        %v5182 = vadd.f32 %v5093, %v5181
        %v5183 = vpop.f32.mrf.mxu0
        %v5184 = vadd.f32 %v5095, %v5183
        %5185 = vmatmul.bf16.gmra.mxu0 %v4711
        %v5186 = vpop.f32.mrf.mxu0
        %v5187 = vadd.f32 %v5098, %v5186
        %v5188 = vpop.f32.mrf.mxu0
        %v5189 = vadd.f32 %v5100, %v5188
        %5190 = vmatmul.bf16.gmra.mxu0 %v4723
        %v5191 = vpop.f32.mrf.mxu0
        %v5192 = vadd.f32 %v5103, %v5191
        %v5193 = vpop.f32.mrf.mxu0
        %v5194 = vadd.f32 %v5105, %v5193
        %5195 = vmatmul.bf16.gmra.mxu0 %v4735
        %v5196 = vpop.f32.mrf.mxu0
        %v5197 = vadd.f32 %v5108, %v5196
        %v5198 = vpop.f32.mrf.mxu0
        %v5199 = vadd.f32 %v5110, %v5198
        %5200 = vmatmul.bf16.gmra.mxu0 %v4747
        %v5201 = vpop.f32.mrf.mxu0
        %v5202 = vadd.f32 %v5113, %v5201
        %v5203 = vpop.f32.mrf.mxu0
        %v5204 = vadd.f32 %v5115, %v5203
        %5205 = vmatmul.bf16.gmra.mxu0 %v4759
        %v5206 = vpop.f32.mrf.mxu0
        %v5207 = vadd.f32 %v5118, %v5206
        %v5208 = vpop.f32.mrf.mxu0
        %v5209 = vadd.f32 %v5120, %v5208
        %5210 = vdwg.mxu0
        %5211 = vmatpush.bf16.msra.mxu0 %v5008
        %5212 = vmatpush.bf16.msra.mxu0 %v5007
        %5213 = vmatpush.bf16.msra.mxu0 %v5006
        %5214 = vmatpush.bf16.msra.mxu0 %v5005
        %5215 = vmatpush.bf16.msra.mxu0 %v5004
        %5216 = vmatpush.bf16.msra.mxu0 %v5003
        %5217 = vmatpush.bf16.msra.mxu0 %v5002
        %5218 = vmatpush.bf16.msra.mxu0 %v5001
        %5219 = vmatmul.bf16.gmra.mxu0 %v4778
        %v5220 = vpop.f32.mrf.mxu0
        %v5221 = vadd.f32 %v5132, %v5220
        %v5222 = vpop.f32.mrf.mxu0
        %v5223 = vadd.f32 %v5134, %v5222
        %5224 = vmatmul.bf16.gmra.mxu0 %v4781
        %v5225 = vpop.f32.mrf.mxu0
        %v5226 = vadd.f32 %v5137, %v5225
        %v5227 = vpop.f32.mrf.mxu0
        %v5228 = vadd.f32 %v5139, %v5227
        %5229 = vmatmul.bf16.gmra.mxu0 %v4784
        %v5230 = vpop.f32.mrf.mxu0
        %v5231 = vadd.f32 %v5142, %v5230
        %v5232 = vpop.f32.mrf.mxu0
        %v5233 = vadd.f32 %v5144, %v5232
        %5234 = vmatmul.bf16.gmra.mxu0 %v4787
        %v5235 = vpop.f32.mrf.mxu0
        %v5236 = vadd.f32 %v5147, %v5235
        %v5237 = vpop.f32.mrf.mxu0
        %v5238 = vadd.f32 %v5149, %v5237
        %5239 = vmatmul.bf16.gmra.mxu0 %v4790
        %v5240 = vpop.f32.mrf.mxu0
        %v5241 = vadd.f32 %v5152, %v5240
        %v5242 = vpop.f32.mrf.mxu0
        %v5243 = vadd.f32 %v5154, %v5242
        %5244 = vmatmul.bf16.gmra.mxu0 %v4793
        %v5245 = vpop.f32.mrf.mxu0
        %v5246 = vadd.f32 %v5157, %v5245
        %v5247 = vpop.f32.mrf.mxu0
        %v5248 = vadd.f32 %v5159, %v5247
        %5249 = vmatmul.bf16.gmra.mxu0 %v4796
        %v5250 = vpop.f32.mrf.mxu0
        %v5251 = vadd.f32 %v5162, %v5250
        %v5252 = vpop.f32.mrf.mxu0
        %v5253 = vadd.f32 %v5164, %v5252
        %5254 = vmatmul.bf16.gmra.mxu0 %v4799
        %v5255 = vpop.f32.mrf.mxu0
        %v5256 = vadd.f32 %v5167, %v5255
        %v5257 = vpop.f32.mrf.mxu0
        %v5258 = vadd.f32 %v5169, %v5257
        %5259 = vmatmul.bf16.gmra.mxu0 %v4802
        %v5260 = vpop.f32.mrf.mxu0
        %v5261 = vadd.f32 %v5172, %v5260
        %v5262 = vpop.f32.mrf.mxu0
        %v5263 = vadd.f32 %v5174, %v5262
        %5264 = vmatmul.bf16.gmra.mxu0 %v4805
        %v5265 = vpop.f32.mrf.mxu0
        %v5266 = vadd.f32 %v5177, %v5265
        %v5267 = vpop.f32.mrf.mxu0
        %v5268 = vadd.f32 %v5179, %v5267
        %5269 = vmatmul.bf16.gmra.mxu0 %v4808
        %v5270 = vpop.f32.mrf.mxu0
        %v5271 = vadd.f32 %v5182, %v5270
        %v5272 = vpop.f32.mrf.mxu0
        %v5273 = vadd.f32 %v5184, %v5272
        %5274 = vmatmul.bf16.gmra.mxu0 %v4811
        %v5275 = vpop.f32.mrf.mxu0
        %v5276 = vadd.f32 %v5187, %v5275
        %v5277 = vpop.f32.mrf.mxu0
        %v5278 = vadd.f32 %v5189, %v5277
        %5279 = vmatmul.bf16.gmra.mxu0 %v4814
        %v5280 = vpop.f32.mrf.mxu0
        %v5281 = vadd.f32 %v5192, %v5280
        %v5282 = vpop.f32.mrf.mxu0
        %v5283 = vadd.f32 %v5194, %v5282
        %5284 = vmatmul.bf16.gmra.mxu0 %v4817
        %v5285 = vpop.f32.mrf.mxu0
        %v5286 = vadd.f32 %v5197, %v5285
        %v5287 = vpop.f32.mrf.mxu0
        %v5288 = vadd.f32 %v5199, %v5287
        %5289 = vmatmul.bf16.gmra.mxu0 %v4820
        %v5290 = vpop.f32.mrf.mxu0
        %v5291 = vadd.f32 %v5202, %v5290
        %v5292 = vpop.f32.mrf.mxu0
        %v5293 = vadd.f32 %v5204, %v5292
        %5294 = vmatmul.bf16.gmra.mxu0 %v4823
        %v5295 = vpop.f32.mrf.mxu0
        %v5296 = vadd.f32 %v5207, %v5295
        %v5297 = vpop.f32.mrf.mxu0
        %v5298 = vadd.f32 %v5209, %v5297
        %5299 = vdwg.mxu0
        %v5348 = vunpack.c.l.b16 %v4328
        %v5349 = vunpack.c.l.b16 %v4329
        %v5350 = vunpack.c.l.b16 %v4330
        %v5351 = vunpack.c.l.b16 %v4331
        %v5352 = vunpack.c.l.b16 %v4332
        %v5353 = vunpack.c.l.b16 %v4333
        %v5354 = vunpack.c.l.b16 %v4334
        %v5355 = vunpack.c.l.b16 %v4335
        %v5356 = vunpack.c.l.b16 %v4336
        %v5357 = vunpack.c.l.b16 %v4337
        %v5358 = vunpack.c.l.b16 %v4338
        %v5359 = vunpack.c.l.b16 %v4339
        %v5360 = vunpack.c.l.b16 %v4340
        %v5361 = vunpack.c.l.b16 %v4341
        %v5362 = vunpack.c.l.b16 %v4342
        %v5363 = vunpack.c.l.b16 %v4343
        %v5364 = vunpack.c.l.b16 %v4344
        %v5365 = vunpack.c.l.b16 %v4345
        %v5366 = vunpack.c.l.b16 %v4346
        %v5367 = vunpack.c.l.b16 %v4347
        %v5368 = vunpack.c.l.b16 %v4348
        %v5369 = vunpack.c.l.b16 %v4349
        %v5370 = vunpack.c.l.b16 %v4350
        %v5371 = vunpack.c.l.b16 %v4351
        %v5372 = vunpack.c.l.b16 %v4352
        %v5373 = vunpack.c.l.b16 %v4353
        %v5374 = vunpack.c.l.b16 %v4354
        %v5375 = vunpack.c.l.b16 %v4355
        %v5376 = vunpack.c.l.b16 %v4356
        %v5377 = vunpack.c.l.b16 %v4357
        %v5378 = vunpack.c.l.b16 %v4358
        %v5379 = vunpack.c.l.b16 %v4359
        %v5380 = vunpack.c.l.b16 %v4360
        %v5381 = vunpack.c.l.b16 %v4361
        %v5382 = vunpack.c.l.b16 %v4362
        %v5383 = vunpack.c.l.b16 %v4363
        %v5384 = vunpack.c.l.b16 %v4364
        %v5385 = vunpack.c.l.b16 %v4365
        %v5386 = vunpack.c.l.b16 %v4366
        %v5387 = vunpack.c.l.b16 %v4367
        %v5388 = vunpack.c.l.b16 %v4368
        %v5389 = vunpack.c.l.b16 %v4369
        %v5390 = vunpack.c.l.b16 %v4370
        %v5391 = vunpack.c.l.b16 %v4371
        %v5392 = vunpack.c.l.b16 %v4372
        %v5393 = vunpack.c.l.b16 %v4373
        %v5394 = vunpack.c.l.b16 %v4374
        %v5395 = vunpack.c.l.b16 %v4375
        %v5396 = vpack.c.b16 %v5349, %v5348
        %v5397 = vpack.c.b16 %v5351, %v5350
        %v5398 = vpack.c.b16 %v5353, %v5352
        %v5399 = vpack.c.b16 %v5355, %v5354
        %v5400 = vpack.c.b16 %v5357, %v5356
        %v5401 = vpack.c.b16 %v5359, %v5358
        %v5402 = vpack.c.b16 %v5361, %v5360
        %v5403 = vpack.c.b16 %v5363, %v5362
        %v5404 = vpack.c.b16 %v5365, %v5364
        %v5405 = vpack.c.b16 %v5367, %v5366
        %v5406 = vpack.c.b16 %v5369, %v5368
        %v5407 = vpack.c.b16 %v5371, %v5370
        %v5408 = vpack.c.b16 %v5373, %v5372
        %v5409 = vpack.c.b16 %v5375, %v5374
        %v5410 = vpack.c.b16 %v5377, %v5376
        %v5411 = vpack.c.b16 %v5379, %v5378
        %v5412 = vpack.c.b16 %v5381, %v5380
        %v5413 = vpack.c.b16 %v5383, %v5382
        %v5414 = vpack.c.b16 %v5385, %v5384
        %v5415 = vpack.c.b16 %v5387, %v5386
        %v5416 = vpack.c.b16 %v5389, %v5388
        %v5417 = vpack.c.b16 %v5391, %v5390
        %v5418 = vpack.c.b16 %v5393, %v5392
        %v5419 = vpack.c.b16 %v5395, %v5394
        %5444 = vmatpush.bf16.msra.mxu0 %v5403
        %5445 = vmatpush.bf16.msra.mxu0 %v5402
        %5446 = vmatpush.bf16.msra.mxu0 %v5401
        %5447 = vmatpush.bf16.msra.mxu0 %v5400
        %5448 = vmatpush.bf16.msra.mxu0 %v5399
        %5449 = vmatpush.bf16.msra.mxu0 %v5398
        %5450 = vmatpush.bf16.msra.mxu0 %v5397
        %5451 = vmatpush.bf16.msra.mxu0 %v5396
        %5452 = vmatmul.bf16.gmra.mxu0 %v3976
        %v5453 = vpop.f32.mrf.mxu0
        %v5454 = vadd.f32 %v5221, %v5453
        %v5455 = vpop.f32.mrf.mxu0
        %v5456 = vadd.f32 %v5223, %v5455
        %5457 = vmatmul.bf16.gmra.mxu0 %v3977
        %v5458 = vpop.f32.mrf.mxu0
        %v5459 = vadd.f32 %v5226, %v5458
        %v5460 = vpop.f32.mrf.mxu0
        %v5461 = vadd.f32 %v5228, %v5460
        %5462 = vmatmul.bf16.gmra.mxu0 %v3978
        %v5463 = vpop.f32.mrf.mxu0
        %v5464 = vadd.f32 %v5231, %v5463
        %v5465 = vpop.f32.mrf.mxu0
        %v5466 = vadd.f32 %v5233, %v5465
        %5467 = vmatmul.bf16.gmra.mxu0 %v3979
        %v5468 = vpop.f32.mrf.mxu0
        %v5469 = vadd.f32 %v5236, %v5468
        %v5470 = vpop.f32.mrf.mxu0
        %v5471 = vadd.f32 %v5238, %v5470
        %5472 = vmatmul.bf16.gmra.mxu0 %v3980
        %v5473 = vpop.f32.mrf.mxu0
        %v5474 = vadd.f32 %v5241, %v5473
        %v5475 = vpop.f32.mrf.mxu0
        %v5476 = vadd.f32 %v5243, %v5475
        %5477 = vmatmul.bf16.gmra.mxu0 %v3981
        %v5478 = vpop.f32.mrf.mxu0
        %v5479 = vadd.f32 %v5246, %v5478
        %v5480 = vpop.f32.mrf.mxu0
        %v5481 = vadd.f32 %v5248, %v5480
        %5482 = vmatmul.bf16.gmra.mxu0 %v3982
        %v5483 = vpop.f32.mrf.mxu0
        %v5484 = vadd.f32 %v5251, %v5483
        %v5485 = vpop.f32.mrf.mxu0
        %v5486 = vadd.f32 %v5253, %v5485
        %5487 = vmatmul.bf16.gmra.mxu0 %v3983
        %v5488 = vpop.f32.mrf.mxu0
        %v5489 = vadd.f32 %v5256, %v5488
        %v5490 = vpop.f32.mrf.mxu0
        %v5491 = vadd.f32 %v5258, %v5490
        %5492 = vmatmul.bf16.gmra.mxu0 %v3984
        %v5493 = vpop.f32.mrf.mxu0
        %v5494 = vadd.f32 %v5261, %v5493
        %v5495 = vpop.f32.mrf.mxu0
        %v5496 = vadd.f32 %v5263, %v5495
        %5497 = vmatmul.bf16.gmra.mxu0 %v3985
        %v5498 = vpop.f32.mrf.mxu0
        %v5499 = vadd.f32 %v5266, %v5498
        %v5500 = vpop.f32.mrf.mxu0
        %v5501 = vadd.f32 %v5268, %v5500
        %5502 = vmatmul.bf16.gmra.mxu0 %v3986
        %v5503 = vpop.f32.mrf.mxu0
        %v5504 = vadd.f32 %v5271, %v5503
        %v5505 = vpop.f32.mrf.mxu0
        %v5506 = vadd.f32 %v5273, %v5505
        %5507 = vmatmul.bf16.gmra.mxu0 %v3987
        %v5508 = vpop.f32.mrf.mxu0
        %v5509 = vadd.f32 %v5276, %v5508
        %v5510 = vpop.f32.mrf.mxu0
        %v5511 = vadd.f32 %v5278, %v5510
        %5512 = vmatmul.bf16.gmra.mxu0 %v3988
        %v5513 = vpop.f32.mrf.mxu0
        %v5514 = vadd.f32 %v5281, %v5513
        %v5515 = vpop.f32.mrf.mxu0
        %v5516 = vadd.f32 %v5283, %v5515
        %5517 = vmatmul.bf16.gmra.mxu0 %v3989
        %v5518 = vpop.f32.mrf.mxu0
        %v5519 = vadd.f32 %v5286, %v5518
        %v5520 = vpop.f32.mrf.mxu0
        %v5521 = vadd.f32 %v5288, %v5520
        %5522 = vmatmul.bf16.gmra.mxu0 %v3990
        %v5523 = vpop.f32.mrf.mxu0
        %v5524 = vadd.f32 %v5291, %v5523
        %v5525 = vpop.f32.mrf.mxu0
        %v5526 = vadd.f32 %v5293, %v5525
        %5527 = vmatmul.bf16.gmra.mxu0 %v3991
        %v5528 = vpop.f32.mrf.mxu0
        %v5529 = vadd.f32 %v5296, %v5528
        %v5530 = vpop.f32.mrf.mxu0
        %v5531 = vadd.f32 %v5298, %v5530
        %5532 = vdwg.mxu0
        %5533 = vmatpush.bf16.msra.mxu0 %v5411
        %5534 = vmatpush.bf16.msra.mxu0 %v5410
        %5535 = vmatpush.bf16.msra.mxu0 %v5409
        %5536 = vmatpush.bf16.msra.mxu0 %v5408
        %5537 = vmatpush.bf16.msra.mxu0 %v5407
        %5538 = vmatpush.bf16.msra.mxu0 %v5406
        %5539 = vmatpush.bf16.msra.mxu0 %v5405
        %5540 = vmatpush.bf16.msra.mxu0 %v5404
        %5541 = vmatmul.bf16.gmra.mxu0 %v4067
        %v5542 = vpop.f32.mrf.mxu0
        %v5543 = vadd.f32 %v5454, %v5542
        %v5544 = vpop.f32.mrf.mxu0
        %v5545 = vadd.f32 %v5456, %v5544
        %5546 = vmatmul.bf16.gmra.mxu0 %v4079
        %v5547 = vpop.f32.mrf.mxu0
        %v5548 = vadd.f32 %v5459, %v5547
        %v5549 = vpop.f32.mrf.mxu0
        %v5550 = vadd.f32 %v5461, %v5549
        %5551 = vmatmul.bf16.gmra.mxu0 %v4091
        %v5552 = vpop.f32.mrf.mxu0
        %v5553 = vadd.f32 %v5464, %v5552
        %v5554 = vpop.f32.mrf.mxu0
        %v5555 = vadd.f32 %v5466, %v5554
        %5556 = vmatmul.bf16.gmra.mxu0 %v4103
        %v5557 = vpop.f32.mrf.mxu0
        %v5558 = vadd.f32 %v5469, %v5557
        %v5559 = vpop.f32.mrf.mxu0
        %v5560 = vadd.f32 %v5471, %v5559
        %5561 = vmatmul.bf16.gmra.mxu0 %v4115
        %v5562 = vpop.f32.mrf.mxu0
        %v5563 = vadd.f32 %v5474, %v5562
        %v5564 = vpop.f32.mrf.mxu0
        %v5565 = vadd.f32 %v5476, %v5564
        %5566 = vmatmul.bf16.gmra.mxu0 %v4127
        %v5567 = vpop.f32.mrf.mxu0
        %v5568 = vadd.f32 %v5479, %v5567
        %v5569 = vpop.f32.mrf.mxu0
        %v5570 = vadd.f32 %v5481, %v5569
        %5571 = vmatmul.bf16.gmra.mxu0 %v4139
        %v5572 = vpop.f32.mrf.mxu0
        %v5573 = vadd.f32 %v5484, %v5572
        %v5574 = vpop.f32.mrf.mxu0
        %v5575 = vadd.f32 %v5486, %v5574
        %5576 = vmatmul.bf16.gmra.mxu0 %v4151
        %v5577 = vpop.f32.mrf.mxu0
        %v5578 = vadd.f32 %v5489, %v5577
        %v5579 = vpop.f32.mrf.mxu0
        %v5580 = vadd.f32 %v5491, %v5579
        %5581 = vmatmul.bf16.gmra.mxu0 %v4163
        %v5582 = vpop.f32.mrf.mxu0
        %v5583 = vadd.f32 %v5494, %v5582
        %v5584 = vpop.f32.mrf.mxu0
        %v5585 = vadd.f32 %v5496, %v5584
        %5586 = vmatmul.bf16.gmra.mxu0 %v4175
        %v5587 = vpop.f32.mrf.mxu0
        %v5588 = vadd.f32 %v5499, %v5587
        %v5589 = vpop.f32.mrf.mxu0
        %v5590 = vadd.f32 %v5501, %v5589
        %5591 = vmatmul.bf16.gmra.mxu0 %v4187
        %v5592 = vpop.f32.mrf.mxu0
        %v5593 = vadd.f32 %v5504, %v5592
        %v5594 = vpop.f32.mrf.mxu0
        %v5595 = vadd.f32 %v5506, %v5594
        %5596 = vmatmul.bf16.gmra.mxu0 %v4199
        %v5597 = vpop.f32.mrf.mxu0
        %v5598 = vadd.f32 %v5509, %v5597
        %v5599 = vpop.f32.mrf.mxu0
        %v5600 = vadd.f32 %v5511, %v5599
        %5601 = vmatmul.bf16.gmra.mxu0 %v4211
        %v5602 = vpop.f32.mrf.mxu0
        %v5603 = vadd.f32 %v5514, %v5602
        %v5604 = vpop.f32.mrf.mxu0
        %v5605 = vadd.f32 %v5516, %v5604
        %5606 = vmatmul.bf16.gmra.mxu0 %v4223
        %v5607 = vpop.f32.mrf.mxu0
        %v5608 = vadd.f32 %v5519, %v5607
        %v5609 = vpop.f32.mrf.mxu0
        %v5610 = vadd.f32 %v5521, %v5609
        %5611 = vmatmul.bf16.gmra.mxu0 %v4235
        %v5612 = vpop.f32.mrf.mxu0
        %v5613 = vadd.f32 %v5524, %v5612
        %v5614 = vpop.f32.mrf.mxu0
        %v5615 = vadd.f32 %v5526, %v5614
        %5616 = vmatmul.bf16.gmra.mxu0 %v4247
        %v5617 = vpop.f32.mrf.mxu0
        %v5618 = vadd.f32 %v5529, %v5617
        %v5619 = vpop.f32.mrf.mxu0
        %v5620 = vadd.f32 %v5531, %v5619
        %5621 = vdwg.mxu0
        %5622 = vmatpush.bf16.msra.mxu0 %v5419
        %5623 = vmatpush.bf16.msra.mxu0 %v5418
        %5624 = vmatpush.bf16.msra.mxu0 %v5417
        %5625 = vmatpush.bf16.msra.mxu0 %v5416
        %5626 = vmatpush.bf16.msra.mxu0 %v5415
        %5627 = vmatpush.bf16.msra.mxu0 %v5414
        %5628 = vmatpush.bf16.msra.mxu0 %v5413
        %5629 = vmatpush.bf16.msra.mxu0 %v5412
        %5630 = vmatmul.bf16.gmra.mxu0 %v4266
        %v5631 = vpop.f32.mrf.mxu0
        %v5632 = vadd.f32 %v5543, %v5631
        %v5633 = vpop.f32.mrf.mxu0
        %v5634 = vadd.f32 %v5545, %v5633
        %5635 = vmatmul.bf16.gmra.mxu0 %v4269
        %v5636 = vpop.f32.mrf.mxu0
        %v5637 = vadd.f32 %v5548, %v5636
        %v5638 = vpop.f32.mrf.mxu0
        %v5639 = vadd.f32 %v5550, %v5638
        %5640 = vmatmul.bf16.gmra.mxu0 %v4272
        %v5641 = vpop.f32.mrf.mxu0
        %v5642 = vadd.f32 %v5553, %v5641
        %v5643 = vpop.f32.mrf.mxu0
        %v5644 = vadd.f32 %v5555, %v5643
        %5645 = vmatmul.bf16.gmra.mxu0 %v4275
        %v5646 = vpop.f32.mrf.mxu0
        %v5647 = vadd.f32 %v5558, %v5646
        %v5648 = vpop.f32.mrf.mxu0
        %v5649 = vadd.f32 %v5560, %v5648
        %5650 = vmatmul.bf16.gmra.mxu0 %v4278
        %v5651 = vpop.f32.mrf.mxu0
        %v5652 = vadd.f32 %v5563, %v5651
        %v5653 = vpop.f32.mrf.mxu0
        %v5654 = vadd.f32 %v5565, %v5653
        %5655 = vmatmul.bf16.gmra.mxu0 %v4281
        %v5656 = vpop.f32.mrf.mxu0
        %v5657 = vadd.f32 %v5568, %v5656
        %v5658 = vpop.f32.mrf.mxu0
        %v5659 = vadd.f32 %v5570, %v5658
        %5660 = vmatmul.bf16.gmra.mxu0 %v4284
        %v5661 = vpop.f32.mrf.mxu0
        %v5662 = vadd.f32 %v5573, %v5661
        %v5663 = vpop.f32.mrf.mxu0
        %v5664 = vadd.f32 %v5575, %v5663
        %5665 = vmatmul.bf16.gmra.mxu0 %v4287
        %v5666 = vpop.f32.mrf.mxu0
        %v5667 = vadd.f32 %v5578, %v5666
        %v5668 = vpop.f32.mrf.mxu0
        %v5669 = vadd.f32 %v5580, %v5668
        %5670 = vmatmul.bf16.gmra.mxu0 %v4290
        %v5671 = vpop.f32.mrf.mxu0
        %v5672 = vadd.f32 %v5583, %v5671
        %v5673 = vpop.f32.mrf.mxu0
        %v5674 = vadd.f32 %v5585, %v5673
        %5675 = vmatmul.bf16.gmra.mxu0 %v4293
        %v5676 = vpop.f32.mrf.mxu0
        %v5677 = vadd.f32 %v5588, %v5676
        %v5678 = vpop.f32.mrf.mxu0
        %v5679 = vadd.f32 %v5590, %v5678
        %5680 = vmatmul.bf16.gmra.mxu0 %v4296
        %v5681 = vpop.f32.mrf.mxu0
        %v5682 = vadd.f32 %v5593, %v5681
        %v5683 = vpop.f32.mrf.mxu0
        %v5684 = vadd.f32 %v5595, %v5683
        %5685 = vmatmul.bf16.gmra.mxu0 %v4299
        %v5686 = vpop.f32.mrf.mxu0
        %v5687 = vadd.f32 %v5598, %v5686
        %v5688 = vpop.f32.mrf.mxu0
        %v5689 = vadd.f32 %v5600, %v5688
        %5690 = vmatmul.bf16.gmra.mxu0 %v4302
        %v5691 = vpop.f32.mrf.mxu0
        %v5692 = vadd.f32 %v5603, %v5691
        %v5693 = vpop.f32.mrf.mxu0
        %v5694 = vadd.f32 %v5605, %v5693
        %5695 = vmatmul.bf16.gmra.mxu0 %v4305
        %v5696 = vpop.f32.mrf.mxu0
        %v5697 = vadd.f32 %v5608, %v5696
        %v5698 = vpop.f32.mrf.mxu0
        %v5699 = vadd.f32 %v5610, %v5698
        %5700 = vmatmul.bf16.gmra.mxu0 %v4308
        %v5701 = vpop.f32.mrf.mxu0
        %v5702 = vadd.f32 %v5613, %v5701
        %v5703 = vpop.f32.mrf.mxu0
        %v5704 = vadd.f32 %v5615, %v5703
        %5705 = vmatmul.bf16.gmra.mxu0 %v4311
        %v5706 = vpop.f32.mrf.mxu0
        %v5707 = vadd.f32 %v5618, %v5706
        %v5708 = vpop.f32.mrf.mxu0
        %v5709 = vadd.f32 %v5620, %v5708
        %5710 = vdwg.mxu0
        %s5711 = scalar_lea.vmem [#allocation2], 24
        %v5712 = vld [vmem:[%s5711] sm:$0xf]
        %v5713 = vld [vmem:[%s5711 + $0x4] sm:$0xf]
        %v5714 = vld [vmem:[%s5711 + $0x8] sm:$0x1]
        %v5715 = vld [vmem:[%s5711 + $0xc] sm:$0xf]
        %v5716 = vld [vmem:[%s5711 + $0x10] sm:$0xf]
        %v5717 = vld [vmem:[%s5711 + $0x14] sm:$0x1]
        %v5718 = vld [vmem:[%s5711 + $0x18] sm:$0xf]
        %v5719 = vld [vmem:[%s5711 + $0x1c] sm:$0xf]
        %v5720 = vld [vmem:[%s5711 + $0x20] sm:$0x1]
        %v5721 = vld [vmem:[%s5711 + $0x24] sm:$0xf]
        %v5722 = vld [vmem:[%s5711 + $0x28] sm:$0xf]
        %v5723 = vld [vmem:[%s5711 + $0x2c] sm:$0x1]
        %v5724 = vld [vmem:[%s5711 + $0x30] sm:$0xf]
        %v5725 = vld [vmem:[%s5711 + $0x34] sm:$0xf]
        %v5726 = vld [vmem:[%s5711 + $0x38] sm:$0x1]
        %v5727 = vld [vmem:[%s5711 + $0x3c] sm:$0xf]
        %v5728 = vld [vmem:[%s5711 + $0x40] sm:$0xf]
        %v5729 = vld [vmem:[%s5711 + $0x44] sm:$0x1]
        %v5730 = vld [vmem:[%s5711 + $0x48] sm:$0xf]
        %v5731 = vld [vmem:[%s5711 + $0x4c] sm:$0xf]
        %v5732 = vld [vmem:[%s5711 + $0x50] sm:$0x1]
        %v5733 = vld [vmem:[%s5711 + $0x54] sm:$0xf]
        %v5734 = vld [vmem:[%s5711 + $0x58] sm:$0xf]
        %v5735 = vld [vmem:[%s5711 + $0x5c] sm:$0x1]
        %v5736 = vld [vmem:[%s5711 + $0x60] sm:$0xf]
        %v5737 = vld [vmem:[%s5711 + $0x64] sm:$0xf]
        %v5738 = vld [vmem:[%s5711 + $0x68] sm:$0x1]
        %v5739 = vld [vmem:[%s5711 + $0x6c] sm:$0xf]
        %v5740 = vld [vmem:[%s5711 + $0x70] sm:$0xf]
        %v5741 = vld [vmem:[%s5711 + $0x74] sm:$0x1]
        %v5742 = vld [vmem:[%s5711 + $0x78] sm:$0xf]
        %v5743 = vld [vmem:[%s5711 + $0x7c] sm:$0xf]
        %v5744 = vld [vmem:[%s5711 + $0x80] sm:$0x1]
        %v5745 = vld [vmem:[%s5711 + $0x84] sm:$0xf]
        %v5746 = vld [vmem:[%s5711 + $0x88] sm:$0xf]
        %v5747 = vld [vmem:[%s5711 + $0x8c] sm:$0x1]
        %v5748 = vld [vmem:[%s5711 + $0x90] sm:$0xf]
        %v5749 = vld [vmem:[%s5711 + $0x94] sm:$0xf]
        %v5750 = vld [vmem:[%s5711 + $0x98] sm:$0x1]
        %v5751 = vld [vmem:[%s5711 + $0x9c] sm:$0xf]
        %v5752 = vld [vmem:[%s5711 + $0xa0] sm:$0xf]
        %v5753 = vld [vmem:[%s5711 + $0xa4] sm:$0x1]
        %v5754 = vld [vmem:[%s5711 + $0xa8] sm:$0xf]
        %v5755 = vld [vmem:[%s5711 + $0xac] sm:$0xf]
        %v5756 = vld [vmem:[%s5711 + $0xb0] sm:$0x1]
        %v5757 = vld [vmem:[%s5711 + $0xb4] sm:$0xf]
        %v5758 = vld [vmem:[%s5711 + $0xb8] sm:$0xf]
        %v5759 = vld [vmem:[%s5711 + $0xbc] sm:$0x1]
        %v5792 = vunpack.c.l.b16 %v5712
        %v5793 = vunpack.c.l.b16 %v5713
        %v5794 = vunpack.c.l.b16 %v5715
        %v5795 = vunpack.c.l.b16 %v5716
        %v5796 = vunpack.c.l.b16 %v5718
        %v5797 = vunpack.c.l.b16 %v5719
        %v5798 = vunpack.c.l.b16 %v5721
        %v5799 = vunpack.c.l.b16 %v5722
        %v5800 = vunpack.c.l.b16 %v5724
        %v5801 = vunpack.c.l.b16 %v5725
        %v5802 = vunpack.c.l.b16 %v5727
        %v5803 = vunpack.c.l.b16 %v5728
        %v5804 = vunpack.c.l.b16 %v5730
        %v5805 = vunpack.c.l.b16 %v5731
        %v5806 = vunpack.c.l.b16 %v5733
        %v5807 = vunpack.c.l.b16 %v5734
        %v5808 = vunpack.c.l.b16 %v5736
        %v5809 = vunpack.c.l.b16 %v5737
        %v5810 = vunpack.c.l.b16 %v5739
        %v5811 = vunpack.c.l.b16 %v5740
        %v5812 = vunpack.c.l.b16 %v5742
        %v5813 = vunpack.c.l.b16 %v5743
        %v5814 = vunpack.c.l.b16 %v5745
        %v5815 = vunpack.c.l.b16 %v5746
        %v5816 = vunpack.c.l.b16 %v5748
        %v5817 = vunpack.c.l.b16 %v5749
        %v5818 = vunpack.c.l.b16 %v5751
        %v5819 = vunpack.c.l.b16 %v5752
        %v5820 = vunpack.c.l.b16 %v5754
        %v5821 = vunpack.c.l.b16 %v5755
        %v5822 = vunpack.c.l.b16 %v5757
        %v5823 = vunpack.c.l.b16 %v5758
        %v5824 = vpack.c.b16 %v5793, %v5792
        %v5825 = vpack.c.b16 %v5795, %v5794
        %v5826 = vpack.c.b16 %v5797, %v5796
        %v5827 = vpack.c.b16 %v5799, %v5798
        %v5828 = vpack.c.b16 %v5801, %v5800
        %v5829 = vpack.c.b16 %v5803, %v5802
        %v5830 = vpack.c.b16 %v5805, %v5804
        %v5831 = vpack.c.b16 %v5807, %v5806
        %v5832 = vpack.c.b16 %v5809, %v5808
        %v5833 = vpack.c.b16 %v5811, %v5810
        %v5834 = vpack.c.b16 %v5813, %v5812
        %v5835 = vpack.c.b16 %v5815, %v5814
        %v5836 = vpack.c.b16 %v5817, %v5816
        %v5837 = vpack.c.b16 %v5819, %v5818
        %v5838 = vpack.c.b16 %v5821, %v5820
        %v5839 = vpack.c.b16 %v5823, %v5822
        %v5872 = vunpack.c.l.b16 %v5714
        %v5873 = vunpack.c.l.b16 %v5717
        %v5874 = vunpack.c.l.b16 %v5720
        %v5875 = vunpack.c.l.b16 %v5723
        %v5876 = vunpack.c.l.b16 %v5726
        %v5877 = vunpack.c.l.b16 %v5729
        %v5878 = vunpack.c.l.b16 %v5732
        %v5879 = vunpack.c.l.b16 %v5735
        %v5880 = vunpack.c.l.b16 %v5738
        %v5881 = vunpack.c.l.b16 %v5741
        %v5882 = vunpack.c.l.b16 %v5744
        %v5883 = vunpack.c.l.b16 %v5747
        %v5884 = vunpack.c.l.b16 %v5750
        %v5885 = vunpack.c.l.b16 %v5753
        %v5886 = vunpack.c.l.b16 %v5756
        %v5887 = vunpack.c.l.b16 %v5759
        %v5888 = vpack.c.b16 %v5872, %v5872
        %v5889 = vpack.c.b16 %v5873, %v5873
        %v5890 = vpack.c.b16 %v5874, %v5874
        %v5891 = vpack.c.b16 %v5875, %v5875
        %v5892 = vpack.c.b16 %v5876, %v5876
        %v5893 = vpack.c.b16 %v5877, %v5877
        %v5894 = vpack.c.b16 %v5878, %v5878
        %v5895 = vpack.c.b16 %v5879, %v5879
        %v5896 = vpack.c.b16 %v5880, %v5880
        %v5897 = vpack.c.b16 %v5881, %v5881
        %v5898 = vpack.c.b16 %v5882, %v5882
        %v5899 = vpack.c.b16 %v5883, %v5883
        %v5900 = vpack.c.b16 %v5884, %v5884
        %v5901 = vpack.c.b16 %v5885, %v5885
        %v5902 = vpack.c.b16 %v5886, %v5886
        %v5903 = vpack.c.b16 %v5887, %v5887
        %v5905 = vshrl.u32 %v5824, 16
        %v5907 = vshll.u32 %v5824, 16
        %v5909 = vrot.slane %v5907, 1
        %v5910 = vor.u32 %v5905, %v5909
        %v5912 = vshll.u32 %v5888, 16
        %v5914 = vrot.slane %v5912, 1
        %v5915 = vsel %vm568, %v5910, %v5914
        %v5917 = vshrl.u32 %v5825, 16
        %v5919 = vshll.u32 %v5825, 16
        %v5921 = vrot.slane %v5919, 1
        %v5922 = vor.u32 %v5917, %v5921
        %v5924 = vshll.u32 %v5889, 16
        %v5926 = vrot.slane %v5924, 1
        %v5927 = vsel %vm568, %v5922, %v5926
        %v5929 = vshrl.u32 %v5826, 16
        %v5931 = vshll.u32 %v5826, 16
        %v5933 = vrot.slane %v5931, 1
        %v5934 = vor.u32 %v5929, %v5933
        %v5936 = vshll.u32 %v5890, 16
        %v5938 = vrot.slane %v5936, 1
        %v5939 = vsel %vm568, %v5934, %v5938
        %v5941 = vshrl.u32 %v5827, 16
        %v5943 = vshll.u32 %v5827, 16
        %v5945 = vrot.slane %v5943, 1
        %v5946 = vor.u32 %v5941, %v5945
        %v5948 = vshll.u32 %v5891, 16
        %v5950 = vrot.slane %v5948, 1
        %v5951 = vsel %vm568, %v5946, %v5950
        %v5953 = vshrl.u32 %v5828, 16
        %v5955 = vshll.u32 %v5828, 16
        %v5957 = vrot.slane %v5955, 1
        %v5958 = vor.u32 %v5953, %v5957
        %v5960 = vshll.u32 %v5892, 16
        %v5962 = vrot.slane %v5960, 1
        %v5963 = vsel %vm568, %v5958, %v5962
        %v5965 = vshrl.u32 %v5829, 16
        %v5967 = vshll.u32 %v5829, 16
        %v5969 = vrot.slane %v5967, 1
        %v5970 = vor.u32 %v5965, %v5969
        %v5972 = vshll.u32 %v5893, 16
        %v5974 = vrot.slane %v5972, 1
        %v5975 = vsel %vm568, %v5970, %v5974
        %v5977 = vshrl.u32 %v5830, 16
        %v5979 = vshll.u32 %v5830, 16
        %v5981 = vrot.slane %v5979, 1
        %v5982 = vor.u32 %v5977, %v5981
        %v5984 = vshll.u32 %v5894, 16
        %v5986 = vrot.slane %v5984, 1
        %v5987 = vsel %vm568, %v5982, %v5986
        %v5989 = vshrl.u32 %v5831, 16
        %v5991 = vshll.u32 %v5831, 16
        %v5993 = vrot.slane %v5991, 1
        %v5994 = vor.u32 %v5989, %v5993
        %v5996 = vshll.u32 %v5895, 16
        %v5998 = vrot.slane %v5996, 1
        %v5999 = vsel %vm568, %v5994, %v5998
        %v6001 = vshrl.u32 %v5832, 16
        %v6003 = vshll.u32 %v5832, 16
        %v6005 = vrot.slane %v6003, 1
        %v6006 = vor.u32 %v6001, %v6005
        %v6008 = vshll.u32 %v5896, 16
        %v6010 = vrot.slane %v6008, 1
        %v6011 = vsel %vm568, %v6006, %v6010
        %v6013 = vshrl.u32 %v5833, 16
        %v6015 = vshll.u32 %v5833, 16
        %v6017 = vrot.slane %v6015, 1
        %v6018 = vor.u32 %v6013, %v6017
        %v6020 = vshll.u32 %v5897, 16
        %v6022 = vrot.slane %v6020, 1
        %v6023 = vsel %vm568, %v6018, %v6022
        %v6025 = vshrl.u32 %v5834, 16
        %v6027 = vshll.u32 %v5834, 16
        %v6029 = vrot.slane %v6027, 1
        %v6030 = vor.u32 %v6025, %v6029
        %v6032 = vshll.u32 %v5898, 16
        %v6034 = vrot.slane %v6032, 1
        %v6035 = vsel %vm568, %v6030, %v6034
        %v6037 = vshrl.u32 %v5835, 16
        %v6039 = vshll.u32 %v5835, 16
        %v6041 = vrot.slane %v6039, 1
        %v6042 = vor.u32 %v6037, %v6041
        %v6044 = vshll.u32 %v5899, 16
        %v6046 = vrot.slane %v6044, 1
        %v6047 = vsel %vm568, %v6042, %v6046
        %v6049 = vshrl.u32 %v5836, 16
        %v6051 = vshll.u32 %v5836, 16
        %v6053 = vrot.slane %v6051, 1
        %v6054 = vor.u32 %v6049, %v6053
        %v6056 = vshll.u32 %v5900, 16
        %v6058 = vrot.slane %v6056, 1
        %v6059 = vsel %vm568, %v6054, %v6058
        %v6061 = vshrl.u32 %v5837, 16
        %v6063 = vshll.u32 %v5837, 16
        %v6065 = vrot.slane %v6063, 1
        %v6066 = vor.u32 %v6061, %v6065
        %v6068 = vshll.u32 %v5901, 16
        %v6070 = vrot.slane %v6068, 1
        %v6071 = vsel %vm568, %v6066, %v6070
        %v6073 = vshrl.u32 %v5838, 16
        %v6075 = vshll.u32 %v5838, 16
        %v6077 = vrot.slane %v6075, 1
        %v6078 = vor.u32 %v6073, %v6077
        %v6080 = vshll.u32 %v5902, 16
        %v6082 = vrot.slane %v6080, 1
        %v6083 = vsel %vm568, %v6078, %v6082
        %v6085 = vshrl.u32 %v5839, 16
        %v6087 = vshll.u32 %v5839, 16
        %v6089 = vrot.slane %v6087, 1
        %v6090 = vor.u32 %v6085, %v6089
        %v6092 = vshll.u32 %v5903, 16
        %v6094 = vrot.slane %v6092, 1
        %v6095 = vsel %vm568, %v6090, %v6094
        %v6112 = vrot.slane %v5824, 1
        %v6113 = vrot.slane %v5888, 1
        %v6114 = vsel %vm777, %v6112, %v6113
        %v6115 = vrot.slane %v5825, 1
        %v6116 = vrot.slane %v5889, 1
        %v6117 = vsel %vm777, %v6115, %v6116
        %v6118 = vrot.slane %v5826, 1
        %v6119 = vrot.slane %v5890, 1
        %v6120 = vsel %vm777, %v6118, %v6119
        %v6121 = vrot.slane %v5827, 1
        %v6122 = vrot.slane %v5891, 1
        %v6123 = vsel %vm777, %v6121, %v6122
        %v6124 = vrot.slane %v5828, 1
        %v6125 = vrot.slane %v5892, 1
        %v6126 = vsel %vm777, %v6124, %v6125
        %v6127 = vrot.slane %v5829, 1
        %v6128 = vrot.slane %v5893, 1
        %v6129 = vsel %vm777, %v6127, %v6128
        %v6130 = vrot.slane %v5830, 1
        %v6131 = vrot.slane %v5894, 1
        %v6132 = vsel %vm777, %v6130, %v6131
        %v6133 = vrot.slane %v5831, 1
        %v6134 = vrot.slane %v5895, 1
        %v6135 = vsel %vm777, %v6133, %v6134
        %v6136 = vrot.slane %v5832, 1
        %v6137 = vrot.slane %v5896, 1
        %v6138 = vsel %vm777, %v6136, %v6137
        %v6139 = vrot.slane %v5833, 1
        %v6140 = vrot.slane %v5897, 1
        %v6141 = vsel %vm777, %v6139, %v6140
        %v6142 = vrot.slane %v5834, 1
        %v6143 = vrot.slane %v5898, 1
        %v6144 = vsel %vm777, %v6142, %v6143
        %v6145 = vrot.slane %v5835, 1
        %v6146 = vrot.slane %v5899, 1
        %v6147 = vsel %vm777, %v6145, %v6146
        %v6148 = vrot.slane %v5836, 1
        %v6149 = vrot.slane %v5900, 1
        %v6150 = vsel %vm777, %v6148, %v6149
        %v6151 = vrot.slane %v5837, 1
        %v6152 = vrot.slane %v5901, 1
        %v6153 = vsel %vm777, %v6151, %v6152
        %v6154 = vrot.slane %v5838, 1
        %v6155 = vrot.slane %v5902, 1
        %v6156 = vsel %vm777, %v6154, %v6155
        %v6157 = vrot.slane %v5839, 1
        %v6158 = vrot.slane %v5903, 1
        %v6159 = vsel %vm777, %v6157, %v6158
        %s6176 = scalar_lea.vmem [#allocation3], 384
        %v6177 = vld [vmem:[%s6176] sm:$0xf]
        %v6178 = vld [vmem:[%s6176 + $0x4] sm:$0xf]
        %v6179 = vld [vmem:[%s6176 + $0x8] sm:$0xf]
        %v6180 = vld [vmem:[%s6176 + $0xc] sm:$0xf]
        %v6181 = vld [vmem:[%s6176 + $0x10] sm:$0xf]
        %v6182 = vld [vmem:[%s6176 + $0x14] sm:$0xf]
        %v6183 = vld [vmem:[%s6176 + $0x18] sm:$0xf]
        %v6184 = vld [vmem:[%s6176 + $0x1c] sm:$0xf]
        %v6185 = vld [vmem:[%s6176 + $0x20] sm:$0xf]
        %v6186 = vld [vmem:[%s6176 + $0x24] sm:$0xf]
        %v6187 = vld [vmem:[%s6176 + $0x28] sm:$0xf]
        %v6188 = vld [vmem:[%s6176 + $0x2c] sm:$0xf]
        %v6189 = vld [vmem:[%s6176 + $0x30] sm:$0xf]
        %v6190 = vld [vmem:[%s6176 + $0x34] sm:$0xf]
        %v6191 = vld [vmem:[%s6176 + $0x38] sm:$0xf]
        %v6192 = vld [vmem:[%s6176 + $0x3c] sm:$0xf]
        %v6193 = vld [vmem:[%s6176 + $0x40] sm:$0xf]
        %v6194 = vld [vmem:[%s6176 + $0x44] sm:$0xf]
        %v6195 = vld [vmem:[%s6176 + $0x48] sm:$0xf]
        %v6196 = vld [vmem:[%s6176 + $0x4c] sm:$0xf]
        %v6197 = vld [vmem:[%s6176 + $0x50] sm:$0xf]
        %v6198 = vld [vmem:[%s6176 + $0x54] sm:$0xf]
        %v6199 = vld [vmem:[%s6176 + $0x58] sm:$0xf]
        %v6200 = vld [vmem:[%s6176 + $0x5c] sm:$0xf]
        %v6201 = vld [vmem:[%s6176 + $0x60] sm:$0xf]
        %v6202 = vld [vmem:[%s6176 + $0x64] sm:$0xf]
        %v6203 = vld [vmem:[%s6176 + $0x68] sm:$0xf]
        %v6204 = vld [vmem:[%s6176 + $0x6c] sm:$0xf]
        %v6205 = vld [vmem:[%s6176 + $0x70] sm:$0xf]
        %v6206 = vld [vmem:[%s6176 + $0x74] sm:$0xf]
        %v6207 = vld [vmem:[%s6176 + $0x78] sm:$0xf]
        %v6208 = vld [vmem:[%s6176 + $0x7c] sm:$0xf]
        %v6209 = vld [vmem:[%s6176 + $0x80] sm:$0xf]
        %v6210 = vld [vmem:[%s6176 + $0x84] sm:$0xf]
        %v6211 = vld [vmem:[%s6176 + $0x88] sm:$0xf]
        %v6212 = vld [vmem:[%s6176 + $0x8c] sm:$0xf]
        %v6213 = vld [vmem:[%s6176 + $0x90] sm:$0xf]
        %v6214 = vld [vmem:[%s6176 + $0x94] sm:$0xf]
        %v6215 = vld [vmem:[%s6176 + $0x98] sm:$0xf]
        %v6216 = vld [vmem:[%s6176 + $0x9c] sm:$0xf]
        %v6217 = vld [vmem:[%s6176 + $0xa0] sm:$0xf]
        %v6218 = vld [vmem:[%s6176 + $0xa4] sm:$0xf]
        %v6219 = vld [vmem:[%s6176 + $0xa8] sm:$0xf]
        %v6220 = vld [vmem:[%s6176 + $0xac] sm:$0xf]
        %v6221 = vld [vmem:[%s6176 + $0xb0] sm:$0xf]
        %v6222 = vld [vmem:[%s6176 + $0xb4] sm:$0xf]
        %v6223 = vld [vmem:[%s6176 + $0xb8] sm:$0xf]
        %v6224 = vld [vmem:[%s6176 + $0xbc] sm:$0xf]
        %v6273 = vunpack.c.l.b16 %v6177
        %v6274 = vunpack.c.l.b16 %v6178
        %v6275 = vunpack.c.l.b16 %v6179
        %v6276 = vunpack.c.l.b16 %v6180
        %v6277 = vunpack.c.l.b16 %v6181
        %v6278 = vunpack.c.l.b16 %v6182
        %v6279 = vunpack.c.l.b16 %v6183
        %v6280 = vunpack.c.l.b16 %v6184
        %v6281 = vunpack.c.l.b16 %v6185
        %v6282 = vunpack.c.l.b16 %v6186
        %v6283 = vunpack.c.l.b16 %v6187
        %v6284 = vunpack.c.l.b16 %v6188
        %v6285 = vunpack.c.l.b16 %v6189
        %v6286 = vunpack.c.l.b16 %v6190
        %v6287 = vunpack.c.l.b16 %v6191
        %v6288 = vunpack.c.l.b16 %v6192
        %v6289 = vunpack.c.l.b16 %v6193
        %v6290 = vunpack.c.l.b16 %v6194
        %v6291 = vunpack.c.l.b16 %v6195
        %v6292 = vunpack.c.l.b16 %v6196
        %v6293 = vunpack.c.l.b16 %v6197
        %v6294 = vunpack.c.l.b16 %v6198
        %v6295 = vunpack.c.l.b16 %v6199
        %v6296 = vunpack.c.l.b16 %v6200
        %v6297 = vunpack.c.l.b16 %v6201
        %v6298 = vunpack.c.l.b16 %v6202
        %v6299 = vunpack.c.l.b16 %v6203
        %v6300 = vunpack.c.l.b16 %v6204
        %v6301 = vunpack.c.l.b16 %v6205
        %v6302 = vunpack.c.l.b16 %v6206
        %v6303 = vunpack.c.l.b16 %v6207
        %v6304 = vunpack.c.l.b16 %v6208
        %v6305 = vunpack.c.l.b16 %v6209
        %v6306 = vunpack.c.l.b16 %v6210
        %v6307 = vunpack.c.l.b16 %v6211
        %v6308 = vunpack.c.l.b16 %v6212
        %v6309 = vunpack.c.l.b16 %v6213
        %v6310 = vunpack.c.l.b16 %v6214
        %v6311 = vunpack.c.l.b16 %v6215
        %v6312 = vunpack.c.l.b16 %v6216
        %v6313 = vunpack.c.l.b16 %v6217
        %v6314 = vunpack.c.l.b16 %v6218
        %v6315 = vunpack.c.l.b16 %v6219
        %v6316 = vunpack.c.l.b16 %v6220
        %v6317 = vunpack.c.l.b16 %v6221
        %v6318 = vunpack.c.l.b16 %v6222
        %v6319 = vunpack.c.l.b16 %v6223
        %v6320 = vunpack.c.l.b16 %v6224
        %v6321 = vpack.c.b16 %v6274, %v6273
        %v6322 = vpack.c.b16 %v6276, %v6275
        %v6323 = vpack.c.b16 %v6278, %v6277
        %v6324 = vpack.c.b16 %v6280, %v6279
        %v6325 = vpack.c.b16 %v6282, %v6281
        %v6326 = vpack.c.b16 %v6284, %v6283
        %v6327 = vpack.c.b16 %v6286, %v6285
        %v6328 = vpack.c.b16 %v6288, %v6287
        %v6329 = vpack.c.b16 %v6290, %v6289
        %v6330 = vpack.c.b16 %v6292, %v6291
        %v6331 = vpack.c.b16 %v6294, %v6293
        %v6332 = vpack.c.b16 %v6296, %v6295
        %v6333 = vpack.c.b16 %v6298, %v6297
        %v6334 = vpack.c.b16 %v6300, %v6299
        %v6335 = vpack.c.b16 %v6302, %v6301
        %v6336 = vpack.c.b16 %v6304, %v6303
        %v6337 = vpack.c.b16 %v6306, %v6305
        %v6338 = vpack.c.b16 %v6308, %v6307
        %v6339 = vpack.c.b16 %v6310, %v6309
        %v6340 = vpack.c.b16 %v6312, %v6311
        %v6341 = vpack.c.b16 %v6314, %v6313
        %v6342 = vpack.c.b16 %v6316, %v6315
        %v6343 = vpack.c.b16 %v6318, %v6317
        %v6344 = vpack.c.b16 %v6320, %v6319
        %6369 = vmatpush.bf16.msra.mxu0 %v6328
        %6370 = vmatpush.bf16.msra.mxu0 %v6327
        %6371 = vmatpush.bf16.msra.mxu0 %v6326
        %6372 = vmatpush.bf16.msra.mxu0 %v6325
        %6373 = vmatpush.bf16.msra.mxu0 %v6324
        %6374 = vmatpush.bf16.msra.mxu0 %v6323
        %6375 = vmatpush.bf16.msra.mxu0 %v6322
        %6376 = vmatpush.bf16.msra.mxu0 %v6321
        %6377 = vmatmul.bf16.gmra.mxu0 %v5824
        %v6378 = vpop.f32.mrf.mxu0
        %v6379 = vadd.f32 0.0, %v6378
        %v6380 = vpop.f32.mrf.mxu0
        %v6381 = vadd.f32 0.0, %v6380
        %6382 = vmatmul.bf16.gmra.mxu0 %v5825
        %v6383 = vpop.f32.mrf.mxu0
        %v6384 = vadd.f32 0.0, %v6383
        %v6385 = vpop.f32.mrf.mxu0
        %v6386 = vadd.f32 0.0, %v6385
        %6387 = vmatmul.bf16.gmra.mxu0 %v5826
        %v6388 = vpop.f32.mrf.mxu0
        %v6389 = vadd.f32 0.0, %v6388
        %v6390 = vpop.f32.mrf.mxu0
        %v6391 = vadd.f32 0.0, %v6390
        %6392 = vmatmul.bf16.gmra.mxu0 %v5827
        %v6393 = vpop.f32.mrf.mxu0
        %v6394 = vadd.f32 0.0, %v6393
        %v6395 = vpop.f32.mrf.mxu0
        %v6396 = vadd.f32 0.0, %v6395
        %6397 = vmatmul.bf16.gmra.mxu0 %v5828
        %v6398 = vpop.f32.mrf.mxu0
        %v6399 = vadd.f32 0.0, %v6398
        %v6400 = vpop.f32.mrf.mxu0
        %v6401 = vadd.f32 0.0, %v6400
        %6402 = vmatmul.bf16.gmra.mxu0 %v5829
        %v6403 = vpop.f32.mrf.mxu0
        %v6404 = vadd.f32 0.0, %v6403
        %v6405 = vpop.f32.mrf.mxu0
        %v6406 = vadd.f32 0.0, %v6405
        %6407 = vmatmul.bf16.gmra.mxu0 %v5830
        %v6408 = vpop.f32.mrf.mxu0
        %v6409 = vadd.f32 0.0, %v6408
        %v6410 = vpop.f32.mrf.mxu0
        %v6411 = vadd.f32 0.0, %v6410
        %6412 = vmatmul.bf16.gmra.mxu0 %v5831
        %v6413 = vpop.f32.mrf.mxu0
        %v6414 = vadd.f32 0.0, %v6413
        %v6415 = vpop.f32.mrf.mxu0
        %v6416 = vadd.f32 0.0, %v6415
        %6417 = vmatmul.bf16.gmra.mxu0 %v5832
        %v6418 = vpop.f32.mrf.mxu0
        %v6419 = vadd.f32 0.0, %v6418
        %v6420 = vpop.f32.mrf.mxu0
        %v6421 = vadd.f32 0.0, %v6420
        %6422 = vmatmul.bf16.gmra.mxu0 %v5833
        %v6423 = vpop.f32.mrf.mxu0
        %v6424 = vadd.f32 0.0, %v6423
        %v6425 = vpop.f32.mrf.mxu0
        %v6426 = vadd.f32 0.0, %v6425
        %6427 = vmatmul.bf16.gmra.mxu0 %v5834
        %v6428 = vpop.f32.mrf.mxu0
        %v6429 = vadd.f32 0.0, %v6428
        %v6430 = vpop.f32.mrf.mxu0
        %v6431 = vadd.f32 0.0, %v6430
        %6432 = vmatmul.bf16.gmra.mxu0 %v5835
        %v6433 = vpop.f32.mrf.mxu0
        %v6434 = vadd.f32 0.0, %v6433
        %v6435 = vpop.f32.mrf.mxu0
        %v6436 = vadd.f32 0.0, %v6435
        %6437 = vmatmul.bf16.gmra.mxu0 %v5836
        %v6438 = vpop.f32.mrf.mxu0
        %v6439 = vadd.f32 0.0, %v6438
        %v6440 = vpop.f32.mrf.mxu0
        %v6441 = vadd.f32 0.0, %v6440
        %6442 = vmatmul.bf16.gmra.mxu0 %v5837
        %v6443 = vpop.f32.mrf.mxu0
        %v6444 = vadd.f32 0.0, %v6443
        %v6445 = vpop.f32.mrf.mxu0
        %v6446 = vadd.f32 0.0, %v6445
        %6447 = vmatmul.bf16.gmra.mxu0 %v5838
        %v6448 = vpop.f32.mrf.mxu0
        %v6449 = vadd.f32 0.0, %v6448
        %v6450 = vpop.f32.mrf.mxu0
        %v6451 = vadd.f32 0.0, %v6450
        %6452 = vmatmul.bf16.gmra.mxu0 %v5839
        %v6453 = vpop.f32.mrf.mxu0
        %v6454 = vadd.f32 0.0, %v6453
        %v6455 = vpop.f32.mrf.mxu0
        %v6456 = vadd.f32 0.0, %v6455
        %6457 = vdwg.mxu0
        %6458 = vmatpush.bf16.msra.mxu0 %v6336
        %6459 = vmatpush.bf16.msra.mxu0 %v6335
        %6460 = vmatpush.bf16.msra.mxu0 %v6334
        %6461 = vmatpush.bf16.msra.mxu0 %v6333
        %6462 = vmatpush.bf16.msra.mxu0 %v6332
        %6463 = vmatpush.bf16.msra.mxu0 %v6331
        %6464 = vmatpush.bf16.msra.mxu0 %v6330
        %6465 = vmatpush.bf16.msra.mxu0 %v6329
        %6466 = vmatmul.bf16.gmra.mxu0 %v5915
        %v6467 = vpop.f32.mrf.mxu0
        %v6468 = vadd.f32 %v6379, %v6467
        %v6469 = vpop.f32.mrf.mxu0
        %v6470 = vadd.f32 %v6381, %v6469
        %6471 = vmatmul.bf16.gmra.mxu0 %v5927
        %v6472 = vpop.f32.mrf.mxu0
        %v6473 = vadd.f32 %v6384, %v6472
        %v6474 = vpop.f32.mrf.mxu0
        %v6475 = vadd.f32 %v6386, %v6474
        %6476 = vmatmul.bf16.gmra.mxu0 %v5939
        %v6477 = vpop.f32.mrf.mxu0
        %v6478 = vadd.f32 %v6389, %v6477
        %v6479 = vpop.f32.mrf.mxu0
        %v6480 = vadd.f32 %v6391, %v6479
        %6481 = vmatmul.bf16.gmra.mxu0 %v5951
        %v6482 = vpop.f32.mrf.mxu0
        %v6483 = vadd.f32 %v6394, %v6482
        %v6484 = vpop.f32.mrf.mxu0
        %v6485 = vadd.f32 %v6396, %v6484
        %6486 = vmatmul.bf16.gmra.mxu0 %v5963
        %v6487 = vpop.f32.mrf.mxu0
        %v6488 = vadd.f32 %v6399, %v6487
        %v6489 = vpop.f32.mrf.mxu0
        %v6490 = vadd.f32 %v6401, %v6489
        %6491 = vmatmul.bf16.gmra.mxu0 %v5975
        %v6492 = vpop.f32.mrf.mxu0
        %v6493 = vadd.f32 %v6404, %v6492
        %v6494 = vpop.f32.mrf.mxu0
        %v6495 = vadd.f32 %v6406, %v6494
        %6496 = vmatmul.bf16.gmra.mxu0 %v5987
        %v6497 = vpop.f32.mrf.mxu0
        %v6498 = vadd.f32 %v6409, %v6497
        %v6499 = vpop.f32.mrf.mxu0
        %v6500 = vadd.f32 %v6411, %v6499
        %6501 = vmatmul.bf16.gmra.mxu0 %v5999
        %v6502 = vpop.f32.mrf.mxu0
        %v6503 = vadd.f32 %v6414, %v6502
        %v6504 = vpop.f32.mrf.mxu0
        %v6505 = vadd.f32 %v6416, %v6504
        %6506 = vmatmul.bf16.gmra.mxu0 %v6011
        %v6507 = vpop.f32.mrf.mxu0
        %v6508 = vadd.f32 %v6419, %v6507
        %v6509 = vpop.f32.mrf.mxu0
        %v6510 = vadd.f32 %v6421, %v6509
        %6511 = vmatmul.bf16.gmra.mxu0 %v6023
        %v6512 = vpop.f32.mrf.mxu0
        %v6513 = vadd.f32 %v6424, %v6512
        %v6514 = vpop.f32.mrf.mxu0
        %v6515 = vadd.f32 %v6426, %v6514
        %6516 = vmatmul.bf16.gmra.mxu0 %v6035
        %v6517 = vpop.f32.mrf.mxu0
        %v6518 = vadd.f32 %v6429, %v6517
        %v6519 = vpop.f32.mrf.mxu0
        %v6520 = vadd.f32 %v6431, %v6519
        %6521 = vmatmul.bf16.gmra.mxu0 %v6047
        %v6522 = vpop.f32.mrf.mxu0
        %v6523 = vadd.f32 %v6434, %v6522
        %v6524 = vpop.f32.mrf.mxu0
        %v6525 = vadd.f32 %v6436, %v6524
        %6526 = vmatmul.bf16.gmra.mxu0 %v6059
        %v6527 = vpop.f32.mrf.mxu0
        %v6528 = vadd.f32 %v6439, %v6527
        %v6529 = vpop.f32.mrf.mxu0
        %v6530 = vadd.f32 %v6441, %v6529
        %6531 = vmatmul.bf16.gmra.mxu0 %v6071
        %v6532 = vpop.f32.mrf.mxu0
        %v6533 = vadd.f32 %v6444, %v6532
        %v6534 = vpop.f32.mrf.mxu0
        %v6535 = vadd.f32 %v6446, %v6534
        %6536 = vmatmul.bf16.gmra.mxu0 %v6083
        %v6537 = vpop.f32.mrf.mxu0
        %v6538 = vadd.f32 %v6449, %v6537
        %v6539 = vpop.f32.mrf.mxu0
        %v6540 = vadd.f32 %v6451, %v6539
        %6541 = vmatmul.bf16.gmra.mxu0 %v6095
        %v6542 = vpop.f32.mrf.mxu0
        %v6543 = vadd.f32 %v6454, %v6542
        %v6544 = vpop.f32.mrf.mxu0
        %v6545 = vadd.f32 %v6456, %v6544
        %6546 = vdwg.mxu0
        %6547 = vmatpush.bf16.msra.mxu0 %v6344
        %6548 = vmatpush.bf16.msra.mxu0 %v6343
        %6549 = vmatpush.bf16.msra.mxu0 %v6342
        %6550 = vmatpush.bf16.msra.mxu0 %v6341
        %6551 = vmatpush.bf16.msra.mxu0 %v6340
        %6552 = vmatpush.bf16.msra.mxu0 %v6339
        %6553 = vmatpush.bf16.msra.mxu0 %v6338
        %6554 = vmatpush.bf16.msra.mxu0 %v6337
        %6555 = vmatmul.bf16.gmra.mxu0 %v6114
        %v6556 = vpop.f32.mrf.mxu0
        %v6557 = vadd.f32 %v6468, %v6556
        %v6558 = vpop.f32.mrf.mxu0
        %v6559 = vadd.f32 %v6470, %v6558
        %6560 = vmatmul.bf16.gmra.mxu0 %v6117
        %v6561 = vpop.f32.mrf.mxu0
        %v6562 = vadd.f32 %v6473, %v6561
        %v6563 = vpop.f32.mrf.mxu0
        %v6564 = vadd.f32 %v6475, %v6563
        %6565 = vmatmul.bf16.gmra.mxu0 %v6120
        %v6566 = vpop.f32.mrf.mxu0
        %v6567 = vadd.f32 %v6478, %v6566
        %v6568 = vpop.f32.mrf.mxu0
        %v6569 = vadd.f32 %v6480, %v6568
        %6570 = vmatmul.bf16.gmra.mxu0 %v6123
        %v6571 = vpop.f32.mrf.mxu0
        %v6572 = vadd.f32 %v6483, %v6571
        %v6573 = vpop.f32.mrf.mxu0
        %v6574 = vadd.f32 %v6485, %v6573
        %6575 = vmatmul.bf16.gmra.mxu0 %v6126
        %v6576 = vpop.f32.mrf.mxu0
        %v6577 = vadd.f32 %v6488, %v6576
        %v6578 = vpop.f32.mrf.mxu0
        %v6579 = vadd.f32 %v6490, %v6578
        %6580 = vmatmul.bf16.gmra.mxu0 %v6129
        %v6581 = vpop.f32.mrf.mxu0
        %v6582 = vadd.f32 %v6493, %v6581
        %v6583 = vpop.f32.mrf.mxu0
        %v6584 = vadd.f32 %v6495, %v6583
        %6585 = vmatmul.bf16.gmra.mxu0 %v6132
        %v6586 = vpop.f32.mrf.mxu0
        %v6587 = vadd.f32 %v6498, %v6586
        %v6588 = vpop.f32.mrf.mxu0
        %v6589 = vadd.f32 %v6500, %v6588
        %6590 = vmatmul.bf16.gmra.mxu0 %v6135
        %v6591 = vpop.f32.mrf.mxu0
        %v6592 = vadd.f32 %v6503, %v6591
        %v6593 = vpop.f32.mrf.mxu0
        %v6594 = vadd.f32 %v6505, %v6593
        %6595 = vmatmul.bf16.gmra.mxu0 %v6138
        %v6596 = vpop.f32.mrf.mxu0
        %v6597 = vadd.f32 %v6508, %v6596
        %v6598 = vpop.f32.mrf.mxu0
        %v6599 = vadd.f32 %v6510, %v6598
        %6600 = vmatmul.bf16.gmra.mxu0 %v6141
        %v6601 = vpop.f32.mrf.mxu0
        %v6602 = vadd.f32 %v6513, %v6601
        %v6603 = vpop.f32.mrf.mxu0
        %v6604 = vadd.f32 %v6515, %v6603
        %6605 = vmatmul.bf16.gmra.mxu0 %v6144
        %v6606 = vpop.f32.mrf.mxu0
        %v6607 = vadd.f32 %v6518, %v6606
        %v6608 = vpop.f32.mrf.mxu0
        %v6609 = vadd.f32 %v6520, %v6608
        %6610 = vmatmul.bf16.gmra.mxu0 %v6147
        %v6611 = vpop.f32.mrf.mxu0
        %v6612 = vadd.f32 %v6523, %v6611
        %v6613 = vpop.f32.mrf.mxu0
        %v6614 = vadd.f32 %v6525, %v6613
        %6615 = vmatmul.bf16.gmra.mxu0 %v6150
        %v6616 = vpop.f32.mrf.mxu0
        %v6617 = vadd.f32 %v6528, %v6616
        %v6618 = vpop.f32.mrf.mxu0
        %v6619 = vadd.f32 %v6530, %v6618
        %6620 = vmatmul.bf16.gmra.mxu0 %v6153
        %v6621 = vpop.f32.mrf.mxu0
        %v6622 = vadd.f32 %v6533, %v6621
        %v6623 = vpop.f32.mrf.mxu0
        %v6624 = vadd.f32 %v6535, %v6623
        %6625 = vmatmul.bf16.gmra.mxu0 %v6156
        %v6626 = vpop.f32.mrf.mxu0
        %v6627 = vadd.f32 %v6538, %v6626
        %v6628 = vpop.f32.mrf.mxu0
        %v6629 = vadd.f32 %v6540, %v6628
        %6630 = vmatmul.bf16.gmra.mxu0 %v6159
        %v6631 = vpop.f32.mrf.mxu0
        %v6632 = vadd.f32 %v6543, %v6631
        %v6633 = vpop.f32.mrf.mxu0
        %v6634 = vadd.f32 %v6545, %v6633
        %6635 = vdwg.mxu0
        %v6636 = vadd.f32 %v5632, %v6557
        %v6637 = vadd.f32 %v5634, %v6559
        %v6638 = vadd.f32 %v5637, %v6562
        %v6639 = vadd.f32 %v5639, %v6564
        %v6640 = vadd.f32 %v5642, %v6567
        %v6641 = vadd.f32 %v5644, %v6569
        %v6642 = vadd.f32 %v5647, %v6572
        %v6643 = vadd.f32 %v5649, %v6574
        %v6644 = vadd.f32 %v5652, %v6577
        %v6645 = vadd.f32 %v5654, %v6579
        %v6646 = vadd.f32 %v5657, %v6582
        %v6647 = vadd.f32 %v5659, %v6584
        %v6648 = vadd.f32 %v5662, %v6587
        %v6649 = vadd.f32 %v5664, %v6589
        %v6650 = vadd.f32 %v5667, %v6592
        %v6651 = vadd.f32 %v5669, %v6594
        %v6652 = vadd.f32 %v5672, %v6597
        %v6653 = vadd.f32 %v5674, %v6599
        %v6654 = vadd.f32 %v5677, %v6602
        %v6655 = vadd.f32 %v5679, %v6604
        %v6656 = vadd.f32 %v5682, %v6607
        %v6657 = vadd.f32 %v5684, %v6609
        %v6658 = vadd.f32 %v5687, %v6612
        %v6659 = vadd.f32 %v5689, %v6614
        %v6660 = vadd.f32 %v5692, %v6617
        %v6661 = vadd.f32 %v5694, %v6619
        %v6662 = vadd.f32 %v5697, %v6622
        %v6663 = vadd.f32 %v5699, %v6624
        %v6664 = vadd.f32 %v5702, %v6627
        %v6665 = vadd.f32 %v5704, %v6629
        %v6666 = vadd.f32 %v5707, %v6632
        %v6667 = vadd.f32 %v5709, %v6634
        %v6668 = vld [vmem:[%s5] sm:$0x1]
        %v6670 = vperm.slane %v6668, 0
        %v6672 = vmul.f32 %v6636, %v6670
        %v6673 = vmul.f32 %v6637, %v6670
        %v6674 = vmul.f32 %v6638, %v6670
        %v6675 = vmul.f32 %v6639, %v6670
        %v6676 = vmul.f32 %v6640, %v6670
        %v6677 = vmul.f32 %v6641, %v6670
        %v6678 = vmul.f32 %v6642, %v6670
        %v6679 = vmul.f32 %v6643, %v6670
        %v6680 = vmul.f32 %v6644, %v6670
        %v6681 = vmul.f32 %v6645, %v6670
        %v6682 = vmul.f32 %v6646, %v6670
        %v6683 = vmul.f32 %v6647, %v6670
        %v6684 = vmul.f32 %v6648, %v6670
        %v6685 = vmul.f32 %v6649, %v6670
        %v6686 = vmul.f32 %v6650, %v6670
        %v6687 = vmul.f32 %v6651, %v6670
        %v6688 = vmul.f32 %v6652, %v6670
        %v6689 = vmul.f32 %v6653, %v6670
        %v6690 = vmul.f32 %v6654, %v6670
        %v6691 = vmul.f32 %v6655, %v6670
        %v6692 = vmul.f32 %v6656, %v6670
        %v6693 = vmul.f32 %v6657, %v6670
        %v6694 = vmul.f32 %v6658, %v6670
        %v6695 = vmul.f32 %v6659, %v6670
        %v6696 = vmul.f32 %v6660, %v6670
        %v6697 = vmul.f32 %v6661, %v6670
        %v6698 = vmul.f32 %v6662, %v6670
        %v6699 = vmul.f32 %v6663, %v6670
        %v6700 = vmul.f32 %v6664, %v6670
        %v6701 = vmul.f32 %v6665, %v6670
        %v6702 = vmul.f32 %v6666, %v6670
        %v6703 = vmul.f32 %v6667, %v6670
        %v6704 = vld [vmem:[%s6] sm:$0x1]
        %v6706 = vperm.slane %v6704, 0
        %v6708 = vadd.f32 %v6672, %v6706
        %v6709 = vadd.f32 %v6673, %v6706
        %v6710 = vadd.f32 %v6674, %v6706
        %v6711 = vadd.f32 %v6675, %v6706
        %v6712 = vadd.f32 %v6676, %v6706
        %v6713 = vadd.f32 %v6677, %v6706
        %v6714 = vadd.f32 %v6678, %v6706
        %v6715 = vadd.f32 %v6679, %v6706
        %v6716 = vadd.f32 %v6680, %v6706
        %v6717 = vadd.f32 %v6681, %v6706
        %v6718 = vadd.f32 %v6682, %v6706
        %v6719 = vadd.f32 %v6683, %v6706
        %v6720 = vadd.f32 %v6684, %v6706
        %v6721 = vadd.f32 %v6685, %v6706
        %v6722 = vadd.f32 %v6686, %v6706
        %v6723 = vadd.f32 %v6687, %v6706
        %v6724 = vadd.f32 %v6688, %v6706
        %v6725 = vadd.f32 %v6689, %v6706
        %v6726 = vadd.f32 %v6690, %v6706
        %v6727 = vadd.f32 %v6691, %v6706
        %v6728 = vadd.f32 %v6692, %v6706
        %v6729 = vadd.f32 %v6693, %v6706
        %v6730 = vadd.f32 %v6694, %v6706
        %v6731 = vadd.f32 %v6695, %v6706
        %v6732 = vadd.f32 %v6696, %v6706
        %v6733 = vadd.f32 %v6697, %v6706
        %v6734 = vadd.f32 %v6698, %v6706
        %v6735 = vadd.f32 %v6699, %v6706
        %v6736 = vadd.f32 %v6700, %v6706
        %v6737 = vadd.f32 %v6701, %v6706
        %v6738 = vadd.f32 %v6702, %v6706
        %v6739 = vadd.f32 %v6703, %v6706
        %v6740 = vld [vmem:[%s890] sm:$0xf]
        %v6741 = vld [vmem:[%s890 + $0x4] sm:$0xf]
        %v6742 = vld [vmem:[%s890 + $0x8] sm:$0x1]
        %v6743 = vld [vmem:[%s890 + $0xc] sm:$0xf]
        %v6744 = vld [vmem:[%s890 + $0x10] sm:$0xf]
        %v6745 = vld [vmem:[%s890 + $0x14] sm:$0x1]
        %v6746 = vld [vmem:[%s890 + $0x18] sm:$0xf]
        %v6747 = vld [vmem:[%s890 + $0x1c] sm:$0xf]
        %v6748 = vld [vmem:[%s890 + $0x20] sm:$0x1]
        %v6749 = vld [vmem:[%s890 + $0x24] sm:$0xf]
        %v6750 = vld [vmem:[%s890 + $0x28] sm:$0xf]
        %v6751 = vld [vmem:[%s890 + $0x2c] sm:$0x1]
        %v6752 = vld [vmem:[%s890 + $0x30] sm:$0xf]
        %v6753 = vld [vmem:[%s890 + $0x34] sm:$0xf]
        %v6754 = vld [vmem:[%s890 + $0x38] sm:$0x1]
        %v6755 = vld [vmem:[%s890 + $0x3c] sm:$0xf]
        %v6756 = vld [vmem:[%s890 + $0x40] sm:$0xf]
        %v6757 = vld [vmem:[%s890 + $0x44] sm:$0x1]
        %v6758 = vld [vmem:[%s890 + $0x48] sm:$0xf]
        %v6759 = vld [vmem:[%s890 + $0x4c] sm:$0xf]
        %v6760 = vld [vmem:[%s890 + $0x50] sm:$0x1]
        %v6761 = vld [vmem:[%s890 + $0x54] sm:$0xf]
        %v6762 = vld [vmem:[%s890 + $0x58] sm:$0xf]
        %v6763 = vld [vmem:[%s890 + $0x5c] sm:$0x1]
        %v6764 = vld [vmem:[%s890 + $0x60] sm:$0xf]
        %v6765 = vld [vmem:[%s890 + $0x64] sm:$0xf]
        %v6766 = vld [vmem:[%s890 + $0x68] sm:$0x1]
        %v6767 = vld [vmem:[%s890 + $0x6c] sm:$0xf]
        %v6768 = vld [vmem:[%s890 + $0x70] sm:$0xf]
        %v6769 = vld [vmem:[%s890 + $0x74] sm:$0x1]
        %v6770 = vld [vmem:[%s890 + $0x78] sm:$0xf]
        %v6771 = vld [vmem:[%s890 + $0x7c] sm:$0xf]
        %v6772 = vld [vmem:[%s890 + $0x80] sm:$0x1]
        %v6773 = vld [vmem:[%s890 + $0x84] sm:$0xf]
        %v6774 = vld [vmem:[%s890 + $0x88] sm:$0xf]
        %v6775 = vld [vmem:[%s890 + $0x8c] sm:$0x1]
        %v6776 = vld [vmem:[%s890 + $0x90] sm:$0xf]
        %v6777 = vld [vmem:[%s890 + $0x94] sm:$0xf]
        %v6778 = vld [vmem:[%s890 + $0x98] sm:$0x1]
        %v6779 = vld [vmem:[%s890 + $0x9c] sm:$0xf]
        %v6780 = vld [vmem:[%s890 + $0xa0] sm:$0xf]
        %v6781 = vld [vmem:[%s890 + $0xa4] sm:$0x1]
        %v6782 = vld [vmem:[%s890 + $0xa8] sm:$0xf]
        %v6783 = vld [vmem:[%s890 + $0xac] sm:$0xf]
        %v6784 = vld [vmem:[%s890 + $0xb0] sm:$0x1]
        %v6785 = vld [vmem:[%s890 + $0xb4] sm:$0xf]
        %v6786 = vld [vmem:[%s890 + $0xb8] sm:$0xf]
        %v6787 = vld [vmem:[%s890 + $0xbc] sm:$0x1]
        %vm6788 = vsmask.f32 3328
        %vm6789 = vsmask.f32 7440
        %vm6790 = vmor %vm6788, %vm6789
        %v6792 = vshrl.u32 %v6740, 16
        %v6794 = vrot.slane %v6792, 4
        %v6795 = vshll.u32 %v6740, 16
        %v6797 = vrot.slane %v6795, 5
        %v6798 = vor.u32 %v6794, %v6797
        %v6799 = vrot.slane %v6798, 4
        %v6801 = vshll.u32 %v6741, 16
        %v6803 = vrot.slane %v6801, 5
        %v6804 = vsel %vm6790, %v6799, %v6803
        %v6805 = vshrl.u32 %v6741, 16
        %v6807 = vrot.slane %v6805, 4
        %v6808 = vor.u32 %v6807, %v6803
        %v6809 = vrot.slane %v6808, 4
        %v6811 = vshll.u32 %v6742, 16
        %v6813 = vrot.slane %v6811, 5
        %v6814 = vsel %vm6790, %v6809, %v6813
        %v6816 = vshrl.u32 %v6743, 16
        %v6818 = vrot.slane %v6816, 4
        %v6819 = vshll.u32 %v6743, 16
        %v6821 = vrot.slane %v6819, 5
        %v6822 = vor.u32 %v6818, %v6821
        %v6823 = vrot.slane %v6822, 4
        %v6825 = vshll.u32 %v6744, 16
        %v6827 = vrot.slane %v6825, 5
        %v6828 = vsel %vm6790, %v6823, %v6827
        %v6829 = vshrl.u32 %v6744, 16
        %v6831 = vrot.slane %v6829, 4
        %v6832 = vor.u32 %v6831, %v6827
        %v6833 = vrot.slane %v6832, 4
        %v6835 = vshll.u32 %v6745, 16
        %v6837 = vrot.slane %v6835, 5
        %v6838 = vsel %vm6790, %v6833, %v6837
        %v6840 = vshrl.u32 %v6746, 16
        %v6842 = vrot.slane %v6840, 4
        %v6843 = vshll.u32 %v6746, 16
        %v6845 = vrot.slane %v6843, 5
        %v6846 = vor.u32 %v6842, %v6845
        %v6847 = vrot.slane %v6846, 4
        %v6849 = vshll.u32 %v6747, 16
        %v6851 = vrot.slane %v6849, 5
        %v6852 = vsel %vm6790, %v6847, %v6851
        %v6853 = vshrl.u32 %v6747, 16
        %v6855 = vrot.slane %v6853, 4
        %v6856 = vor.u32 %v6855, %v6851
        %v6857 = vrot.slane %v6856, 4
        %v6859 = vshll.u32 %v6748, 16
        %v6861 = vrot.slane %v6859, 5
        %v6862 = vsel %vm6790, %v6857, %v6861
        %v6864 = vshrl.u32 %v6749, 16
        %v6866 = vrot.slane %v6864, 4
        %v6867 = vshll.u32 %v6749, 16
        %v6869 = vrot.slane %v6867, 5
        %v6870 = vor.u32 %v6866, %v6869
        %v6871 = vrot.slane %v6870, 4
        %v6873 = vshll.u32 %v6750, 16
        %v6875 = vrot.slane %v6873, 5
        %v6876 = vsel %vm6790, %v6871, %v6875
        %v6877 = vshrl.u32 %v6750, 16
        %v6879 = vrot.slane %v6877, 4
        %v6880 = vor.u32 %v6879, %v6875
        %v6881 = vrot.slane %v6880, 4
        %v6883 = vshll.u32 %v6751, 16
        %v6885 = vrot.slane %v6883, 5
        %v6886 = vsel %vm6790, %v6881, %v6885
        %v6888 = vshrl.u32 %v6752, 16
        %v6890 = vrot.slane %v6888, 4
        %v6891 = vshll.u32 %v6752, 16
        %v6893 = vrot.slane %v6891, 5
        %v6894 = vor.u32 %v6890, %v6893
        %v6895 = vrot.slane %v6894, 4
        %v6897 = vshll.u32 %v6753, 16
        %v6899 = vrot.slane %v6897, 5
        %v6900 = vsel %vm6790, %v6895, %v6899
        %v6901 = vshrl.u32 %v6753, 16
        %v6903 = vrot.slane %v6901, 4
        %v6904 = vor.u32 %v6903, %v6899
        %v6905 = vrot.slane %v6904, 4
        %v6907 = vshll.u32 %v6754, 16
        %v6909 = vrot.slane %v6907, 5
        %v6910 = vsel %vm6790, %v6905, %v6909
        %v6912 = vshrl.u32 %v6755, 16
        %v6914 = vrot.slane %v6912, 4
        %v6915 = vshll.u32 %v6755, 16
        %v6917 = vrot.slane %v6915, 5
        %v6918 = vor.u32 %v6914, %v6917
        %v6919 = vrot.slane %v6918, 4
        %v6921 = vshll.u32 %v6756, 16
        %v6923 = vrot.slane %v6921, 5
        %v6924 = vsel %vm6790, %v6919, %v6923
        %v6925 = vshrl.u32 %v6756, 16
        %v6927 = vrot.slane %v6925, 4
        %v6928 = vor.u32 %v6927, %v6923
        %v6929 = vrot.slane %v6928, 4
        %v6931 = vshll.u32 %v6757, 16
        %v6933 = vrot.slane %v6931, 5
        %v6934 = vsel %vm6790, %v6929, %v6933
        %v6936 = vshrl.u32 %v6758, 16
        %v6938 = vrot.slane %v6936, 4
        %v6939 = vshll.u32 %v6758, 16
        %v6941 = vrot.slane %v6939, 5
        %v6942 = vor.u32 %v6938, %v6941
        %v6943 = vrot.slane %v6942, 4
        %v6945 = vshll.u32 %v6759, 16
        %v6947 = vrot.slane %v6945, 5
        %v6948 = vsel %vm6790, %v6943, %v6947
        %v6949 = vshrl.u32 %v6759, 16
        %v6951 = vrot.slane %v6949, 4
        %v6952 = vor.u32 %v6951, %v6947
        %v6953 = vrot.slane %v6952, 4
        %v6955 = vshll.u32 %v6760, 16
        %v6957 = vrot.slane %v6955, 5
        %v6958 = vsel %vm6790, %v6953, %v6957
        %v6960 = vshrl.u32 %v6761, 16
        %v6962 = vrot.slane %v6960, 4
        %v6963 = vshll.u32 %v6761, 16
        %v6965 = vrot.slane %v6963, 5
        %v6966 = vor.u32 %v6962, %v6965
        %v6967 = vrot.slane %v6966, 4
        %v6969 = vshll.u32 %v6762, 16
        %v6971 = vrot.slane %v6969, 5
        %v6972 = vsel %vm6790, %v6967, %v6971
        %v6973 = vshrl.u32 %v6762, 16
        %v6975 = vrot.slane %v6973, 4
        %v6976 = vor.u32 %v6975, %v6971
        %v6977 = vrot.slane %v6976, 4
        %v6979 = vshll.u32 %v6763, 16
        %v6981 = vrot.slane %v6979, 5
        %v6982 = vsel %vm6790, %v6977, %v6981
        %v6984 = vshrl.u32 %v6764, 16
        %v6986 = vrot.slane %v6984, 4
        %v6987 = vshll.u32 %v6764, 16
        %v6989 = vrot.slane %v6987, 5
        %v6990 = vor.u32 %v6986, %v6989
        %v6991 = vrot.slane %v6990, 4
        %v6993 = vshll.u32 %v6765, 16
        %v6995 = vrot.slane %v6993, 5
        %v6996 = vsel %vm6790, %v6991, %v6995
        %v6997 = vshrl.u32 %v6765, 16
        %v6999 = vrot.slane %v6997, 4
        %v7000 = vor.u32 %v6999, %v6995
        %v7001 = vrot.slane %v7000, 4
        %v7003 = vshll.u32 %v6766, 16
        %v7005 = vrot.slane %v7003, 5
        %v7006 = vsel %vm6790, %v7001, %v7005
        %v7008 = vshrl.u32 %v6767, 16
        %v7010 = vrot.slane %v7008, 4
        %v7011 = vshll.u32 %v6767, 16
        %v7013 = vrot.slane %v7011, 5
        %v7014 = vor.u32 %v7010, %v7013
        %v7015 = vrot.slane %v7014, 4
        %v7017 = vshll.u32 %v6768, 16
        %v7019 = vrot.slane %v7017, 5
        %v7020 = vsel %vm6790, %v7015, %v7019
        %v7021 = vshrl.u32 %v6768, 16
        %v7023 = vrot.slane %v7021, 4
        %v7024 = vor.u32 %v7023, %v7019
        %v7025 = vrot.slane %v7024, 4
        %v7027 = vshll.u32 %v6769, 16
        %v7029 = vrot.slane %v7027, 5
        %v7030 = vsel %vm6790, %v7025, %v7029
        %v7032 = vshrl.u32 %v6770, 16
        %v7034 = vrot.slane %v7032, 4
        %v7035 = vshll.u32 %v6770, 16
        %v7037 = vrot.slane %v7035, 5
        %v7038 = vor.u32 %v7034, %v7037
        %v7039 = vrot.slane %v7038, 4
        %v7041 = vshll.u32 %v6771, 16
        %v7043 = vrot.slane %v7041, 5
        %v7044 = vsel %vm6790, %v7039, %v7043
        %v7045 = vshrl.u32 %v6771, 16
        %v7047 = vrot.slane %v7045, 4
        %v7048 = vor.u32 %v7047, %v7043
        %v7049 = vrot.slane %v7048, 4
        %v7051 = vshll.u32 %v6772, 16
        %v7053 = vrot.slane %v7051, 5
        %v7054 = vsel %vm6790, %v7049, %v7053
        %v7056 = vshrl.u32 %v6773, 16
        %v7058 = vrot.slane %v7056, 4
        %v7059 = vshll.u32 %v6773, 16
        %v7061 = vrot.slane %v7059, 5
        %v7062 = vor.u32 %v7058, %v7061
        %v7063 = vrot.slane %v7062, 4
        %v7065 = vshll.u32 %v6774, 16
        %v7067 = vrot.slane %v7065, 5
        %v7068 = vsel %vm6790, %v7063, %v7067
        %v7069 = vshrl.u32 %v6774, 16
        %v7071 = vrot.slane %v7069, 4
        %v7072 = vor.u32 %v7071, %v7067
        %v7073 = vrot.slane %v7072, 4
        %v7075 = vshll.u32 %v6775, 16
        %v7077 = vrot.slane %v7075, 5
        %v7078 = vsel %vm6790, %v7073, %v7077
        %v7080 = vshrl.u32 %v6776, 16
        %v7082 = vrot.slane %v7080, 4
        %v7083 = vshll.u32 %v6776, 16
        %v7085 = vrot.slane %v7083, 5
        %v7086 = vor.u32 %v7082, %v7085
        %v7087 = vrot.slane %v7086, 4
        %v7089 = vshll.u32 %v6777, 16
        %v7091 = vrot.slane %v7089, 5
        %v7092 = vsel %vm6790, %v7087, %v7091
        %v7093 = vshrl.u32 %v6777, 16
        %v7095 = vrot.slane %v7093, 4
        %v7096 = vor.u32 %v7095, %v7091
        %v7097 = vrot.slane %v7096, 4
        %v7099 = vshll.u32 %v6778, 16
        %v7101 = vrot.slane %v7099, 5
        %v7102 = vsel %vm6790, %v7097, %v7101
        %v7104 = vshrl.u32 %v6779, 16
        %v7106 = vrot.slane %v7104, 4
        %v7107 = vshll.u32 %v6779, 16
        %v7109 = vrot.slane %v7107, 5
        %v7110 = vor.u32 %v7106, %v7109
        %v7111 = vrot.slane %v7110, 4
        %v7113 = vshll.u32 %v6780, 16
        %v7115 = vrot.slane %v7113, 5
        %v7116 = vsel %vm6790, %v7111, %v7115
        %v7117 = vshrl.u32 %v6780, 16
        %v7119 = vrot.slane %v7117, 4
        %v7120 = vor.u32 %v7119, %v7115
        %v7121 = vrot.slane %v7120, 4
        %v7123 = vshll.u32 %v6781, 16
        %v7125 = vrot.slane %v7123, 5
        %v7126 = vsel %vm6790, %v7121, %v7125
        %v7128 = vshrl.u32 %v6782, 16
        %v7130 = vrot.slane %v7128, 4
        %v7131 = vshll.u32 %v6782, 16
        %v7133 = vrot.slane %v7131, 5
        %v7134 = vor.u32 %v7130, %v7133
        %v7135 = vrot.slane %v7134, 4
        %v7137 = vshll.u32 %v6783, 16
        %v7139 = vrot.slane %v7137, 5
        %v7140 = vsel %vm6790, %v7135, %v7139
        %v7141 = vshrl.u32 %v6783, 16
        %v7143 = vrot.slane %v7141, 4
        %v7144 = vor.u32 %v7143, %v7139
        %v7145 = vrot.slane %v7144, 4
        %v7147 = vshll.u32 %v6784, 16
        %v7149 = vrot.slane %v7147, 5
        %v7150 = vsel %vm6790, %v7145, %v7149
        %v7152 = vshrl.u32 %v6785, 16
        %v7154 = vrot.slane %v7152, 4
        %v7155 = vshll.u32 %v6785, 16
        %v7157 = vrot.slane %v7155, 5
        %v7158 = vor.u32 %v7154, %v7157
        %v7159 = vrot.slane %v7158, 4
        %v7161 = vshll.u32 %v6786, 16
        %v7163 = vrot.slane %v7161, 5
        %v7164 = vsel %vm6790, %v7159, %v7163
        %v7165 = vshrl.u32 %v6786, 16
        %v7167 = vrot.slane %v7165, 4
        %v7168 = vor.u32 %v7167, %v7163
        %v7169 = vrot.slane %v7168, 4
        %v7171 = vshll.u32 %v6787, 16
        %v7173 = vrot.slane %v7171, 5
        %v7174 = vsel %vm6790, %v7169, %v7173
        %v7175 = vld [vmem:[%s7] sm:$0xf]
        %v7176 = vld [vmem:[%s7 + $0x4] sm:$0xf]
        %v7177 = vld [vmem:[%s7 + $0x8] sm:$0xf]
        %v7178 = vld [vmem:[%s7 + $0xc] sm:$0xf]
        %v7179 = vld [vmem:[%s7 + $0x10] sm:$0xf]
        %v7180 = vld [vmem:[%s7 + $0x14] sm:$0xf]
        %v7181 = vld [vmem:[%s7 + $0x18] sm:$0xf]
        %v7182 = vld [vmem:[%s7 + $0x1c] sm:$0xf]
        %v7183 = vld [vmem:[%s7 + $0x20] sm:$0xf]
        %v7184 = vld [vmem:[%s7 + $0x24] sm:$0xf]
        %v7185 = vld [vmem:[%s7 + $0x28] sm:$0xf]
        %v7186 = vld [vmem:[%s7 + $0x2c] sm:$0xf]
        %v7187 = vld [vmem:[%s7 + $0x30] sm:$0xf]
        %v7188 = vld [vmem:[%s7 + $0x34] sm:$0xf]
        %v7189 = vld [vmem:[%s7 + $0x38] sm:$0xf]
        %v7190 = vld [vmem:[%s7 + $0x3c] sm:$0xf]
        %v7191 = vunpack.c.l.b16 %v6804
        %v7192 = vunpack.c.l.b16 %v6814
        %v7193 = vunpack.c.l.b16 %v6828
        %v7194 = vunpack.c.l.b16 %v6838
        %v7195 = vunpack.c.l.b16 %v6852
        %v7196 = vunpack.c.l.b16 %v6862
        %v7197 = vunpack.c.l.b16 %v6876
        %v7198 = vunpack.c.l.b16 %v6886
        %v7199 = vunpack.c.l.b16 %v6900
        %v7200 = vunpack.c.l.b16 %v6910
        %v7201 = vunpack.c.l.b16 %v6924
        %v7202 = vunpack.c.l.b16 %v6934
        %v7203 = vunpack.c.l.b16 %v6948
        %v7204 = vunpack.c.l.b16 %v6958
        %v7205 = vunpack.c.l.b16 %v6972
        %v7206 = vunpack.c.l.b16 %v6982
        %v7207 = vunpack.c.l.b16 %v6996
        %v7208 = vunpack.c.l.b16 %v7006
        %v7209 = vunpack.c.l.b16 %v7020
        %v7210 = vunpack.c.l.b16 %v7030
        %v7211 = vunpack.c.l.b16 %v7044
        %v7212 = vunpack.c.l.b16 %v7054
        %v7213 = vunpack.c.l.b16 %v7068
        %v7214 = vunpack.c.l.b16 %v7078
        %v7215 = vunpack.c.l.b16 %v7092
        %v7216 = vunpack.c.l.b16 %v7102
        %v7217 = vunpack.c.l.b16 %v7116
        %v7218 = vunpack.c.l.b16 %v7126
        %v7219 = vunpack.c.l.b16 %v7140
        %v7220 = vunpack.c.l.b16 %v7150
        %v7221 = vunpack.c.l.b16 %v7164
        %v7222 = vunpack.c.l.b16 %v7174
        %v7223 = vpack.c.b16 %v7192, %v7191
        %v7224 = vpack.c.b16 %v7194, %v7193
        %v7225 = vpack.c.b16 %v7196, %v7195
        %v7226 = vpack.c.b16 %v7198, %v7197
        %v7227 = vpack.c.b16 %v7200, %v7199
        %v7228 = vpack.c.b16 %v7202, %v7201
        %v7229 = vpack.c.b16 %v7204, %v7203
        %v7230 = vpack.c.b16 %v7206, %v7205
        %v7231 = vpack.c.b16 %v7208, %v7207
        %v7232 = vpack.c.b16 %v7210, %v7209
        %v7233 = vpack.c.b16 %v7212, %v7211
        %v7234 = vpack.c.b16 %v7214, %v7213
        %v7235 = vpack.c.b16 %v7216, %v7215
        %v7236 = vpack.c.b16 %v7218, %v7217
        %v7237 = vpack.c.b16 %v7220, %v7219
        %v7238 = vpack.c.b16 %v7222, %v7221
        %v7271 = vunpack.c.l.b16 %v7175
        %v7272 = vunpack.c.l.b16 %v7176
        %v7273 = vunpack.c.l.b16 %v7177
        %v7274 = vunpack.c.l.b16 %v7178
        %v7275 = vunpack.c.l.b16 %v7179
        %v7276 = vunpack.c.l.b16 %v7180
        %v7277 = vunpack.c.l.b16 %v7181
        %v7278 = vunpack.c.l.b16 %v7182
        %v7279 = vunpack.c.l.b16 %v7183
        %v7280 = vunpack.c.l.b16 %v7184
        %v7281 = vunpack.c.l.b16 %v7185
        %v7282 = vunpack.c.l.b16 %v7186
        %v7283 = vunpack.c.l.b16 %v7187
        %v7284 = vunpack.c.l.b16 %v7188
        %v7285 = vunpack.c.l.b16 %v7189
        %v7286 = vunpack.c.l.b16 %v7190
        %v7287 = vpack.c.b16 %v7272, %v7271
        %v7288 = vpack.c.b16 %v7274, %v7273
        %v7289 = vpack.c.b16 %v7276, %v7275
        %v7290 = vpack.c.b16 %v7278, %v7277
        %v7291 = vpack.c.b16 %v7280, %v7279
        %v7292 = vpack.c.b16 %v7282, %v7281
        %v7293 = vpack.c.b16 %v7284, %v7283
        %v7294 = vpack.c.b16 %v7286, %v7285
        %7303 = vmatpush.bf16.msra.mxu0 %v7294
        %7304 = vmatpush.bf16.msra.mxu0 %v7293
        %7305 = vmatpush.bf16.msra.mxu0 %v7292
        %7306 = vmatpush.bf16.msra.mxu0 %v7291
        %7307 = vmatpush.bf16.msra.mxu0 %v7290
        %7308 = vmatpush.bf16.msra.mxu0 %v7289
        %7309 = vmatpush.bf16.msra.mxu0 %v7288
        %7310 = vmatpush.bf16.msra.mxu0 %v7287
        %7311 = vmatmul.bf16.gmra.mxu0 %v7223
        %v7312 = vpop.f32.mrf.mxu0
        %v7313 = vadd.f32 0.0, %v7312
        %v7314 = vpop.f32.mrf.mxu0
        %v7315 = vadd.f32 0.0, %v7314
        %7316 = vmatmul.bf16.gmra.mxu0 %v7224
        %v7317 = vpop.f32.mrf.mxu0
        %v7318 = vadd.f32 0.0, %v7317
        %v7319 = vpop.f32.mrf.mxu0
        %v7320 = vadd.f32 0.0, %v7319
        %7321 = vmatmul.bf16.gmra.mxu0 %v7225
        %v7322 = vpop.f32.mrf.mxu0
        %v7323 = vadd.f32 0.0, %v7322
        %v7324 = vpop.f32.mrf.mxu0
        %v7325 = vadd.f32 0.0, %v7324
        %7326 = vmatmul.bf16.gmra.mxu0 %v7226
        %v7327 = vpop.f32.mrf.mxu0
        %v7328 = vadd.f32 0.0, %v7327
        %v7329 = vpop.f32.mrf.mxu0
        %v7330 = vadd.f32 0.0, %v7329
        %7331 = vmatmul.bf16.gmra.mxu0 %v7227
        %v7332 = vpop.f32.mrf.mxu0
        %v7333 = vadd.f32 0.0, %v7332
        %v7334 = vpop.f32.mrf.mxu0
        %v7335 = vadd.f32 0.0, %v7334
        %7336 = vmatmul.bf16.gmra.mxu0 %v7228
        %v7337 = vpop.f32.mrf.mxu0
        %v7338 = vadd.f32 0.0, %v7337
        %v7339 = vpop.f32.mrf.mxu0
        %v7340 = vadd.f32 0.0, %v7339
        %7341 = vmatmul.bf16.gmra.mxu0 %v7229
        %v7342 = vpop.f32.mrf.mxu0
        %v7343 = vadd.f32 0.0, %v7342
        %v7344 = vpop.f32.mrf.mxu0
        %v7345 = vadd.f32 0.0, %v7344
        %7346 = vmatmul.bf16.gmra.mxu0 %v7230
        %v7347 = vpop.f32.mrf.mxu0
        %v7348 = vadd.f32 0.0, %v7347
        %v7349 = vpop.f32.mrf.mxu0
        %v7350 = vadd.f32 0.0, %v7349
        %7351 = vmatmul.bf16.gmra.mxu0 %v7231
        %v7352 = vpop.f32.mrf.mxu0
        %v7353 = vadd.f32 0.0, %v7352
        %v7354 = vpop.f32.mrf.mxu0
        %v7355 = vadd.f32 0.0, %v7354
        %7356 = vmatmul.bf16.gmra.mxu0 %v7232
        %v7357 = vpop.f32.mrf.mxu0
        %v7358 = vadd.f32 0.0, %v7357
        %v7359 = vpop.f32.mrf.mxu0
        %v7360 = vadd.f32 0.0, %v7359
        %7361 = vmatmul.bf16.gmra.mxu0 %v7233
        %v7362 = vpop.f32.mrf.mxu0
        %v7363 = vadd.f32 0.0, %v7362
        %v7364 = vpop.f32.mrf.mxu0
        %v7365 = vadd.f32 0.0, %v7364
        %7366 = vmatmul.bf16.gmra.mxu0 %v7234
        %v7367 = vpop.f32.mrf.mxu0
        %v7368 = vadd.f32 0.0, %v7367
        %v7369 = vpop.f32.mrf.mxu0
        %v7370 = vadd.f32 0.0, %v7369
        %7371 = vmatmul.bf16.gmra.mxu0 %v7235
        %v7372 = vpop.f32.mrf.mxu0
        %v7373 = vadd.f32 0.0, %v7372
        %v7374 = vpop.f32.mrf.mxu0
        %v7375 = vadd.f32 0.0, %v7374
        %7376 = vmatmul.bf16.gmra.mxu0 %v7236
        %v7377 = vpop.f32.mrf.mxu0
        %v7378 = vadd.f32 0.0, %v7377
        %v7379 = vpop.f32.mrf.mxu0
        %v7380 = vadd.f32 0.0, %v7379
        %7381 = vmatmul.bf16.gmra.mxu0 %v7237
        %v7382 = vpop.f32.mrf.mxu0
        %v7383 = vadd.f32 0.0, %v7382
        %v7384 = vpop.f32.mrf.mxu0
        %v7385 = vadd.f32 0.0, %v7384
        %7386 = vmatmul.bf16.gmra.mxu0 %v7238
        %v7387 = vpop.f32.mrf.mxu0
        %v7388 = vadd.f32 0.0, %v7387
        %v7389 = vpop.f32.mrf.mxu0
        %v7390 = vadd.f32 0.0, %v7389
        %7391 = vdwg.mxu0
        %v7392 = vld [vmem:[%s8] sm:$0x1]
        %v7394 = vperm.slane %v7392, 0
        %v7396 = vmul.f32 %v7313, %v7394
        %v7397 = vmul.f32 %v7315, %v7394
        %v7398 = vmul.f32 %v7318, %v7394
        %v7399 = vmul.f32 %v7320, %v7394
        %v7400 = vmul.f32 %v7323, %v7394
        %v7401 = vmul.f32 %v7325, %v7394
        %v7402 = vmul.f32 %v7328, %v7394
        %v7403 = vmul.f32 %v7330, %v7394
        %v7404 = vmul.f32 %v7333, %v7394
        %v7405 = vmul.f32 %v7335, %v7394
        %v7406 = vmul.f32 %v7338, %v7394
        %v7407 = vmul.f32 %v7340, %v7394
        %v7408 = vmul.f32 %v7343, %v7394
        %v7409 = vmul.f32 %v7345, %v7394
        %v7410 = vmul.f32 %v7348, %v7394
        %v7411 = vmul.f32 %v7350, %v7394
        %v7412 = vmul.f32 %v7353, %v7394
        %v7413 = vmul.f32 %v7355, %v7394
        %v7414 = vmul.f32 %v7358, %v7394
        %v7415 = vmul.f32 %v7360, %v7394
        %v7416 = vmul.f32 %v7363, %v7394
        %v7417 = vmul.f32 %v7365, %v7394
        %v7418 = vmul.f32 %v7368, %v7394
        %v7419 = vmul.f32 %v7370, %v7394
        %v7420 = vmul.f32 %v7373, %v7394
        %v7421 = vmul.f32 %v7375, %v7394
        %v7422 = vmul.f32 %v7378, %v7394
        %v7423 = vmul.f32 %v7380, %v7394
        %v7424 = vmul.f32 %v7383, %v7394
        %v7425 = vmul.f32 %v7385, %v7394
        %v7426 = vmul.f32 %v7388, %v7394
        %v7427 = vmul.f32 %v7390, %v7394
        %v7428 = vld [vmem:[%s9] sm:$0x1]
        %v7430 = vperm.slane %v7428, 0
        %v7432 = vadd.f32 %v7396, %v7430
        %v7433 = vadd.f32 %v7397, %v7430
        %v7434 = vadd.f32 %v7398, %v7430
        %v7435 = vadd.f32 %v7399, %v7430
        %v7436 = vadd.f32 %v7400, %v7430
        %v7437 = vadd.f32 %v7401, %v7430
        %v7438 = vadd.f32 %v7402, %v7430
        %v7439 = vadd.f32 %v7403, %v7430
        %v7440 = vadd.f32 %v7404, %v7430
        %v7441 = vadd.f32 %v7405, %v7430
        %v7442 = vadd.f32 %v7406, %v7430
        %v7443 = vadd.f32 %v7407, %v7430
        %v7444 = vadd.f32 %v7408, %v7430
        %v7445 = vadd.f32 %v7409, %v7430
        %v7446 = vadd.f32 %v7410, %v7430
        %v7447 = vadd.f32 %v7411, %v7430
        %v7448 = vadd.f32 %v7412, %v7430
        %v7449 = vadd.f32 %v7413, %v7430
        %v7450 = vadd.f32 %v7414, %v7430
        %v7451 = vadd.f32 %v7415, %v7430
        %v7452 = vadd.f32 %v7416, %v7430
        %v7453 = vadd.f32 %v7417, %v7430
        %v7454 = vadd.f32 %v7418, %v7430
        %v7455 = vadd.f32 %v7419, %v7430
        %v7456 = vadd.f32 %v7420, %v7430
        %v7457 = vadd.f32 %v7421, %v7430
        %v7458 = vadd.f32 %v7422, %v7430
        %v7459 = vadd.f32 %v7423, %v7430
        %v7460 = vadd.f32 %v7424, %v7430
        %v7461 = vadd.f32 %v7425, %v7430
        %v7462 = vadd.f32 %v7426, %v7430
        %v7463 = vadd.f32 %v7427, %v7430
        %v7464 = vadd.f32 %v6708, %v7432
        %v7465 = vadd.f32 %v6709, %v7433
        %v7466 = vadd.f32 %v6710, %v7434
        %v7467 = vadd.f32 %v6711, %v7435
        %v7468 = vadd.f32 %v6712, %v7436
        %v7469 = vadd.f32 %v6713, %v7437
        %v7470 = vadd.f32 %v6714, %v7438
        %v7471 = vadd.f32 %v6715, %v7439
        %v7472 = vadd.f32 %v6716, %v7440
        %v7473 = vadd.f32 %v6717, %v7441
        %v7474 = vadd.f32 %v6718, %v7442
        %v7475 = vadd.f32 %v6719, %v7443
        %v7476 = vadd.f32 %v6720, %v7444
        %v7477 = vadd.f32 %v6721, %v7445
        %v7478 = vadd.f32 %v6722, %v7446
        %v7479 = vadd.f32 %v6723, %v7447
        %v7480 = vadd.f32 %v6724, %v7448
        %v7481 = vadd.f32 %v6725, %v7449
        %v7482 = vadd.f32 %v6726, %v7450
        %v7483 = vadd.f32 %v6727, %v7451
        %v7484 = vadd.f32 %v6728, %v7452
        %v7485 = vadd.f32 %v6729, %v7453
        %v7486 = vadd.f32 %v6730, %v7454
        %v7487 = vadd.f32 %v6731, %v7455
        %v7488 = vadd.f32 %v6732, %v7456
        %v7489 = vadd.f32 %v6733, %v7457
        %v7490 = vadd.f32 %v6734, %v7458
        %v7491 = vadd.f32 %v6735, %v7459
        %v7492 = vadd.f32 %v6736, %v7460
        %v7493 = vadd.f32 %v6737, %v7461
        %v7494 = vadd.f32 %v6738, %v7462
        %v7495 = vadd.f32 %v6739, %v7463
        %v7496 = vmax.f32 %v7464, 0.0
        %v7497 = vmax.f32 %v7465, 0.0
        %v7498 = vmax.f32 %v7466, 0.0
        %v7499 = vmax.f32 %v7467, 0.0
        %v7500 = vmax.f32 %v7468, 0.0
        %v7501 = vmax.f32 %v7469, 0.0
        %v7502 = vmax.f32 %v7470, 0.0
        %v7503 = vmax.f32 %v7471, 0.0
        %v7504 = vmax.f32 %v7472, 0.0
        %v7505 = vmax.f32 %v7473, 0.0
        %v7506 = vmax.f32 %v7474, 0.0
        %v7507 = vmax.f32 %v7475, 0.0
        %v7508 = vmax.f32 %v7476, 0.0
        %v7509 = vmax.f32 %v7477, 0.0
        %v7510 = vmax.f32 %v7478, 0.0
        %v7511 = vmax.f32 %v7479, 0.0
        %v7512 = vmax.f32 %v7480, 0.0
        %v7513 = vmax.f32 %v7481, 0.0
        %v7514 = vmax.f32 %v7482, 0.0
        %v7515 = vmax.f32 %v7483, 0.0
        %v7516 = vmax.f32 %v7484, 0.0
        %v7517 = vmax.f32 %v7485, 0.0
        %v7518 = vmax.f32 %v7486, 0.0
        %v7519 = vmax.f32 %v7487, 0.0
        %v7520 = vmax.f32 %v7488, 0.0
        %v7521 = vmax.f32 %v7489, 0.0
        %v7522 = vmax.f32 %v7490, 0.0
        %v7523 = vmax.f32 %v7491, 0.0
        %v7524 = vmax.f32 %v7492, 0.0
        %v7525 = vmax.f32 %v7493, 0.0
        %v7526 = vmax.f32 %v7494, 0.0
        %v7527 = vmax.f32 %v7495, 0.0
        %7528 = vst [vmem:[%s369] sm:$0xff] %v7496
        %7529 = vst [vmem:[%s369 + $0x8] sm:$0xff] %v7497
        %7530 = vst [vmem:[%s369 + $0x10] sm:$0xff] %v7498
        %7531 = vst [vmem:[%s369 + $0x18] sm:$0xff] %v7499
        %7532 = vst [vmem:[%s369 + $0x20] sm:$0xff] %v7500
        %7533 = vst [vmem:[%s369 + $0x28] sm:$0xff] %v7501
        %7534 = vst [vmem:[%s369 + $0x30] sm:$0xff] %v7502
        %7535 = vst [vmem:[%s369 + $0x38] sm:$0xff] %v7503
        %7536 = vst [vmem:[%s369 + $0x40] sm:$0xff] %v7504
        %7537 = vst [vmem:[%s369 + $0x48] sm:$0xff] %v7505
        %7538 = vst [vmem:[%s369 + $0x50] sm:$0xff] %v7506
        %7539 = vst [vmem:[%s369 + $0x58] sm:$0xff] %v7507
        %7540 = vst [vmem:[%s369 + $0x60] sm:$0xff] %v7508
        %7541 = vst [vmem:[%s369 + $0x68] sm:$0xff] %v7509
        %7542 = vst [vmem:[%s369 + $0x70] sm:$0xff] %v7510
        %7543 = vst [vmem:[%s369 + $0x78] sm:$0xff] %v7511
        %7544 = vst [vmem:[%s369 + $0x80] sm:$0xff] %v7512
        %7545 = vst [vmem:[%s369 + $0x88] sm:$0xff] %v7513
        %7546 = vst [vmem:[%s369 + $0x90] sm:$0xff] %v7514
        %7547 = vst [vmem:[%s369 + $0x98] sm:$0xff] %v7515
        %7548 = vst [vmem:[%s369 + $0xa0] sm:$0xff] %v7516
        %7549 = vst [vmem:[%s369 + $0xa8] sm:$0xff] %v7517
        %7550 = vst [vmem:[%s369 + $0xb0] sm:$0xff] %v7518
        %7551 = vst [vmem:[%s369 + $0xb8] sm:$0xff] %v7519
        %7552 = vst [vmem:[%s369 + $0xc0] sm:$0xff] %v7520
        %7553 = vst [vmem:[%s369 + $0xc8] sm:$0xff] %v7521
        %7554 = vst [vmem:[%s369 + $0xd0] sm:$0xff] %v7522
        %7555 = vst [vmem:[%s369 + $0xd8] sm:$0xff] %v7523
        %7556 = vst [vmem:[%s369 + $0xe0] sm:$0xff] %v7524
        %7557 = vst [vmem:[%s369 + $0xe8] sm:$0xff] %v7525
        %7558 = vst [vmem:[%s369 + $0xf0] sm:$0xff] %v7526
        %7559 = vst [vmem:[%s369 + $0xf8] sm:$0xff] %v7527
        %s7560 = sand.u32 %s248, 1
        %s7561 = scalar_lea.sflag [#allocation5], %s7560
        %s7562 = sand.u32 %s248, 1
        %s7563 = smul.addr %s7562, 256
        %s7564 = scalar_lea.vmem [#allocation6], %s7563
        // Predicated region
        $region65: #{tpu_custom_call.1} parent=59 // pred_check
          %p7565 = pneg %p258
        $region66: #{tpu_custom_call.1} parent=59 // pred_check_branch
          %7567 = sbr.rel (%p7565) target = $region68
        $region67: #{tpu_custom_call.1} parent=59 // pred_region
          %7569 = vsyncadd %s7561, 0
          %s7570 = smul.addr %s25, 32
          %s7571 = smul.addr %s7570, 8
          %s7572 = scalar_lea.hbm %s10, %s7571
          %s7573 = sshll.u32 %s7564, 4
          %s7574 = int_to_ptr.vmem [resolvable:$true] %s7573
          %s7575 = sshll.u32 %s7572, 4
          %s7576 = int_to_ptr.hbm [resolvable:$true] %s7575
          %7581 = dma.vmem_to_hbm [thread:$0]  %s7574, 4096, %s7576, %s7561, 128, 128, 8
        $region68: #{tpu_custom_call.1} parent=59 // pred_fallthru
          _
      $region60: #{tpu_custom_call.1} parent=5 // pred_fallthru
        _
      %p7582 = scmp.le.s32.totalorder 2, %s20
      // Predicated region
      $region69: #{tpu_custom_call.1} parent=5 // pred_check
        %p7583 = pneg %p7582
      $region70: #{tpu_custom_call.1} parent=5 // pred_check_branch
        %7585 = sbr.rel (%p7583) target = $region72
      $region71: #{tpu_custom_call.1} parent=5 // pred_region
        %s7586 = ssub.s32 %s20, 2
        // Predicated region
        $region73: #{tpu_custom_call.1} parent=71 // pred_check
          %p7587 = pneg %p264
        $region74: #{tpu_custom_call.1} parent=71 // pred_check_branch
          %7589 = sbr.rel (%p7587) target = $region76
        $region75: #{tpu_custom_call.1} parent=71 // pred_region
          %s7590 = sand.u32 %s249, 1
          %s7591 = scalar_lea.sflag [#allocation5], %s7590
          %s7592 = sand.u32 %s249, 1
          %s7593 = smul.addr %s7592, 256
          %s7594 = scalar_lea.vmem [#allocation6], %s7593
          %7596 = dma.done %s7591, 4096
        $region76: #{tpu_custom_call.1} parent=71 // pred_fallthru
          _
      $region72: #{tpu_custom_call.1} parent=5 // pred_fallthru
        _
    $region6: #{tpu_custom_call.1} parent=1 // loop_footer
      %s24 = sadd.s32 1, %s20
    $region7: #{tpu_custom_call.1} parent=1 // loop_footer_branch
      %19 = sbr.rel target = $region3
    $region8: #{tpu_custom_call.1} parent=1 // loop_exit
      _
    %7597 = vsyncpa [#allocation4], 1
    %s7598 = scalar_lea.sflag [#allocation4], 1
    %7599 = vsyncpa %s7598, 1
    %7600 = vsyncpa [#allocation5], 1
    %s7601 = scalar_lea.sflag [#allocation5], 1
    %7602 = vsyncpa %s7601, 1

</llo_original>
